<compile_context>
chip_gen: v7x
topology: tpu7x:2x2x1
jax: 0.10.0
libtpu: 0.0.40
codegen_flags: <defaults>
</compile_context>

<pallas_src>
import functools

import jax
import jax.numpy as jnp
from jax.experimental import pallas as pl
from jax.experimental.pallas import tpu as pltpu


def _round_up(x, m):
    return (x + m - 1) // m * m


def _encoder_kernel(obs_ref, w1_ref, b1_ref, w2_ref, b2_ref, w3_ref, b3_ref,
                    w4_ref, b4_ref, o_ref, a0_ref, a1_ref, a2_ref, *,
                    bn, grid_w, heights, r_img, rows0):
    """Fused 4-layer conv encoder for one batch tile.

    Activations are 2-D in VMEM with row index = b*r_img + i*grid_w + j
    (b = image in tile, (i, j) = position on the fixed grid of width grid_w).
    A stride-1 VALID conv tap (ky, kx) is then a constant row offset
    d = ky*grid_w + kx, so each layer is a sum of k*k rank-2 MXU dots.
    Rows outside the shrinking valid region hold garbage but are only ever read
    when producing garbage rows, which are never extracted into the output.
    """
    # Deterministic scratch contents (pad/garbage regions feed only garbage rows).
    a0_ref[...] = jnp.zeros_like(a0_ref)
    a1_ref[...] = jnp.zeros_like(a1_ref)
    a2_ref[...] = jnp.zeros_like(a2_ref)

    # Stage 0: drop each image of the tile into its padded row slot.
    for b in range(bn):
        a0_ref[b * r_img:b * r_img + rows0, :] = obs_ref[b]

    def conv(src_ref, w_ref, b_ref, k, h_out):
        m = (bn - 1) * r_img + h_out * grid_w            # rows to produce
        acc = None
        for ky in range(k):
            for kx in range(k):
                d = ky * grid_w + kx
                lhs = src_ref[d:d + m, :]                # (m, cin) bf16
                part = jnp.dot(lhs, w_ref[ky * k + kx],  # (cin, cout) bf16
                               preferred_element_type=jnp.float32)
                acc = part if acc is None else acc + part
        # Bias + ReLU in f32 (v5e has no bf16 VPU); cast only at the store.
        return jnp.maximum(acc + b_ref[...], 0.0)

    _, h1, h2, h3, h4 = heights
    y = conv(a0_ref, w1_ref, b1_ref, 2, h1)              # layer 1 (2x2 on s2d grid)
    a1_ref[0:y.shape[0], :] = y.astype(a1_ref.dtype)
    y = conv(a1_ref, w2_ref, b2_ref, 3, h2)              # layer 2
    a2_ref[0:y.shape[0], :] = y.astype(a2_ref.dtype)
    y = conv(a2_ref, w3_ref, b3_ref, 3, h3)              # layer 3
    a1_ref[0:y.shape[0], :] = y.astype(a1_ref.dtype)
    y = conv(a1_ref, w4_ref, b4_ref, 3, h4)              # layer 4 (f32 result)

    m4 = h4 * grid_w
    for b in range(bn):
        o_ref[b] = y[b * r_img:b * r_img + m4, :].astype(o_ref.dtype)


def init_params(key, c_in, c_hidden=32, k=3):
    """Deterministic synthetic init (HWIO weights, (1, Cout) bias)."""
    # TODO(synk): utils.weight_init (orthogonal) not reproduced; synthetic init.
    params = []
    cin = c_in
    for _ in range(4):
        key, kw, kb = jax.random.split(key, 3)
        w = jax.random.normal(kw, (k, k, cin, c_hidden), jnp.float32) * 0.05
        b = jax.random.normal(kb, (1, c_hidden), jnp.float32) * 0.05
        params.append((w, b))
        cin = c_hidden
    return params


def _prepare_weights(params):
    """Layer-1: space-to-depth 2x2 taps with /255 - 0.5 folded in.
    Layers 2-4: (tap, Cin, Cout) views of HWIO weights.  bf16 weights, f32 bias."""
    (w1, b1) = params[0]
    kh, kw_, cin, cout = w1.shape
    assert (kh, kw_) == (3, 3)
    w1p = jnp.pad(w1, ((0, 1), (0, 1), (0, 0), (0, 0)))            # (4,4,cin,co)
    w1p = w1p.reshape(2, 2, 2, 2, cin, cout).transpose(0, 2, 1, 3, 4, 5)
    w1t = (w1p.reshape(4, 4 * cin, cout) / 255.0).astype(jnp.bfloat16)
    b1t = (b1.reshape(1, cout)
           - 0.5 * jnp.sum(w1, axis=(0, 1, 2)).reshape(1, cout)).astype(jnp.float32)
    prepped = [(w1t, b1t)]
    for w, b in params[1:]:
        prepped.append(
            (w.reshape(9, w.shape[2], w.shape[3]).astype(jnp.bfloat16),
             b.reshape(1, w.shape[3]).astype(jnp.float32)))
    return prepped


def encoder_forward(obs_nchw, params, *, batch_tile=4):
    """obs_nchw: (N, C, H, W) float32 in [0, 255] -> (N, 32*Hf*Wf)."""
    n, cin, h, w = obs_nchw.shape
    assert h % 2 == 0 and w % 2 == 0 and h >= 16 and w >= 16
    ch = params[0][0].shape[-1]                        # 32
    h0, w0 = h // 2, w // 2                            # space-to-depth grid
    heights = (h0, h0 - 1, h0 - 3, h0 - 5, h0 - 7)
    hf, wf = h0 - 7, w0 - 7                            # final valid spatial
    c0 = 4 * cin
    rows0 = h0 * w0
    r_img = _round_up(rows0 + 2, 8)                    # padded per-image row slot
    m4 = hf * w0

    bn = max(1, min(batch_tile, n))
    while n % bn:
        bn -= 1

    # Wrapper layout glue: NCHW -> NHWC -> space-to-depth(2) -> flat rows, bf16
    # (halves the dominant HBM stream).  One pass over obs, no duplication.
    x = jnp.transpose(obs_nchw, (0, 2, 3, 1))
    x = x.reshape(n, h0, 2, w0, 2, cin).transpose(0, 1, 3, 2, 4, 5)
    x = x.reshape(n, rows0, c0).astype(jnp.bfloat16)

    (w1t, b1t), (w2t, b2t), (w3t, b3t), (w4t, b4t) = _prepare_weights(params)

    kernel = functools.partial(
        _encoder_kernel, bn=bn, grid_w=w0, heights=heights,
        r_img=r_img, rows0=rows0)

    full3 = lambda g: (0, 0, 0)
    full2 = lambda g: (0, 0)
    out_raw = pl.pallas_call(
        kernel,
        out_shape=jax.ShapeDtypeStruct((n, m4, ch), jnp.float32),
        grid_spec=pltpu.PrefetchScalarGridSpec(
            num_scalar_prefetch=0,
            grid=(n // bn,),
            in_specs=[
                pl.BlockSpec((bn, rows0, c0), lambda g: (g, 0, 0)),
                pl.BlockSpec(w1t.shape, full3), pl.BlockSpec(b1t.shape, full2),
                pl.BlockSpec(w2t.shape, full3), pl.BlockSpec(b2t.shape, full2),
                pl.BlockSpec(w3t.shape, full3), pl.BlockSpec(b3t.shape, full2),
                pl.BlockSpec(w4t.shape, full3), pl.BlockSpec(b4t.shape, full2),
            ],
            out_specs=pl.BlockSpec((bn, m4, ch), lambda g: (g, 0, 0)),
            scratch_shapes=[
                pltpu.VMEM((bn * r_img, c0), jnp.bfloat16),
                pltpu.VMEM((bn * r_img, ch), jnp.bfloat16),
                pltpu.VMEM((bn * r_img, ch), jnp.bfloat16),
            ]),
        compiler_params=pltpu.CompilerParams(
            dimension_semantics=("parallel",)),
    )(x, w1t, b1t, w2t, b2t, w3t, b3t, w4t, b4t)

    # Drop the garbage grid columns and reproduce PyTorch's NCHW flatten.
    feat = out_raw.reshape(n, hf, w0, ch)[:, :, :wf, :]
    return jnp.transpose(feat, (0, 3, 1, 2)).reshape(n, ch * hf * wf)


def encoder_reference(obs_nchw, params):
    """Pure-JAX reference (lax conv, f32) with identical semantics."""
    x = obs_nchw / 255.0 - 0.5
    x = jnp.transpose(x, (0, 2, 3, 1))
    strides = (2, 1, 1, 1)
    for (w, b), s in zip(params, strides):
        y = jax.lax.conv_general_dilated(
            x, w, window_strides=(s, s), padding="VALID",
            dimension_numbers=("NHWC", "HWIO", "NHWC"))
        x = jnp.maximum(y + b.reshape(1, 1, 1, -1), 0.0)
    h = jnp.transpose(x, (0, 3, 1, 2))
    return h.reshape(h.shape[0], -1)


if __name__ == "__main__":
    key = jax.random.PRNGKey(0)
    k_obs, k_par = jax.random.split(key)

    # (N, C, H, W) = (2, 4, 16, 16): spatial 16 ->(s2) 7 -> 5 -> 3 -> 1, repr = 32
    obs = jax.random.uniform(k_obs, (2, 4, 16, 16), jnp.float32) * 255.0
    params = init_params(k_par, c_in=4)

    out = jax.block_until_ready(encoder_forward(obs, params))
    ref = jax.block_until_ready(encoder_reference(obs, params))

    assert out.shape == (2, 32 * 1 * 1), out.shape
    err = float(jnp.max(jnp.abs(out - ref)))
    assert jnp.allclose(out, ref, atol=2e-2, rtol=2e-2), err
    print("KERNEL_OK")
</pallas_src>

<mosaic_0001>
module attributes {stable_mosaic.version = 11 : i64} {
  func.func @_encoder_kernel(%arg0: i32, %arg1: memref<2x64x16xbf16, #tpu.memory_space<vmem>>, %arg2: memref<4x16x32xbf16, #tpu.memory_space<vmem>>, %arg3: memref<1x32xf32, #tpu.memory_space<vmem>>, %arg4: memref<9x32x32xbf16, #tpu.memory_space<vmem>>, %arg5: memref<1x32xf32, #tpu.memory_space<vmem>>, %arg6: memref<9x32x32xbf16, #tpu.memory_space<vmem>>, %arg7: memref<1x32xf32, #tpu.memory_space<vmem>>, %arg8: memref<9x32x32xbf16, #tpu.memory_space<vmem>>, %arg9: memref<1x32xf32, #tpu.memory_space<vmem>>, %arg10: memref<2x8x32xf32, #tpu.memory_space<vmem>>, %arg11: memref<144x16xbf16, #tpu.memory_space<vmem>>, %arg12: memref<144x32xbf16, #tpu.memory_space<vmem>>, %arg13: memref<144x32xbf16, #tpu.memory_space<vmem>>) attributes {dimension_semantics = [#tpu.dimension_semantics<parallel>], iteration_bounds = array<i64: 1>, scalar_prefetch = 0 : i64, scratch_operands = 3 : i64, tpu.core_type = #tpu.core_type<tc>, window_params = [{transform_indices = @transform_0, window_bounds = array<i64: 2, 64, 16>}, {pipeline_mode = #tpu.pipeline_mode<synchronous>, transform_indices = @transform_1, window_bounds = array<i64: 4, 16, 32>}, {pipeline_mode = #tpu.pipeline_mode<synchronous>, transform_indices = @transform_2, window_bounds = array<i64: 1, 32>}, {pipeline_mode = #tpu.pipeline_mode<synchronous>, transform_indices = @transform_3, window_bounds = array<i64: 9, 32, 32>}, {pipeline_mode = #tpu.pipeline_mode<synchronous>, transform_indices = @transform_4, window_bounds = array<i64: 1, 32>}, {pipeline_mode = #tpu.pipeline_mode<synchronous>, transform_indices = @transform_5, window_bounds = array<i64: 9, 32, 32>}, {pipeline_mode = #tpu.pipeline_mode<synchronous>, transform_indices = @transform_6, window_bounds = array<i64: 1, 32>}, {pipeline_mode = #tpu.pipeline_mode<synchronous>, transform_indices = @transform_7, window_bounds = array<i64: 9, 32, 32>}, {pipeline_mode = #tpu.pipeline_mode<synchronous>, transform_indices = @transform_8, window_bounds = array<i64: 1, 32>}, {transform_indices = @transform_9, window_bounds = array<i64: 2, 8, 32>}]} {
    %cst = arith.constant 0.000000e+00 : bf16
    %0 = vector.broadcast %cst : bf16 to vector<144x16xbf16>
    %c0 = arith.constant 0 : index
    %c0_0 = arith.constant 0 : index
    %1 = vector.load %arg11[%c0, %c0_0] : memref<144x16xbf16, #tpu.memory_space<vmem>>, vector<144x16xbf16>
    tpu.vector_store %arg11[%c0, %c0_0], %0 {strides = array<i32>} : memref<144x16xbf16, #tpu.memory_space<vmem>>, vector<144x16xbf16>,
    %cst_1 = arith.constant 0.000000e+00 : bf16
    %2 = vector.broadcast %cst_1 : bf16 to vector<144x32xbf16>
    %c0_2 = arith.constant 0 : index
    %c0_3 = arith.constant 0 : index
    %3 = vector.load %arg12[%c0_2, %c0_3] : memref<144x32xbf16, #tpu.memory_space<vmem>>, vector<144x32xbf16>
    tpu.vector_store %arg12[%c0_2, %c0_3], %2 {strides = array<i32>} : memref<144x32xbf16, #tpu.memory_space<vmem>>, vector<144x32xbf16>,
    %cst_4 = arith.constant 0.000000e+00 : bf16
    %4 = vector.broadcast %cst_4 : bf16 to vector<144x32xbf16>
    %c0_5 = arith.constant 0 : index
    %c0_6 = arith.constant 0 : index
    %5 = vector.load %arg13[%c0_5, %c0_6] : memref<144x32xbf16, #tpu.memory_space<vmem>>, vector<144x32xbf16>
    tpu.vector_store %arg13[%c0_5, %c0_6], %4 {strides = array<i32>} : memref<144x32xbf16, #tpu.memory_space<vmem>>, vector<144x32xbf16>,
    %c0_7 = arith.constant 0 : index
    %c0_8 = arith.constant 0 : index
    %c0_9 = arith.constant 0 : index
    %6 = vector.load %arg1[%c0_7, %c0_8, %c0_9] : memref<2x64x16xbf16, #tpu.memory_space<vmem>>, vector<1x64x16xbf16>
    %7 = vector.shape_cast %6 : vector<1x64x16xbf16> to vector<64x16xbf16>
    %c0_10 = arith.constant 0 : index
    %c0_11 = arith.constant 0 : index
    %8 = vector.load %arg11[%c0_10, %c0_11] : memref<144x16xbf16, #tpu.memory_space<vmem>>, vector<64x16xbf16>
    tpu.vector_store %arg11[%c0_10, %c0_11], %7 {strides = array<i32>} : memref<144x16xbf16, #tpu.memory_space<vmem>>, vector<64x16xbf16>,
    %c1 = arith.constant 1 : index
    %c0_12 = arith.constant 0 : index
    %c0_13 = arith.constant 0 : index
    %9 = vector.load %arg1[%c1, %c0_12, %c0_13] : memref<2x64x16xbf16, #tpu.memory_space<vmem>>, vector<1x64x16xbf16>
    %10 = vector.shape_cast %9 : vector<1x64x16xbf16> to vector<64x16xbf16>
    %c72 = arith.constant 72 : index
    %c0_14 = arith.constant 0 : index
    %11 = vector.load %arg11[%c72, %c0_14] : memref<144x16xbf16, #tpu.memory_space<vmem>>, vector<64x16xbf16>
    tpu.vector_store %arg11[%c72, %c0_14], %10 {strides = array<i32>} : memref<144x16xbf16, #tpu.memory_space<vmem>>, vector<64x16xbf16>,
    %c0_15 = arith.constant 0 : index
    %c0_16 = arith.constant 0 : index
    %12 = vector.load %arg11[%c0_15, %c0_16] : memref<144x16xbf16, #tpu.memory_space<vmem>>, vector<128x16xbf16>
    %c0_17 = arith.constant 0 : index
    %c0_18 = arith.constant 0 : index
    %c0_19 = arith.constant 0 : index
    %13 = vector.load %arg2[%c0_17, %c0_18, %c0_19] : memref<4x16x32xbf16, #tpu.memory_space<vmem>>, vector<1x16x32xbf16>
    %14 = vector.shape_cast %13 : vector<1x16x32xbf16> to vector<16x32xbf16>
    %cst_20 = arith.constant dense<0.000000e+00> : vector<128x32xf32>
    %15 = tpu.matmul %12, %14, %cst_20 {dimension_numbers = #tpu.dot_dimension_numbers<[1], [0], [0], [1], [0, 0, 1, 1], [], []>} : vector<128x16xbf16>, vector<16x32xbf16>, vector<128x32xf32> -> vector<128x32xf32>
    %c1_21 = arith.constant 1 : index
    %c0_22 = arith.constant 0 : index
    %16 = vector.load %arg11[%c1_21, %c0_22] : memref<144x16xbf16, #tpu.memory_space<vmem>>, vector<128x16xbf16>
    %c1_23 = arith.constant 1 : index
    %c0_24 = arith.constant 0 : index
    %c0_25 = arith.constant 0 : index
    %17 = vector.load %arg2[%c1_23, %c0_24, %c0_25] : memref<4x16x32xbf16, #tpu.memory_space<vmem>>, vector<1x16x32xbf16>
    %18 = vector.shape_cast %17 : vector<1x16x32xbf16> to vector<16x32xbf16>
    %cst_26 = arith.constant dense<0.000000e+00> : vector<128x32xf32>
    %19 = tpu.matmul %16, %18, %cst_26 {dimension_numbers = #tpu.dot_dimension_numbers<[1], [0], [0], [1], [0, 0, 1, 1], [], []>} : vector<128x16xbf16>, vector<16x32xbf16>, vector<128x32xf32> -> vector<128x32xf32>
    %20 = arith.addf %15, %19 : vector<128x32xf32>
    %c8 = arith.constant 8 : index
    %c0_27 = arith.constant 0 : index
    %21 = vector.load %arg11[%c8, %c0_27] : memref<144x16xbf16, #tpu.memory_space<vmem>>, vector<128x16xbf16>
    %c2 = arith.constant 2 : index
    %c0_28 = arith.constant 0 : index
    %c0_29 = arith.constant 0 : index
    %22 = vector.load %arg2[%c2, %c0_28, %c0_29] : memref<4x16x32xbf16, #tpu.memory_space<vmem>>, vector<1x16x32xbf16>
    %23 = vector.shape_cast %22 : vector<1x16x32xbf16> to vector<16x32xbf16>
    %cst_30 = arith.constant dense<0.000000e+00> : vector<128x32xf32>
    %24 = tpu.matmul %21, %23, %cst_30 {dimension_numbers = #tpu.dot_dimension_numbers<[1], [0], [0], [1], [0, 0, 1, 1], [], []>} : vector<128x16xbf16>, vector<16x32xbf16>, vector<128x32xf32> -> vector<128x32xf32>
    %25 = arith.addf %20, %24 : vector<128x32xf32>
    %c9 = arith.constant 9 : index
    %c0_31 = arith.constant 0 : index
    %26 = vector.load %arg11[%c9, %c0_31] : memref<144x16xbf16, #tpu.memory_space<vmem>>, vector<128x16xbf16>
    %c3 = arith.constant 3 : index
    %c0_32 = arith.constant 0 : index
    %c0_33 = arith.constant 0 : index
    %27 = vector.load %arg2[%c3, %c0_32, %c0_33] : memref<4x16x32xbf16, #tpu.memory_space<vmem>>, vector<1x16x32xbf16>
    %28 = vector.shape_cast %27 : vector<1x16x32xbf16> to vector<16x32xbf16>
    %cst_34 = arith.constant dense<0.000000e+00> : vector<128x32xf32>
    %29 = tpu.matmul %26, %28, %cst_34 {dimension_numbers = #tpu.dot_dimension_numbers<[1], [0], [0], [1], [0, 0, 1, 1], [], []>} : vector<128x16xbf16>, vector<16x32xbf16>, vector<128x32xf32> -> vector<128x32xf32>
    %30 = arith.addf %25, %29 : vector<128x32xf32>
    %c0_35 = arith.constant 0 : index
    %c0_36 = arith.constant 0 : index
    %31 = vector.load %arg3[%c0_35, %c0_36] : memref<1x32xf32, #tpu.memory_space<vmem>>, vector<1x32xf32>
    %32 = vector.broadcast %31 : vector<1x32xf32> to vector<128x32xf32>
    %33 = arith.addf %30, %32 : vector<128x32xf32>
    %cst_37 = arith.constant 0.000000e+00 : f32
    %34 = vector.broadcast %cst_37 : f32 to vector<128x32xf32>
    %35 = arith.maximumf %33, %34 : vector<128x32xf32>
    %36 = arith.truncf %35 : vector<128x32xf32> to vector<128x32xbf16>
    %c0_38 = arith.constant 0 : index
    %c0_39 = arith.constant 0 : index
    %37 = vector.load %arg12[%c0_38, %c0_39] : memref<144x32xbf16, #tpu.memory_space<vmem>>, vector<128x32xbf16>
    tpu.vector_store %arg12[%c0_38, %c0_39], %36 {strides = array<i32>} : memref<144x32xbf16, #tpu.memory_space<vmem>>, vector<128x32xbf16>,
    %c0_40 = arith.constant 0 : index
    %c0_41 = arith.constant 0 : index
    %38 = vector.load %arg12[%c0_40, %c0_41] : memref<144x32xbf16, #tpu.memory_space<vmem>>, vector<112x32xbf16>
    %c0_42 = arith.constant 0 : index
    %c0_43 = arith.constant 0 : index
    %c0_44 = arith.constant 0 : index
    %39 = vector.load %arg4[%c0_42, %c0_43, %c0_44] : memref<9x32x32xbf16, #tpu.memory_space<vmem>>, vector<1x32x32xbf16>
    %40 = vector.shape_cast %39 : vector<1x32x32xbf16> to vector<32x32xbf16>
    %cst_45 = arith.constant dense<0.000000e+00> : vector<112x32xf32>
    %41 = tpu.matmul %38, %40, %cst_45 {dimension_numbers = #tpu.dot_dimension_numbers<[1], [0], [0], [1], [0, 0, 1, 1], [], []>} : vector<112x32xbf16>, vector<32x32xbf16>, vector<112x32xf32> -> vector<112x32xf32>
    %c1_46 = arith.constant 1 : index
    %c0_47 = arith.constant 0 : index
    %42 = vector.load %arg12[%c1_46, %c0_47] : memref<144x32xbf16, #tpu.memory_space<vmem>>, vector<112x32xbf16>
    %c1_48 = arith.constant 1 : index
    %c0_49 = arith.constant 0 : index
    %c0_50 = arith.constant 0 : index
    %43 = vector.load %arg4[%c1_48, %c0_49, %c0_50] : memref<9x32x32xbf16, #tpu.memory_space<vmem>>, vector<1x32x32xbf16>
    %44 = vector.shape_cast %43 : vector<1x32x32xbf16> to vector<32x32xbf16>
    %cst_51 = arith.constant dense<0.000000e+00> : vector<112x32xf32>
    %45 = tpu.matmul %42, %44, %cst_51 {dimension_numbers = #tpu.dot_dimension_numbers<[1], [0], [0], [1], [0, 0, 1, 1], [], []>} : vector<112x32xbf16>, vector<32x32xbf16>, vector<112x32xf32> -> vector<112x32xf32>
    %46 = arith.addf %41, %45 : vector<112x32xf32>
    %c2_52 = arith.constant 2 : index
    %c0_53 = arith.constant 0 : index
    %47 = vector.load %arg12[%c2_52, %c0_53] : memref<144x32xbf16, #tpu.memory_space<vmem>>, vector<112x32xbf16>
    %c2_54 = arith.constant 2 : index
    %c0_55 = arith.constant 0 : index
    %c0_56 = arith.constant 0 : index
    %48 = vector.load %arg4[%c2_54, %c0_55, %c0_56] : memref<9x32x32xbf16, #tpu.memory_space<vmem>>, vector<1x32x32xbf16>
    %49 = vector.shape_cast %48 : vector<1x32x32xbf16> to vector<32x32xbf16>
    %cst_57 = arith.constant dense<0.000000e+00> : vector<112x32xf32>
    %50 = tpu.matmul %47, %49, %cst_57 {dimension_numbers = #tpu.dot_dimension_numbers<[1], [0], [0], [1], [0, 0, 1, 1], [], []>} : vector<112x32xbf16>, vector<32x32xbf16>, vector<112x32xf32> -> vector<112x32xf32>
    %51 = arith.addf %46, %50 : vector<112x32xf32>
    %c8_58 = arith.constant 8 : index
    %c0_59 = arith.constant 0 : index
    %52 = vector.load %arg12[%c8_58, %c0_59] : memref<144x32xbf16, #tpu.memory_space<vmem>>, vector<112x32xbf16>
    %c3_60 = arith.constant 3 : index
    %c0_61 = arith.constant 0 : index
    %c0_62 = arith.constant 0 : index
    %53 = vector.load %arg4[%c3_60, %c0_61, %c0_62] : memref<9x32x32xbf16, #tpu.memory_space<vmem>>, vector<1x32x32xbf16>
    %54 = vector.shape_cast %53 : vector<1x32x32xbf16> to vector<32x32xbf16>
    %cst_63 = arith.constant dense<0.000000e+00> : vector<112x32xf32>
    %55 = tpu.matmul %52, %54, %cst_63 {dimension_numbers = #tpu.dot_dimension_numbers<[1], [0], [0], [1], [0, 0, 1, 1], [], []>} : vector<112x32xbf16>, vector<32x32xbf16>, vector<112x32xf32> -> vector<112x32xf32>
    %56 = arith.addf %51, %55 : vector<112x32xf32>
    %c9_64 = arith.constant 9 : index
    %c0_65 = arith.constant 0 : index
    %57 = vector.load %arg12[%c9_64, %c0_65] : memref<144x32xbf16, #tpu.memory_space<vmem>>, vector<112x32xbf16>
    %c4 = arith.constant 4 : index
    %c0_66 = arith.constant 0 : index
    %c0_67 = arith.constant 0 : index
    %58 = vector.load %arg4[%c4, %c0_66, %c0_67] : memref<9x32x32xbf16, #tpu.memory_space<vmem>>, vector<1x32x32xbf16>
    %59 = vector.shape_cast %58 : vector<1x32x32xbf16> to vector<32x32xbf16>
    %cst_68 = arith.constant dense<0.000000e+00> : vector<112x32xf32>
    %60 = tpu.matmul %57, %59, %cst_68 {dimension_numbers = #tpu.dot_dimension_numbers<[1], [0], [0], [1], [0, 0, 1, 1], [], []>} : vector<112x32xbf16>, vector<32x32xbf16>, vector<112x32xf32> -> vector<112x32xf32>
    %61 = arith.addf %56, %60 : vector<112x32xf32>
    %c10 = arith.constant 10 : index
    %c0_69 = arith.constant 0 : index
    %62 = vector.load %arg12[%c10, %c0_69] : memref<144x32xbf16, #tpu.memory_space<vmem>>, vector<112x32xbf16>
    %c5 = arith.constant 5 : index
    %c0_70 = arith.constant 0 : index
    %c0_71 = arith.constant 0 : index
    %63 = vector.load %arg4[%c5, %c0_70, %c0_71] : memref<9x32x32xbf16, #tpu.memory_space<vmem>>, vector<1x32x32xbf16>
    %64 = vector.shape_cast %63 : vector<1x32x32xbf16> to vector<32x32xbf16>
    %cst_72 = arith.constant dense<0.000000e+00> : vector<112x32xf32>
    %65 = tpu.matmul %62, %64, %cst_72 {dimension_numbers = #tpu.dot_dimension_numbers<[1], [0], [0], [1], [0, 0, 1, 1], [], []>} : vector<112x32xbf16>, vector<32x32xbf16>, vector<112x32xf32> -> vector<112x32xf32>
    %66 = arith.addf %61, %65 : vector<112x32xf32>
    %c16 = arith.constant 16 : index
    %c0_73 = arith.constant 0 : index
    %67 = vector.load %arg12[%c16, %c0_73] : memref<144x32xbf16, #tpu.memory_space<vmem>>, vector<112x32xbf16>
    %c6 = arith.constant 6 : index
    %c0_74 = arith.constant 0 : index
    %c0_75 = arith.constant 0 : index
    %68 = vector.load %arg4[%c6, %c0_74, %c0_75] : memref<9x32x32xbf16, #tpu.memory_space<vmem>>, vector<1x32x32xbf16>
    %69 = vector.shape_cast %68 : vector<1x32x32xbf16> to vector<32x32xbf16>
    %cst_76 = arith.constant dense<0.000000e+00> : vector<112x32xf32>
    %70 = tpu.matmul %67, %69, %cst_76 {dimension_numbers = #tpu.dot_dimension_numbers<[1], [0], [0], [1], [0, 0, 1, 1], [], []>} : vector<112x32xbf16>, vector<32x32xbf16>, vector<112x32xf32> -> vector<112x32xf32>
    %71 = arith.addf %66, %70 : vector<112x32xf32>
    %c17 = arith.constant 17 : index
    %c0_77 = arith.constant 0 : index
    %72 = vector.load %arg12[%c17, %c0_77] : memref<144x32xbf16, #tpu.memory_space<vmem>>, vector<112x32xbf16>
    %c7 = arith.constant 7 : index
    %c0_78 = arith.constant 0 : index
    %c0_79 = arith.constant 0 : index
    %73 = vector.load %arg4[%c7, %c0_78, %c0_79] : memref<9x32x32xbf16, #tpu.memory_space<vmem>>, vector<1x32x32xbf16>
    %74 = vector.shape_cast %73 : vector<1x32x32xbf16> to vector<32x32xbf16>
    %cst_80 = arith.constant dense<0.000000e+00> : vector<112x32xf32>
    %75 = tpu.matmul %72, %74, %cst_80 {dimension_numbers = #tpu.dot_dimension_numbers<[1], [0], [0], [1], [0, 0, 1, 1], [], []>} : vector<112x32xbf16>, vector<32x32xbf16>, vector<112x32xf32> -> vector<112x32xf32>
    %76 = arith.addf %71, %75 : vector<112x32xf32>
    %c18 = arith.constant 18 : index
    %c0_81 = arith.constant 0 : index
    %77 = vector.load %arg12[%c18, %c0_81] : memref<144x32xbf16, #tpu.memory_space<vmem>>, vector<112x32xbf16>
    %c8_82 = arith.constant 8 : index
    %c0_83 = arith.constant 0 : index
    %c0_84 = arith.constant 0 : index
    %78 = vector.load %arg4[%c8_82, %c0_83, %c0_84] : memref<9x32x32xbf16, #tpu.memory_space<vmem>>, vector<1x32x32xbf16>
    %79 = vector.shape_cast %78 : vector<1x32x32xbf16> to vector<32x32xbf16>
    %cst_85 = arith.constant dense<0.000000e+00> : vector<112x32xf32>
    %80 = tpu.matmul %77, %79, %cst_85 {dimension_numbers = #tpu.dot_dimension_numbers<[1], [0], [0], [1], [0, 0, 1, 1], [], []>} : vector<112x32xbf16>, vector<32x32xbf16>, vector<112x32xf32> -> vector<112x32xf32>
    %81 = arith.addf %76, %80 : vector<112x32xf32>
    %c0_86 = arith.constant 0 : index
    %c0_87 = arith.constant 0 : index
    %82 = vector.load %arg5[%c0_86, %c0_87] : memref<1x32xf32, #tpu.memory_space<vmem>>, vector<1x32xf32>
    %83 = vector.broadcast %82 : vector<1x32xf32> to vector<112x32xf32>
    %84 = arith.addf %81, %83 : vector<112x32xf32>
    %cst_88 = arith.constant 0.000000e+00 : f32
    %85 = vector.broadcast %cst_88 : f32 to vector<112x32xf32>
    %86 = arith.maximumf %84, %85 : vector<112x32xf32>
    %87 = arith.truncf %86 : vector<112x32xf32> to vector<112x32xbf16>
    %c0_89 = arith.constant 0 : index
    %c0_90 = arith.constant 0 : index
    %88 = vector.load %arg13[%c0_89, %c0_90] : memref<144x32xbf16, #tpu.memory_space<vmem>>, vector<112x32xbf16>
    tpu.vector_store %arg13[%c0_89, %c0_90], %87 {strides = array<i32>} : memref<144x32xbf16, #tpu.memory_space<vmem>>, vector<112x32xbf16>,
    %c0_91 = arith.constant 0 : index
    %c0_92 = arith.constant 0 : index
    %89 = vector.load %arg13[%c0_91, %c0_92] : memref<144x32xbf16, #tpu.memory_space<vmem>>, vector<96x32xbf16>
    %c0_93 = arith.constant 0 : index
    %c0_94 = arith.constant 0 : index
    %c0_95 = arith.constant 0 : index
    %90 = vector.load %arg6[%c0_93, %c0_94, %c0_95] : memref<9x32x32xbf16, #tpu.memory_space<vmem>>, vector<1x32x32xbf16>
    %91 = vector.shape_cast %90 : vector<1x32x32xbf16> to vector<32x32xbf16>
    %cst_96 = arith.constant dense<0.000000e+00> : vector<96x32xf32>
    %92 = tpu.matmul %89, %91, %cst_96 {dimension_numbers = #tpu.dot_dimension_numbers<[1], [0], [0], [1], [0, 0, 1, 1], [], []>} : vector<96x32xbf16>, vector<32x32xbf16>, vector<96x32xf32> -> vector<96x32xf32>
    %c1_97 = arith.constant 1 : index
    %c0_98 = arith.constant 0 : index
    %93 = vector.load %arg13[%c1_97, %c0_98] : memref<144x32xbf16, #tpu.memory_space<vmem>>, vector<96x32xbf16>
    %c1_99 = arith.constant 1 : index
    %c0_100 = arith.constant 0 : index
    %c0_101 = arith.constant 0 : index
    %94 = vector.load %arg6[%c1_99, %c0_100, %c0_101] : memref<9x32x32xbf16, #tpu.memory_space<vmem>>, vector<1x32x32xbf16>
    %95 = vector.shape_cast %94 : vector<1x32x32xbf16> to vector<32x32xbf16>
    %cst_102 = arith.constant dense<0.000000e+00> : vector<96x32xf32>
    %96 = tpu.matmul %93, %95, %cst_102 {dimension_numbers = #tpu.dot_dimension_numbers<[1], [0], [0], [1], [0, 0, 1, 1], [], []>} : vector<96x32xbf16>, vector<32x32xbf16>, vector<96x32xf32> -> vector<96x32xf32>
    %97 = arith.addf %92, %96 : vector<96x32xf32>
    %c2_103 = arith.constant 2 : index
    %c0_104 = arith.constant 0 : index
    %98 = vector.load %arg13[%c2_103, %c0_104] : memref<144x32xbf16, #tpu.memory_space<vmem>>, vector<96x32xbf16>
    %c2_105 = arith.constant 2 : index
    %c0_106 = arith.constant 0 : index
    %c0_107 = arith.constant 0 : index
    %99 = vector.load %arg6[%c2_105, %c0_106, %c0_107] : memref<9x32x32xbf16, #tpu.memory_space<vmem>>, vector<1x32x32xbf16>
    %100 = vector.shape_cast %99 : vector<1x32x32xbf16> to vector<32x32xbf16>
    %cst_108 = arith.constant dense<0.000000e+00> : vector<96x32xf32>
    %101 = tpu.matmul %98, %100, %cst_108 {dimension_numbers = #tpu.dot_dimension_numbers<[1], [0], [0], [1], [0, 0, 1, 1], [], []>} : vector<96x32xbf16>, vector<32x32xbf16>, vector<96x32xf32> -> vector<96x32xf32>
    %102 = arith.addf %97, %101 : vector<96x32xf32>
    %c8_109 = arith.constant 8 : index
    %c0_110 = arith.constant 0 : index
    %103 = vector.load %arg13[%c8_109, %c0_110] : memref<144x32xbf16, #tpu.memory_space<vmem>>, vector<96x32xbf16>
    %c3_111 = arith.constant 3 : index
    %c0_112 = arith.constant 0 : index
    %c0_113 = arith.constant 0 : index
    %104 = vector.load %arg6[%c3_111, %c0_112, %c0_113] : memref<9x32x32xbf16, #tpu.memory_space<vmem>>, vector<1x32x32xbf16>
    %105 = vector.shape_cast %104 : vector<1x32x32xbf16> to vector<32x32xbf16>
    %cst_114 = arith.constant dense<0.000000e+00> : vector<96x32xf32>
    %106 = tpu.matmul %103, %105, %cst_114 {dimension_numbers = #tpu.dot_dimension_numbers<[1], [0], [0], [1], [0, 0, 1, 1], [], []>} : vector<96x32xbf16>, vector<32x32xbf16>, vector<96x32xf32> -> vector<96x32xf32>
    %107 = arith.addf %102, %106 : vector<96x32xf32>
    %c9_115 = arith.constant 9 : index
    %c0_116 = arith.constant 0 : index
    %108 = vector.load %arg13[%c9_115, %c0_116] : memref<144x32xbf16, #tpu.memory_space<vmem>>, vector<96x32xbf16>
    %c4_117 = arith.constant 4 : index
    %c0_118 = arith.constant 0 : index
    %c0_119 = arith.constant 0 : index
    %109 = vector.load %arg6[%c4_117, %c0_118, %c0_119] : memref<9x32x32xbf16, #tpu.memory_space<vmem>>, vector<1x32x32xbf16>
    %110 = vector.shape_cast %109 : vector<1x32x32xbf16> to vector<32x32xbf16>
    %cst_120 = arith.constant dense<0.000000e+00> : vector<96x32xf32>
    %111 = tpu.matmul %108, %110, %cst_120 {dimension_numbers = #tpu.dot_dimension_numbers<[1], [0], [0], [1], [0, 0, 1, 1], [], []>} : vector<96x32xbf16>, vector<32x32xbf16>, vector<96x32xf32> -> vector<96x32xf32>
    %112 = arith.addf %107, %111 : vector<96x32xf32>
    %c10_121 = arith.constant 10 : index
    %c0_122 = arith.constant 0 : index
    %113 = vector.load %arg13[%c10_121, %c0_122] : memref<144x32xbf16, #tpu.memory_space<vmem>>, vector<96x32xbf16>
    %c5_123 = arith.constant 5 : index
    %c0_124 = arith.constant 0 : index
    %c0_125 = arith.constant 0 : index
    %114 = vector.load %arg6[%c5_123, %c0_124, %c0_125] : memref<9x32x32xbf16, #tpu.memory_space<vmem>>, vector<1x32x32xbf16>
    %115 = vector.shape_cast %114 : vector<1x32x32xbf16> to vector<32x32xbf16>
    %cst_126 = arith.constant dense<0.000000e+00> : vector<96x32xf32>
    %116 = tpu.matmul %113, %115, %cst_126 {dimension_numbers = #tpu.dot_dimension_numbers<[1], [0], [0], [1], [0, 0, 1, 1], [], []>} : vector<96x32xbf16>, vector<32x32xbf16>, vector<96x32xf32> -> vector<96x32xf32>
    %117 = arith.addf %112, %116 : vector<96x32xf32>
    %c16_127 = arith.constant 16 : index
    %c0_128 = arith.constant 0 : index
    %118 = vector.load %arg13[%c16_127, %c0_128] : memref<144x32xbf16, #tpu.memory_space<vmem>>, vector<96x32xbf16>
    %c6_129 = arith.constant 6 : index
    %c0_130 = arith.constant 0 : index
    %c0_131 = arith.constant 0 : index
    %119 = vector.load %arg6[%c6_129, %c0_130, %c0_131] : memref<9x32x32xbf16, #tpu.memory_space<vmem>>, vector<1x32x32xbf16>
    %120 = vector.shape_cast %119 : vector<1x32x32xbf16> to vector<32x32xbf16>
    %cst_132 = arith.constant dense<0.000000e+00> : vector<96x32xf32>
    %121 = tpu.matmul %118, %120, %cst_132 {dimension_numbers = #tpu.dot_dimension_numbers<[1], [0], [0], [1], [0, 0, 1, 1], [], []>} : vector<96x32xbf16>, vector<32x32xbf16>, vector<96x32xf32> -> vector<96x32xf32>
    %122 = arith.addf %117, %121 : vector<96x32xf32>
    %c17_133 = arith.constant 17 : index
    %c0_134 = arith.constant 0 : index
    %123 = vector.load %arg13[%c17_133, %c0_134] : memref<144x32xbf16, #tpu.memory_space<vmem>>, vector<96x32xbf16>
    %c7_135 = arith.constant 7 : index
    %c0_136 = arith.constant 0 : index
    %c0_137 = arith.constant 0 : index
    %124 = vector.load %arg6[%c7_135, %c0_136, %c0_137] : memref<9x32x32xbf16, #tpu.memory_space<vmem>>, vector<1x32x32xbf16>
    %125 = vector.shape_cast %124 : vector<1x32x32xbf16> to vector<32x32xbf16>
    %cst_138 = arith.constant dense<0.000000e+00> : vector<96x32xf32>
    %126 = tpu.matmul %123, %125, %cst_138 {dimension_numbers = #tpu.dot_dimension_numbers<[1], [0], [0], [1], [0, 0, 1, 1], [], []>} : vector<96x32xbf16>, vector<32x32xbf16>, vector<96x32xf32> -> vector<96x32xf32>
    %127 = arith.addf %122, %126 : vector<96x32xf32>
    %c18_139 = arith.constant 18 : index
    %c0_140 = arith.constant 0 : index
    %128 = vector.load %arg13[%c18_139, %c0_140] : memref<144x32xbf16, #tpu.memory_space<vmem>>, vector<96x32xbf16>
    %c8_141 = arith.constant 8 : index
    %c0_142 = arith.constant 0 : index
    %c0_143 = arith.constant 0 : index
    %129 = vector.load %arg6[%c8_141, %c0_142, %c0_143] : memref<9x32x32xbf16, #tpu.memory_space<vmem>>, vector<1x32x32xbf16>
    %130 = vector.shape_cast %129 : vector<1x32x32xbf16> to vector<32x32xbf16>
    %cst_144 = arith.constant dense<0.000000e+00> : vector<96x32xf32>
    %131 = tpu.matmul %128, %130, %cst_144 {dimension_numbers = #tpu.dot_dimension_numbers<[1], [0], [0], [1], [0, 0, 1, 1], [], []>} : vector<96x32xbf16>, vector<32x32xbf16>, vector<96x32xf32> -> vector<96x32xf32>
    %132 = arith.addf %127, %131 : vector<96x32xf32>
    %c0_145 = arith.constant 0 : index
    %c0_146 = arith.constant 0 : index
    %133 = vector.load %arg7[%c0_145, %c0_146] : memref<1x32xf32, #tpu.memory_space<vmem>>, vector<1x32xf32>
    %134 = vector.broadcast %133 : vector<1x32xf32> to vector<96x32xf32>
    %135 = arith.addf %132, %134 : vector<96x32xf32>
    %cst_147 = arith.constant 0.000000e+00 : f32
    %136 = vector.broadcast %cst_147 : f32 to vector<96x32xf32>
    %137 = arith.maximumf %135, %136 : vector<96x32xf32>
    %138 = arith.truncf %137 : vector<96x32xf32> to vector<96x32xbf16>
    %c0_148 = arith.constant 0 : index
    %c0_149 = arith.constant 0 : index
    %139 = vector.load %arg12[%c0_148, %c0_149] : memref<144x32xbf16, #tpu.memory_space<vmem>>, vector<96x32xbf16>
    tpu.vector_store %arg12[%c0_148, %c0_149], %138 {strides = array<i32>} : memref<144x32xbf16, #tpu.memory_space<vmem>>, vector<96x32xbf16>,
    %c0_150 = arith.constant 0 : index
    %c0_151 = arith.constant 0 : index
    %140 = vector.load %arg12[%c0_150, %c0_151] : memref<144x32xbf16, #tpu.memory_space<vmem>>, vector<80x32xbf16>
    %c0_152 = arith.constant 0 : index
    %c0_153 = arith.constant 0 : index
    %c0_154 = arith.constant 0 : index
    %141 = vector.load %arg8[%c0_152, %c0_153, %c0_154] : memref<9x32x32xbf16, #tpu.memory_space<vmem>>, vector<1x32x32xbf16>
    %142 = vector.shape_cast %141 : vector<1x32x32xbf16> to vector<32x32xbf16>
    %cst_155 = arith.constant dense<0.000000e+00> : vector<80x32xf32>
    %143 = tpu.matmul %140, %142, %cst_155 {dimension_numbers = #tpu.dot_dimension_numbers<[1], [0], [0], [1], [0, 0, 1, 1], [], []>} : vector<80x32xbf16>, vector<32x32xbf16>, vector<80x32xf32> -> vector<80x32xf32>
    %c1_156 = arith.constant 1 : index
    %c0_157 = arith.constant 0 : index
    %144 = vector.load %arg12[%c1_156, %c0_157] : memref<144x32xbf16, #tpu.memory_space<vmem>>, vector<80x32xbf16>
    %c1_158 = arith.constant 1 : index
    %c0_159 = arith.constant 0 : index
    %c0_160 = arith.constant 0 : index
    %145 = vector.load %arg8[%c1_158, %c0_159, %c0_160] : memref<9x32x32xbf16, #tpu.memory_space<vmem>>, vector<1x32x32xbf16>
    %146 = vector.shape_cast %145 : vector<1x32x32xbf16> to vector<32x32xbf16>
    %cst_161 = arith.constant dense<0.000000e+00> : vector<80x32xf32>
    %147 = tpu.matmul %144, %146, %cst_161 {dimension_numbers = #tpu.dot_dimension_numbers<[1], [0], [0], [1], [0, 0, 1, 1], [], []>} : vector<80x32xbf16>, vector<32x32xbf16>, vector<80x32xf32> -> vector<80x32xf32>
    %148 = arith.addf %143, %147 : vector<80x32xf32>
    %c2_162 = arith.constant 2 : index
    %c0_163 = arith.constant 0 : index
    %149 = vector.load %arg12[%c2_162, %c0_163] : memref<144x32xbf16, #tpu.memory_space<vmem>>, vector<80x32xbf16>
    %c2_164 = arith.constant 2 : index
    %c0_165 = arith.constant 0 : index
    %c0_166 = arith.constant 0 : index
    %150 = vector.load %arg8[%c2_164, %c0_165, %c0_166] : memref<9x32x32xbf16, #tpu.memory_space<vmem>>, vector<1x32x32xbf16>
    %151 = vector.shape_cast %150 : vector<1x32x32xbf16> to vector<32x32xbf16>
    %cst_167 = arith.constant dense<0.000000e+00> : vector<80x32xf32>
    %152 = tpu.matmul %149, %151, %cst_167 {dimension_numbers = #tpu.dot_dimension_numbers<[1], [0], [0], [1], [0, 0, 1, 1], [], []>} : vector<80x32xbf16>, vector<32x32xbf16>, vector<80x32xf32> -> vector<80x32xf32>
    %153 = arith.addf %148, %152 : vector<80x32xf32>
    %c8_168 = arith.constant 8 : index
    %c0_169 = arith.constant 0 : index
    %154 = vector.load %arg12[%c8_168, %c0_169] : memref<144x32xbf16, #tpu.memory_space<vmem>>, vector<80x32xbf16>
    %c3_170 = arith.constant 3 : index
    %c0_171 = arith.constant 0 : index
    %c0_172 = arith.constant 0 : index
    %155 = vector.load %arg8[%c3_170, %c0_171, %c0_172] : memref<9x32x32xbf16, #tpu.memory_space<vmem>>, vector<1x32x32xbf16>
    %156 = vector.shape_cast %155 : vector<1x32x32xbf16> to vector<32x32xbf16>
    %cst_173 = arith.constant dense<0.000000e+00> : vector<80x32xf32>
    %157 = tpu.matmul %154, %156, %cst_173 {dimension_numbers = #tpu.dot_dimension_numbers<[1], [0], [0], [1], [0, 0, 1, 1], [], []>} : vector<80x32xbf16>, vector<32x32xbf16>, vector<80x32xf32> -> vector<80x32xf32>
    %158 = arith.addf %153, %157 : vector<80x32xf32>
    %c9_174 = arith.constant 9 : index
    %c0_175 = arith.constant 0 : index
    %159 = vector.load %arg12[%c9_174, %c0_175] : memref<144x32xbf16, #tpu.memory_space<vmem>>, vector<80x32xbf16>
    %c4_176 = arith.constant 4 : index
    %c0_177 = arith.constant 0 : index
    %c0_178 = arith.constant 0 : index
    %160 = vector.load %arg8[%c4_176, %c0_177, %c0_178] : memref<9x32x32xbf16, #tpu.memory_space<vmem>>, vector<1x32x32xbf16>
    %161 = vector.shape_cast %160 : vector<1x32x32xbf16> to vector<32x32xbf16>
    %cst_179 = arith.constant dense<0.000000e+00> : vector<80x32xf32>
    %162 = tpu.matmul %159, %161, %cst_179 {dimension_numbers = #tpu.dot_dimension_numbers<[1], [0], [0], [1], [0, 0, 1, 1], [], []>} : vector<80x32xbf16>, vector<32x32xbf16>, vector<80x32xf32> -> vector<80x32xf32>
    %163 = arith.addf %158, %162 : vector<80x32xf32>
    %c10_180 = arith.constant 10 : index
    %c0_181 = arith.constant 0 : index
    %164 = vector.load %arg12[%c10_180, %c0_181] : memref<144x32xbf16, #tpu.memory_space<vmem>>, vector<80x32xbf16>
    %c5_182 = arith.constant 5 : index
    %c0_183 = arith.constant 0 : index
    %c0_184 = arith.constant 0 : index
    %165 = vector.load %arg8[%c5_182, %c0_183, %c0_184] : memref<9x32x32xbf16, #tpu.memory_space<vmem>>, vector<1x32x32xbf16>
    %166 = vector.shape_cast %165 : vector<1x32x32xbf16> to vector<32x32xbf16>
    %cst_185 = arith.constant dense<0.000000e+00> : vector<80x32xf32>
    %167 = tpu.matmul %164, %166, %cst_185 {dimension_numbers = #tpu.dot_dimension_numbers<[1], [0], [0], [1], [0, 0, 1, 1], [], []>} : vector<80x32xbf16>, vector<32x32xbf16>, vector<80x32xf32> -> vector<80x32xf32>
    %168 = arith.addf %163, %167 : vector<80x32xf32>
    %c16_186 = arith.constant 16 : index
    %c0_187 = arith.constant 0 : index
    %169 = vector.load %arg12[%c16_186, %c0_187] : memref<144x32xbf16, #tpu.memory_space<vmem>>, vector<80x32xbf16>
    %c6_188 = arith.constant 6 : index
    %c0_189 = arith.constant 0 : index
    %c0_190 = arith.constant 0 : index
    %170 = vector.load %arg8[%c6_188, %c0_189, %c0_190] : memref<9x32x32xbf16, #tpu.memory_space<vmem>>, vector<1x32x32xbf16>
    %171 = vector.shape_cast %170 : vector<1x32x32xbf16> to vector<32x32xbf16>
    %cst_191 = arith.constant dense<0.000000e+00> : vector<80x32xf32>
    %172 = tpu.matmul %169, %171, %cst_191 {dimension_numbers = #tpu.dot_dimension_numbers<[1], [0], [0], [1], [0, 0, 1, 1], [], []>} : vector<80x32xbf16>, vector<32x32xbf16>, vector<80x32xf32> -> vector<80x32xf32>
    %173 = arith.addf %168, %172 : vector<80x32xf32>
    %c17_192 = arith.constant 17 : index
    %c0_193 = arith.constant 0 : index
    %174 = vector.load %arg12[%c17_192, %c0_193] : memref<144x32xbf16, #tpu.memory_space<vmem>>, vector<80x32xbf16>
    %c7_194 = arith.constant 7 : index
    %c0_195 = arith.constant 0 : index
    %c0_196 = arith.constant 0 : index
    %175 = vector.load %arg8[%c7_194, %c0_195, %c0_196] : memref<9x32x32xbf16, #tpu.memory_space<vmem>>, vector<1x32x32xbf16>
    %176 = vector.shape_cast %175 : vector<1x32x32xbf16> to vector<32x32xbf16>
    %cst_197 = arith.constant dense<0.000000e+00> : vector<80x32xf32>
    %177 = tpu.matmul %174, %176, %cst_197 {dimension_numbers = #tpu.dot_dimension_numbers<[1], [0], [0], [1], [0, 0, 1, 1], [], []>} : vector<80x32xbf16>, vector<32x32xbf16>, vector<80x32xf32> -> vector<80x32xf32>
    %178 = arith.addf %173, %177 : vector<80x32xf32>
    %c18_198 = arith.constant 18 : index
    %c0_199 = arith.constant 0 : index
    %179 = vector.load %arg12[%c18_198, %c0_199] : memref<144x32xbf16, #tpu.memory_space<vmem>>, vector<80x32xbf16>
    %c8_200 = arith.constant 8 : index
    %c0_201 = arith.constant 0 : index
    %c0_202 = arith.constant 0 : index
    %180 = vector.load %arg8[%c8_200, %c0_201, %c0_202] : memref<9x32x32xbf16, #tpu.memory_space<vmem>>, vector<1x32x32xbf16>
    %181 = vector.shape_cast %180 : vector<1x32x32xbf16> to vector<32x32xbf16>
    %cst_203 = arith.constant dense<0.000000e+00> : vector<80x32xf32>
    %182 = tpu.matmul %179, %181, %cst_203 {dimension_numbers = #tpu.dot_dimension_numbers<[1], [0], [0], [1], [0, 0, 1, 1], [], []>} : vector<80x32xbf16>, vector<32x32xbf16>, vector<80x32xf32> -> vector<80x32xf32>
    %183 = arith.addf %178, %182 : vector<80x32xf32>
    %c0_204 = arith.constant 0 : index
    %c0_205 = arith.constant 0 : index
    %184 = vector.load %arg9[%c0_204, %c0_205] : memref<1x32xf32, #tpu.memory_space<vmem>>, vector<1x32xf32>
    %185 = vector.broadcast %184 : vector<1x32xf32> to vector<80x32xf32>
    %186 = arith.addf %183, %185 : vector<80x32xf32>
    %cst_206 = arith.constant 0.000000e+00 : f32
    %187 = vector.broadcast %cst_206 : f32 to vector<80x32xf32>
    %188 = arith.maximumf %186, %187 : vector<80x32xf32>
    %189 = vector.extract_strided_slice %188 {offsets = [0, 0], sizes = [8, 32], strides = [1, 1]} : vector<80x32xf32> to vector<8x32xf32>
    %c0_207 = arith.constant 0 : index
    %c0_208 = arith.constant 0 : index
    %c0_209 = arith.constant 0 : index
    %190 = vector.load %arg10[%c0_207, %c0_208, %c0_209] : memref<2x8x32xf32, #tpu.memory_space<vmem>>, vector<1x8x32xf32>
    %191 = vector.shape_cast %190 : vector<1x8x32xf32> to vector<8x32xf32>
    %192 = vector.shape_cast %189 : vector<8x32xf32> to vector<1x8x32xf32>
    tpu.vector_store %arg10[%c0_207, %c0_208, %c0_209], %192 {strides = array<i32>} : memref<2x8x32xf32, #tpu.memory_space<vmem>>, vector<1x8x32xf32>,
    %193 = vector.extract_strided_slice %188 {offsets = [72, 0], sizes = [8, 32], strides = [1, 1]} : vector<80x32xf32> to vector<8x32xf32>
    %c1_210 = arith.constant 1 : index
    %c0_211 = arith.constant 0 : index
    %c0_212 = arith.constant 0 : index
    %194 = vector.load %arg10[%c1_210, %c0_211, %c0_212] : memref<2x8x32xf32, #tpu.memory_space<vmem>>, vector<1x8x32xf32>
    %195 = vector.shape_cast %194 : vector<1x8x32xf32> to vector<8x32xf32>
    %196 = vector.shape_cast %193 : vector<8x32xf32> to vector<1x8x32xf32>
    tpu.vector_store %arg10[%c1_210, %c0_211, %c0_212], %196 {strides = array<i32>} : memref<2x8x32xf32, #tpu.memory_space<vmem>>, vector<1x8x32xf32>,
    return
  }
  func.func @transform_0(%arg0: i32) -> (i32, i32, i32) {
    %c0_i32 = arith.constant 0 : i32
    %c0_i32_0 = arith.constant 0 : i32
    %c0_i32_1 = arith.constant 0 : i32
    return %arg0, %c0_i32, %c0_i32_0 : i32, i32, i32
  }
  func.func @transform_1(%arg0: i32) -> (i32, i32, i32) {
    %c0_i32 = arith.constant 0 : i32
    %c0_i32_0 = arith.constant 0 : i32
    %c0_i32_1 = arith.constant 0 : i32
    %c0_i32_2 = arith.constant 0 : i32
    return %c0_i32, %c0_i32_0, %c0_i32_1 : i32, i32, i32
  }
  func.func @transform_2(%arg0: i32) -> (i32, i32) {
    %c0_i32 = arith.constant 0 : i32
    %c0_i32_0 = arith.constant 0 : i32
    %c0_i32_1 = arith.constant 0 : i32
    return %c0_i32, %c0_i32_0 : i32, i32
  }
  func.func @transform_3(%arg0: i32) -> (i32, i32, i32) {
    %c0_i32 = arith.constant 0 : i32
    %c0_i32_0 = arith.constant 0 : i32
    %c0_i32_1 = arith.constant 0 : i32
    %c0_i32_2 = arith.constant 0 : i32
    return %c0_i32, %c0_i32_0, %c0_i32_1 : i32, i32, i32
  }
  func.func @transform_4(%arg0: i32) -> (i32, i32) {
    %c0_i32 = arith.constant 0 : i32
    %c0_i32_0 = arith.constant 0 : i32
    %c0_i32_1 = arith.constant 0 : i32
    return %c0_i32, %c0_i32_0 : i32, i32
  }
  func.func @transform_5(%arg0: i32) -> (i32, i32, i32) {
    %c0_i32 = arith.constant 0 : i32
    %c0_i32_0 = arith.constant 0 : i32
    %c0_i32_1 = arith.constant 0 : i32
    %c0_i32_2 = arith.constant 0 : i32
    return %c0_i32, %c0_i32_0, %c0_i32_1 : i32, i32, i32
  }
  func.func @transform_6(%arg0: i32) -> (i32, i32) {
    %c0_i32 = arith.constant 0 : i32
    %c0_i32_0 = arith.constant 0 : i32
    %c0_i32_1 = arith.constant 0 : i32
    return %c0_i32, %c0_i32_0 : i32, i32
  }
  func.func @transform_7(%arg0: i32) -> (i32, i32, i32) {
    %c0_i32 = arith.constant 0 : i32
    %c0_i32_0 = arith.constant 0 : i32
    %c0_i32_1 = arith.constant 0 : i32
    %c0_i32_2 = arith.constant 0 : i32
    return %c0_i32, %c0_i32_0, %c0_i32_1 : i32, i32, i32
  }
  func.func @transform_8(%arg0: i32) -> (i32, i32) {
    %c0_i32 = arith.constant 0 : i32
    %c0_i32_0 = arith.constant 0 : i32
    %c0_i32_1 = arith.constant 0 : i32
    return %c0_i32, %c0_i32_0 : i32, i32
  }
  func.func @transform_9(%arg0: i32) -> (i32, i32, i32) {
    %c0_i32 = arith.constant 0 : i32
    %c0_i32_0 = arith.constant 0 : i32
    %c0_i32_1 = arith.constant 0 : i32
    return %arg0, %c0_i32, %c0_i32_0 : i32, i32, i32
  }
}

</mosaic_0001>

<llo_original>
// kernel: tpu_custom_call.1
$region0: #{tpu_custom_call.1}
  #allocation0 [shape = 'u32[]', space=smem, size = 0x4, offset = 0x4, fixed_abs, tag = 'smem constant byte address 0x4 - core index']
  #allocation1 [shape = 'u32[144,128]{1,0:T(1,128)}', space=vmem, size = 0x12000, scoped, tag = 'internal scratch']
  #allocation2 [shape = 'bf16[144,16]{1,0:T(16,128)(2,1)}', space=vmem, size = 0x9000, scoped, tag = 'scratch operand']
  #allocation3 [shape = 'bf16[144,32]{1,0:T(16,128)(2,1)}', space=vmem, size = 0x9000, scoped, tag = 'scratch operand']
  #allocation4 [shape = 'bf16[144,32]{1,0:T(16,128)(2,1)}', space=vmem, size = 0x9000, scoped, tag = 'scratch operand']
  %s0 = inlined_call_operand.vmem [shape: bf16[2,64,16], index: 0, kind: input, shape index: {}]
  %s1 = inlined_call_operand.vmem [shape: bf16[4,16,32], index: 1, kind: input, shape index: {}]
  %s2 = inlined_call_operand.vmem [shape: f32[1,32], index: 2, kind: input, shape index: {}]
  %s3 = inlined_call_operand.hbm [shape: bf16[9,32,32], index: 3, kind: input, shape index: {}]
  %s4 = inlined_call_operand.vmem [shape: f32[1,32], index: 4, kind: input, shape index: {}]
  %s5 = inlined_call_operand.hbm [shape: bf16[9,32,32], index: 5, kind: input, shape index: {}]
  %s6 = inlined_call_operand.vmem [shape: f32[1,32], index: 6, kind: input, shape index: {}]
  %s7 = inlined_call_operand.hbm [shape: bf16[9,32,32], index: 7, kind: input, shape index: {}]
  %s8 = inlined_call_operand.vmem [shape: f32[1,32], index: 8, kind: input, shape index: {}]
  %s9 = inlined_call_operand.hbm [shape: f32[2,8,32], index: 9, kind: output, shape index: {}]
  %s10 = sld [smem:[#allocation0]]
  $region58: #{tpu_custom_call.1} parent=0
    _
  %s12 = ssub.s32 1, %s10
  %s13 = scalar_select 0, %s12, %s10
  $region1: #{tpu_custom_call.1} parent=0
    #allocation5 [shape = 'u8[73728]{0}', space=vmem, size = 0x12000, scoped, tag = 'input window, operand 3, single buffered']
    #allocation6 [shape = 's32[1]{0}', space=sflag, size = 0x4, scoped, tag = 'scoped memory for tpu_custom_call.1']
    #allocation7 [shape = 's32[1]{0}', space=sflag, size = 0x4, scoped, tag = 'scoped memory for tpu_custom_call.1']
    #allocation8 [shape = 'u8[73728]{0}', space=vmem, size = 0x12000, scoped, tag = 'input window, operand 5, single buffered']
    #allocation9 [shape = 's32[1]{0}', space=sflag, size = 0x4, scoped, tag = 'scoped memory for tpu_custom_call.1']
    #allocation10 [shape = 'u8[73728]{0}', space=vmem, size = 0x12000, scoped, tag = 'input window, operand 7, single buffered']
    #allocation11 [shape = 'u8[8192]{0}', space=vmem, size = 0x2000, scoped, tag = 'output window, operand 0, single buffered']
    %14 = vsyncpa [#allocation6], 0
    %15 = vsyncpa [#allocation9], 0
    %16 = vsyncpa [#allocation7], 0
    // Predicated region
    $region2: #{tpu_custom_call.1} parent=1 // pred_check
      _
    $region3: #{tpu_custom_call.1} parent=1 // pred_check_branch
      %18 = sbr.rel (0) target = $region5
    $region4: #{tpu_custom_call.1} parent=1 // pred_region
      _
    $region5: #{tpu_custom_call.1} parent=1 // pred_fallthru
      _
    // Predicated region
    $region6: #{tpu_custom_call.1} parent=1 // pred_check
      _
    $region7: #{tpu_custom_call.1} parent=1 // pred_check_branch
      %20 = sbr.rel (0) target = $region9
    $region8: #{tpu_custom_call.1} parent=1 // pred_region
      _
    $region9: #{tpu_custom_call.1} parent=1 // pred_fallthru
      _
    // Predicated region
    $region10: #{tpu_custom_call.1} parent=1 // pred_check
      _
    $region11: #{tpu_custom_call.1} parent=1 // pred_check_branch
      %22 = sbr.rel (0) target = $region13
    $region12: #{tpu_custom_call.1} parent=1 // pred_region
      _
    $region13: #{tpu_custom_call.1} parent=1 // pred_fallthru
      _
    // Predicated region
    $region14: #{tpu_custom_call.1} parent=1 // pred_check
      _
    $region15: #{tpu_custom_call.1} parent=1 // pred_check_branch
      %24 = sbr.rel (0) target = $region17
    $region16: #{tpu_custom_call.1} parent=1 // pred_region
      %s26 = ssub.s32 2304, 2304
      %27 = vsyncadd [#allocation6], %s26
      %s28 = sshll.u32 [#allocation5], 4
      %s29 = int_to_ptr.vmem [resolvable:$true] %s28
      %34 = dma.hbm_to_vmem [thread:$0]  %s3, 2304, %s29, [#allocation6], 64, 64, 4
    $region17: #{tpu_custom_call.1} parent=1 // pred_fallthru
      _
    // Predicated region
    $region18: #{tpu_custom_call.1} parent=1 // pred_check
      _
    $region19: #{tpu_custom_call.1} parent=1 // pred_check_branch
      %36 = sbr.rel (0) target = $region21
    $region20: #{tpu_custom_call.1} parent=1 // pred_region
      _
    $region21: #{tpu_custom_call.1} parent=1 // pred_fallthru
      _
    // Predicated region
    $region22: #{tpu_custom_call.1} parent=1 // pred_check
      _
    $region23: #{tpu_custom_call.1} parent=1 // pred_check_branch
      %38 = sbr.rel (0) target = $region25
    $region24: #{tpu_custom_call.1} parent=1 // pred_region
      %s40 = ssub.s32 2304, 2304
      %41 = vsyncadd [#allocation9], %s40
      %s42 = sshll.u32 [#allocation8], 4
      %s43 = int_to_ptr.vmem [resolvable:$true] %s42
      %48 = dma.hbm_to_vmem [thread:$0]  %s5, 2304, %s43, [#allocation9], 64, 64, 4
    $region25: #{tpu_custom_call.1} parent=1 // pred_fallthru
      _
    // Predicated region
    $region26: #{tpu_custom_call.1} parent=1 // pred_check
      _
    $region27: #{tpu_custom_call.1} parent=1 // pred_check_branch
      %50 = sbr.rel (0) target = $region29
    $region28: #{tpu_custom_call.1} parent=1 // pred_region
      _
    $region29: #{tpu_custom_call.1} parent=1 // pred_fallthru
      _
    // Predicated region
    $region30: #{tpu_custom_call.1} parent=1 // pred_check
      _
    $region31: #{tpu_custom_call.1} parent=1 // pred_check_branch
      %52 = sbr.rel (0) target = $region33
    $region32: #{tpu_custom_call.1} parent=1 // pred_region
      %s54 = ssub.s32 2304, 2304
      %55 = vsyncadd [#allocation9], %s54
      %s56 = sshll.u32 [#allocation10], 4
      %s57 = int_to_ptr.vmem [resolvable:$true] %s56
      %62 = dma.hbm_to_vmem [thread:$0]  %s7, 2304, %s57, [#allocation9], 64, 64, 4
    $region33: #{tpu_custom_call.1} parent=1 // pred_fallthru
      _
    // Predicated region
    $region34: #{tpu_custom_call.1} parent=1 // pred_check
      _
    $region35: #{tpu_custom_call.1} parent=1 // pred_check_branch
      %64 = sbr.rel (0) target = $region37
    $region36: #{tpu_custom_call.1} parent=1 // pred_region
      _
    $region37: #{tpu_custom_call.1} parent=1 // pred_fallthru
      _
    // Predicated region
    $region38: #{tpu_custom_call.1} parent=1 // pred_check
      _
    $region39: #{tpu_custom_call.1} parent=1 // pred_check_branch
      %66 = sbr.rel (0) target = $region41
    $region40: #{tpu_custom_call.1} parent=1 // pred_region
      %67 = dma.done [#allocation6], 2304
    $region41: #{tpu_custom_call.1} parent=1 // pred_fallthru
      _
    // Predicated region
    $region42: #{tpu_custom_call.1} parent=1 // pred_check
      _
    $region43: #{tpu_custom_call.1} parent=1 // pred_check_branch
      %69 = sbr.rel (0) target = $region45
    $region44: #{tpu_custom_call.1} parent=1 // pred_region
      %70 = dma.done [#allocation9], 2304
    $region45: #{tpu_custom_call.1} parent=1 // pred_fallthru
      _
    // Predicated region
    $region46: #{tpu_custom_call.1} parent=1 // pred_check
      _
    $region47: #{tpu_custom_call.1} parent=1 // pred_check_branch
      %72 = sbr.rel (0) target = $region49
    $region48: #{tpu_custom_call.1} parent=1 // pred_region
      %73 = dma.done [#allocation9], 2304
    $region49: #{tpu_custom_call.1} parent=1 // pred_fallthru
      _
    %vm75 = vcmask 130048
    %76 = vst.msk [vmem:[#allocation2] sm:$0xff] %vm75, 0
    %77 = vst.msk [vmem:[#allocation2 + $0x8] sm:$0xff] %vm75, 0
    %78 = vst.msk [vmem:[#allocation2 + $0x10] sm:$0xff] %vm75, 0
    %79 = vst.msk [vmem:[#allocation2 + $0x18] sm:$0xff] %vm75, 0
    %80 = vst.msk [vmem:[#allocation2 + $0x20] sm:$0xff] %vm75, 0
    %81 = vst.msk [vmem:[#allocation2 + $0x28] sm:$0xff] %vm75, 0
    %82 = vst.msk [vmem:[#allocation2 + $0x30] sm:$0xff] %vm75, 0
    %83 = vst.msk [vmem:[#allocation2 + $0x38] sm:$0xff] %vm75, 0
    %84 = vst.msk [vmem:[#allocation2 + $0x40] sm:$0xff] %vm75, 0
    %vm85 = vcmask 261120
    %86 = vst.msk [vmem:[#allocation3] sm:$0xff] %vm85, 0
    %87 = vst.msk [vmem:[#allocation3 + $0x8] sm:$0xff] %vm85, 0
    %88 = vst.msk [vmem:[#allocation3 + $0x10] sm:$0xff] %vm85, 0
    %89 = vst.msk [vmem:[#allocation3 + $0x18] sm:$0xff] %vm85, 0
    %90 = vst.msk [vmem:[#allocation3 + $0x20] sm:$0xff] %vm85, 0
    %91 = vst.msk [vmem:[#allocation3 + $0x28] sm:$0xff] %vm85, 0
    %92 = vst.msk [vmem:[#allocation3 + $0x30] sm:$0xff] %vm85, 0
    %93 = vst.msk [vmem:[#allocation3 + $0x38] sm:$0xff] %vm85, 0
    %94 = vst.msk [vmem:[#allocation3 + $0x40] sm:$0xff] %vm85, 0
    %95 = vst.msk [vmem:[#allocation4] sm:$0xff] %vm85, 0
    %96 = vst.msk [vmem:[#allocation4 + $0x8] sm:$0xff] %vm85, 0
    %97 = vst.msk [vmem:[#allocation4 + $0x10] sm:$0xff] %vm85, 0
    %98 = vst.msk [vmem:[#allocation4 + $0x18] sm:$0xff] %vm85, 0
    %99 = vst.msk [vmem:[#allocation4 + $0x20] sm:$0xff] %vm85, 0
    %100 = vst.msk [vmem:[#allocation4 + $0x28] sm:$0xff] %vm85, 0
    %101 = vst.msk [vmem:[#allocation4 + $0x30] sm:$0xff] %vm85, 0
    %102 = vst.msk [vmem:[#allocation4 + $0x38] sm:$0xff] %vm85, 0
    %103 = vst.msk [vmem:[#allocation4 + $0x40] sm:$0xff] %vm85, 0
    %v104 = vld [vmem:[%s0] sm:$0xf]
    %v105 = vld [vmem:[%s0 + $0x4] sm:$0xf]
    %v106 = vld [vmem:[%s0 + $0x8] sm:$0xf]
    %v107 = vld [vmem:[%s0 + $0xc] sm:$0xf]
    %v108 = vld [vmem:[%s0 + $0x10] sm:$0xf]
    %v109 = vld [vmem:[%s0 + $0x14] sm:$0xf]
    %v110 = vld [vmem:[%s0 + $0x18] sm:$0xf]
    %v111 = vld [vmem:[%s0 + $0x1c] sm:$0xf]
    %v120 = vunpack.c.l.b16 %v104
    %v121 = vunpack.c.l.b16 %v105
    %v122 = vunpack.c.l.b16 %v106
    %v123 = vunpack.c.l.b16 %v107
    %v124 = vunpack.c.l.b16 %v108
    %v125 = vunpack.c.l.b16 %v109
    %v126 = vunpack.c.l.b16 %v110
    %v127 = vunpack.c.l.b16 %v111
    %v128 = vpack.c.b16 %v121, %v120
    %v129 = vpack.c.b16 %v123, %v122
    %v130 = vpack.c.b16 %v125, %v124
    %v131 = vpack.c.b16 %v127, %v126
    %136 = vst.msk [vmem:[#allocation2] sm:$0xff] %vm75, %v128
    %137 = vst.msk [vmem:[#allocation2 + $0x8] sm:$0xff] %vm75, %v129
    %138 = vst.msk [vmem:[#allocation2 + $0x10] sm:$0xff] %vm75, %v130
    %139 = vst.msk [vmem:[#allocation2 + $0x18] sm:$0xff] %vm75, %v131
    %s140 = scalar_lea.vmem %s0, 32
    %v141 = vld [vmem:[%s140] sm:$0xf]
    %v142 = vld [vmem:[%s140 + $0x4] sm:$0xf]
    %v143 = vld [vmem:[%s140 + $0x8] sm:$0xf]
    %v144 = vld [vmem:[%s140 + $0xc] sm:$0xf]
    %v145 = vld [vmem:[%s140 + $0x10] sm:$0xf]
    %v146 = vld [vmem:[%s140 + $0x14] sm:$0xf]
    %v147 = vld [vmem:[%s140 + $0x18] sm:$0xf]
    %v148 = vld [vmem:[%s140 + $0x1c] sm:$0xf]
    %v157 = vunpack.c.l.b16 %v141
    %v158 = vunpack.c.l.b16 %v142
    %v159 = vunpack.c.l.b16 %v143
    %v160 = vunpack.c.l.b16 %v144
    %v161 = vunpack.c.l.b16 %v145
    %v162 = vunpack.c.l.b16 %v146
    %v163 = vunpack.c.l.b16 %v147
    %v164 = vunpack.c.l.b16 %v148
    %v165 = vpack.c.b16 %v157, %v157
    %v166 = vpack.c.b16 %v159, %v158
    %v167 = vpack.c.b16 %v161, %v160
    %v168 = vpack.c.b16 %v163, %v162
    %v169 = vpack.c.b16 %v164, %v164
    %vm175 = vcmask 130052
    %176 = vst.msk [vmem:[#allocation2 + $0x20] sm:$0xf0] %vm175, %v165
    %177 = vst.msk [vmem:[#allocation2 + $0x28] sm:$0xff] %vm75, %v166
    %178 = vst.msk [vmem:[#allocation2 + $0x30] sm:$0xff] %vm75, %v167
    %179 = vst.msk [vmem:[#allocation2 + $0x38] sm:$0xff] %vm75, %v168
    %vm180 = vcmask 125952
    %181 = vst.msk [vmem:[#allocation2 + $0x40] sm:$0xf] %vm180, %v169
    %v182 = vld [vmem:[#allocation2] sm:$0xff]
    %v183 = vld [vmem:[#allocation2 + $0x8] sm:$0xff]
    %v184 = vld [vmem:[#allocation2 + $0x10] sm:$0xff]
    %v185 = vld [vmem:[#allocation2 + $0x18] sm:$0xff]
    %v186 = vld [vmem:[#allocation2 + $0x20] sm:$0xff]
    %v187 = vld [vmem:[#allocation2 + $0x28] sm:$0xff]
    %v188 = vld [vmem:[#allocation2 + $0x30] sm:$0xff]
    %v189 = vld [vmem:[#allocation2 + $0x38] sm:$0xff]
    %v190 = vld [vmem:[%s1] sm:$0xf]
    %v191 = vld [vmem:[%s1 + $0x4] sm:$0xf]
    %v192 = vld [vmem:[#allocation2 + $0x40] sm:$0x1]
    %s193 = scalar_lea.vmem %s1, 8
    %v194 = vld [vmem:[%s193] sm:$0xf]
    %v195 = vld [vmem:[%s193 + $0x4] sm:$0xf]
    %vm196 = vsmask.f32 7424
    %v198 = vshrl.u32 %v182, 16
    %v200 = vshll.u32 %v182, 16
    %v202 = vrot.slane %v200, 1
    %v203 = vor.u32 %v198, %v202
    %v205 = vshll.u32 %v183, 16
    %v207 = vrot.slane %v205, 1
    %v208 = vsel %vm196, %v203, %v207
    %v209 = vshrl.u32 %v183, 16
    %v211 = vor.u32 %v209, %v207
    %v213 = vshll.u32 %v184, 16
    %v215 = vrot.slane %v213, 1
    %v216 = vsel %vm196, %v211, %v215
    %v217 = vshrl.u32 %v184, 16
    %v219 = vor.u32 %v217, %v215
    %v221 = vshll.u32 %v185, 16
    %v223 = vrot.slane %v221, 1
    %v224 = vsel %vm196, %v219, %v223
    %v225 = vshrl.u32 %v185, 16
    %v227 = vor.u32 %v225, %v223
    %v229 = vshll.u32 %v186, 16
    %v231 = vrot.slane %v229, 1
    %v232 = vsel %vm196, %v227, %v231
    %v233 = vshrl.u32 %v186, 16
    %v235 = vor.u32 %v233, %v231
    %v237 = vshll.u32 %v187, 16
    %v239 = vrot.slane %v237, 1
    %v240 = vsel %vm196, %v235, %v239
    %v241 = vshrl.u32 %v187, 16
    %v243 = vor.u32 %v241, %v239
    %v245 = vshll.u32 %v188, 16
    %v247 = vrot.slane %v245, 1
    %v248 = vsel %vm196, %v243, %v247
    %v249 = vshrl.u32 %v188, 16
    %v251 = vor.u32 %v249, %v247
    %v253 = vshll.u32 %v189, 16
    %v255 = vrot.slane %v253, 1
    %v256 = vsel %vm196, %v251, %v255
    %v257 = vshrl.u32 %v189, 16
    %v259 = vor.u32 %v257, %v255
    %v261 = vshll.u32 %v192, 16
    %v263 = vrot.slane %v261, 1
    %v264 = vsel %vm196, %v259, %v263
    %v267 = vunpack.c.l.b16 %v194
    %v268 = vunpack.c.l.b16 %v195
    %v269 = vpack.c.b16 %v268, %v267
    %v272 = vsel %vm75, %v208, 0
    %v275 = vsel %vm75, %v216, 0
    %v278 = vsel %vm75, %v224, 0
    %v281 = vsel %vm75, %v232, 0
    %v284 = vsel %vm75, %v240, 0
    %v287 = vsel %vm75, %v248, 0
    %v290 = vsel %vm75, %v256, 0
    %v293 = vsel %vm75, %v264, 0
    %295 = vmatprep.subr.bf16.mxu0 0
    %296 = vmatpush1.bf16.msra.mxu0 %v269
    %297 = vmatprep.subr.bf16.mxu0 0
    %298 = vmatpush1.bf16.msra.mxu0 0
    %299 = vmatprep.subr.bf16.mxu0 0
    %300 = vmatpush1.bf16.msra.mxu0 0
    %301 = vmatprep.subr.bf16.mxu0 0
    %302 = vmatpush1.bf16.msra.mxu0 0
    %303 = vmatprep.subr.bf16.mxu0 0
    %304 = vmatpush1.bf16.msra.mxu0 0
    %305 = vmatprep.subr.bf16.mxu0 0
    %306 = vmatpush1.bf16.msra.mxu0 0
    %307 = vmatprep.subr.bf16.mxu0 0
    %308 = vmatpush1.bf16.msra.mxu0 0
    %309 = vmatprep.subr.bf16.mxu0 0
    %310 = vmatpush1.bf16.msra.mxu0 0
    %311 = vmatprep.subr.bf16.mxu0 0
    %312 = vmatpush1.bf16.msra.mxu0 0
    %313 = vmatprep.subr.bf16.mxu0 0
    %314 = vmatpush1.bf16.msra.mxu0 0
    %315 = vmatprep.subr.bf16.mxu0 0
    %316 = vmatpush1.bf16.msra.mxu0 0
    %317 = vmatprep.subr.bf16.mxu0 0
    %318 = vmatpush1.bf16.msra.mxu0 0
    %319 = vmatprep.subr.bf16.mxu0 0
    %320 = vmatpush1.bf16.msra.mxu0 0
    %321 = vmatprep.subr.bf16.mxu0 0
    %322 = vmatpush1.bf16.msra.mxu0 0
    %323 = vmatprep.subr.bf16.mxu0 0
    %324 = vmatpush1.bf16.msra.mxu0 0
    %325 = vmatprep.subr.bf16.mxu0 0
    %326 = vmatpush1.bf16.msra.mxu0 0
    %327 = vmatprep.mubr.bf16.mxu0 0
    %328 = vmatmul.mubr.bf16.gmra.mrb[0].mxu0 %v272
    %v329 = vpop.f32.mrb[0].mxu0
    %v330 = vadd.f32 0.0, %v329
    %v331 = vpop.f32.mrb[0].mxu0
    %v332 = vpop.f32.mrb[0].mxu0
    %v333 = vadd.f32 0.0, %v332
    %v334 = vpop.f32.mrb[0].mxu0
    %335 = vmatprep.mubr.bf16.mxu0 0
    %336 = vmatmul.mubr.bf16.gmra.mrb[0].mxu0 %v275
    %v337 = vpop.f32.mrb[0].mxu0
    %v338 = vadd.f32 0.0, %v337
    %v339 = vpop.f32.mrb[0].mxu0
    %v340 = vpop.f32.mrb[0].mxu0
    %v341 = vadd.f32 0.0, %v340
    %v342 = vpop.f32.mrb[0].mxu0
    %343 = vmatprep.mubr.bf16.mxu0 0
    %344 = vmatmul.mubr.bf16.gmra.mrb[0].mxu0 %v278
    %v345 = vpop.f32.mrb[0].mxu0
    %v346 = vadd.f32 0.0, %v345
    %v347 = vpop.f32.mrb[0].mxu0
    %v348 = vpop.f32.mrb[0].mxu0
    %v349 = vadd.f32 0.0, %v348
    %v350 = vpop.f32.mrb[0].mxu0
    %351 = vmatprep.mubr.bf16.mxu0 0
    %352 = vmatmul.mubr.bf16.gmra.mrb[0].mxu0 %v281
    %v353 = vpop.f32.mrb[0].mxu0
    %v354 = vadd.f32 0.0, %v353
    %v355 = vpop.f32.mrb[0].mxu0
    %v356 = vpop.f32.mrb[0].mxu0
    %v357 = vadd.f32 0.0, %v356
    %v358 = vpop.f32.mrb[0].mxu0
    %359 = vmatprep.mubr.bf16.mxu0 0
    %360 = vmatmul.mubr.bf16.gmra.mrb[0].mxu0 %v284
    %v361 = vpop.f32.mrb[0].mxu0
    %v362 = vadd.f32 0.0, %v361
    %v363 = vpop.f32.mrb[0].mxu0
    %v364 = vpop.f32.mrb[0].mxu0
    %v365 = vadd.f32 0.0, %v364
    %v366 = vpop.f32.mrb[0].mxu0
    %367 = vmatprep.mubr.bf16.mxu0 0
    %368 = vmatmul.mubr.bf16.gmra.mrb[0].mxu0 %v287
    %v369 = vpop.f32.mrb[0].mxu0
    %v370 = vadd.f32 0.0, %v369
    %v371 = vpop.f32.mrb[0].mxu0
    %v372 = vpop.f32.mrb[0].mxu0
    %v373 = vadd.f32 0.0, %v372
    %v374 = vpop.f32.mrb[0].mxu0
    %375 = vmatprep.mubr.bf16.mxu0 0
    %376 = vmatmul.mubr.bf16.gmra.mrb[0].mxu0 %v290
    %v377 = vpop.f32.mrb[0].mxu0
    %v378 = vadd.f32 0.0, %v377
    %v379 = vpop.f32.mrb[0].mxu0
    %v380 = vpop.f32.mrb[0].mxu0
    %v381 = vadd.f32 0.0, %v380
    %v382 = vpop.f32.mrb[0].mxu0
    %383 = vmatprep.mubr.bf16.mxu0 0
    %384 = vmatmul.mubr.bf16.gmra.mrb[0].mxu0 %v293
    %v385 = vpop.f32.mrb[0].mxu0
    %v386 = vadd.f32 0.0, %v385
    %v387 = vpop.f32.mrb[0].mxu0
    %v388 = vpop.f32.mrb[0].mxu0
    %v389 = vadd.f32 0.0, %v388
    %v390 = vpop.f32.mrb[0].mxu0
    %391 = vdwg.mxu0
    %v394 = vunpack.c.l.b16 %v190
    %v395 = vunpack.c.l.b16 %v191
    %v396 = vpack.c.b16 %v395, %v394
    %v398 = vsel %vm75, %v182, 0
    %v400 = vsel %vm75, %v183, 0
    %v402 = vsel %vm75, %v184, 0
    %v404 = vsel %vm75, %v185, 0
    %v406 = vsel %vm75, %v186, 0
    %v408 = vsel %vm75, %v187, 0
    %v410 = vsel %vm75, %v188, 0
    %v412 = vsel %vm75, %v189, 0
    %414 = vmatprep.subr.bf16.mxu0 0
    %415 = vmatpush1.bf16.msra.mxu0 %v396
    %416 = vmatprep.subr.bf16.mxu0 0
    %417 = vmatpush1.bf16.msra.mxu0 0
    %418 = vmatprep.subr.bf16.mxu0 0
    %419 = vmatpush1.bf16.msra.mxu0 0
    %420 = vmatprep.subr.bf16.mxu0 0
    %421 = vmatpush1.bf16.msra.mxu0 0
    %422 = vmatprep.subr.bf16.mxu0 0
    %423 = vmatpush1.bf16.msra.mxu0 0
    %424 = vmatprep.subr.bf16.mxu0 0
    %425 = vmatpush1.bf16.msra.mxu0 0
    %426 = vmatprep.subr.bf16.mxu0 0
    %427 = vmatpush1.bf16.msra.mxu0 0
    %428 = vmatprep.subr.bf16.mxu0 0
    %429 = vmatpush1.bf16.msra.mxu0 0
    %430 = vmatprep.subr.bf16.mxu0 0
    %431 = vmatpush1.bf16.msra.mxu0 0
    %432 = vmatprep.subr.bf16.mxu0 0
    %433 = vmatpush1.bf16.msra.mxu0 0
    %434 = vmatprep.subr.bf16.mxu0 0
    %435 = vmatpush1.bf16.msra.mxu0 0
    %436 = vmatprep.subr.bf16.mxu0 0
    %437 = vmatpush1.bf16.msra.mxu0 0
    %438 = vmatprep.subr.bf16.mxu0 0
    %439 = vmatpush1.bf16.msra.mxu0 0
    %440 = vmatprep.subr.bf16.mxu0 0
    %441 = vmatpush1.bf16.msra.mxu0 0
    %442 = vmatprep.subr.bf16.mxu0 0
    %443 = vmatpush1.bf16.msra.mxu0 0
    %444 = vmatprep.subr.bf16.mxu0 0
    %445 = vmatpush1.bf16.msra.mxu0 0
    %446 = vmatprep.mubr.bf16.mxu0 0
    %447 = vmatmul.mubr.bf16.gmra.mrb[0].mxu0 %v398
    %v448 = vpop.f32.mrb[0].mxu0
    %v449 = vadd.f32 %v330, %v448
    %v450 = vpop.f32.mrb[0].mxu0
    %v451 = vpop.f32.mrb[0].mxu0
    %v452 = vadd.f32 %v333, %v451
    %v453 = vpop.f32.mrb[0].mxu0
    %454 = vmatprep.mubr.bf16.mxu0 0
    %455 = vmatmul.mubr.bf16.gmra.mrb[0].mxu0 %v400
    %v456 = vpop.f32.mrb[0].mxu0
    %v457 = vadd.f32 %v338, %v456
    %v458 = vpop.f32.mrb[0].mxu0
    %v459 = vpop.f32.mrb[0].mxu0
    %v460 = vadd.f32 %v341, %v459
    %v461 = vpop.f32.mrb[0].mxu0
    %462 = vmatprep.mubr.bf16.mxu0 0
    %463 = vmatmul.mubr.bf16.gmra.mrb[0].mxu0 %v402
    %v464 = vpop.f32.mrb[0].mxu0
    %v465 = vadd.f32 %v346, %v464
    %v466 = vpop.f32.mrb[0].mxu0
    %v467 = vpop.f32.mrb[0].mxu0
    %v468 = vadd.f32 %v349, %v467
    %v469 = vpop.f32.mrb[0].mxu0
    %470 = vmatprep.mubr.bf16.mxu0 0
    %471 = vmatmul.mubr.bf16.gmra.mrb[0].mxu0 %v404
    %v472 = vpop.f32.mrb[0].mxu0
    %v473 = vadd.f32 %v354, %v472
    %v474 = vpop.f32.mrb[0].mxu0
    %v475 = vpop.f32.mrb[0].mxu0
    %v476 = vadd.f32 %v357, %v475
    %v477 = vpop.f32.mrb[0].mxu0
    %478 = vmatprep.mubr.bf16.mxu0 0
    %479 = vmatmul.mubr.bf16.gmra.mrb[0].mxu0 %v406
    %v480 = vpop.f32.mrb[0].mxu0
    %v481 = vadd.f32 %v362, %v480
    %v482 = vpop.f32.mrb[0].mxu0
    %v483 = vpop.f32.mrb[0].mxu0
    %v484 = vadd.f32 %v365, %v483
    %v485 = vpop.f32.mrb[0].mxu0
    %486 = vmatprep.mubr.bf16.mxu0 0
    %487 = vmatmul.mubr.bf16.gmra.mrb[0].mxu0 %v408
    %v488 = vpop.f32.mrb[0].mxu0
    %v489 = vadd.f32 %v370, %v488
    %v490 = vpop.f32.mrb[0].mxu0
    %v491 = vpop.f32.mrb[0].mxu0
    %v492 = vadd.f32 %v373, %v491
    %v493 = vpop.f32.mrb[0].mxu0
    %494 = vmatprep.mubr.bf16.mxu0 0
    %495 = vmatmul.mubr.bf16.gmra.mrb[0].mxu0 %v410
    %v496 = vpop.f32.mrb[0].mxu0
    %v497 = vadd.f32 %v378, %v496
    %v498 = vpop.f32.mrb[0].mxu0
    %v499 = vpop.f32.mrb[0].mxu0
    %v500 = vadd.f32 %v381, %v499
    %v501 = vpop.f32.mrb[0].mxu0
    %502 = vmatprep.mubr.bf16.mxu0 0
    %503 = vmatmul.mubr.bf16.gmra.mrb[0].mxu0 %v412
    %v504 = vpop.f32.mrb[0].mxu0
    %v505 = vadd.f32 %v386, %v504
    %v506 = vpop.f32.mrb[0].mxu0
    %v507 = vpop.f32.mrb[0].mxu0
    %v508 = vadd.f32 %v389, %v507
    %v509 = vpop.f32.mrb[0].mxu0
    %510 = vdwg.mxu0
    %v511 = vld [vmem:[#allocation2] sm:$0xf0]
    %v512 = vld [vmem:[#allocation2 + $0x40] sm:$0xf]
    %s513 = scalar_lea.vmem %s1, 16
    %v514 = vld [vmem:[%s513] sm:$0xf]
    %v515 = vld [vmem:[%s513 + $0x4] sm:$0xf]
    %vm525 = vcmask 1043456
    %v526 = vrot.slane %v511, 4
    %v527 = vrot.slane %v183, 4
    %v528 = vsel %vm525, %v526, %v527
    %v529 = vrot.slane %v184, 4
    %v530 = vsel %vm525, %v527, %v529
    %v531 = vrot.slane %v185, 4
    %v532 = vsel %vm525, %v529, %v531
    %v533 = vrot.slane %v186, 4
    %v534 = vsel %vm525, %v531, %v533
    %v535 = vrot.slane %v187, 4
    %v536 = vsel %vm525, %v533, %v535
    %v537 = vrot.slane %v188, 4
    %v538 = vsel %vm525, %v535, %v537
    %v539 = vrot.slane %v189, 4
    %v540 = vsel %vm525, %v537, %v539
    %v541 = vrot.slane %v512, 4
    %v542 = vsel %vm525, %v539, %v541
    %v545 = vunpack.c.l.b16 %v514
    %v546 = vunpack.c.l.b16 %v515
    %v547 = vpack.c.b16 %v546, %v545
    %v550 = vsel %vm75, %v528, 0
    %v553 = vsel %vm75, %v530, 0
    %v556 = vsel %vm75, %v532, 0
    %v559 = vsel %vm75, %v534, 0
    %v562 = vsel %vm75, %v536, 0
    %v565 = vsel %vm75, %v538, 0
    %v568 = vsel %vm75, %v540, 0
    %v571 = vsel %vm75, %v542, 0
    %573 = vmatprep.subr.bf16.mxu0 0
    %574 = vmatpush1.bf16.msra.mxu0 %v547
    %575 = vmatprep.subr.bf16.mxu0 0
    %576 = vmatpush1.bf16.msra.mxu0 0
    %577 = vmatprep.subr.bf16.mxu0 0
    %578 = vmatpush1.bf16.msra.mxu0 0
    %579 = vmatprep.subr.bf16.mxu0 0
    %580 = vmatpush1.bf16.msra.mxu0 0
    %581 = vmatprep.subr.bf16.mxu0 0
    %582 = vmatpush1.bf16.msra.mxu0 0
    %583 = vmatprep.subr.bf16.mxu0 0
    %584 = vmatpush1.bf16.msra.mxu0 0
    %585 = vmatprep.subr.bf16.mxu0 0
    %586 = vmatpush1.bf16.msra.mxu0 0
    %587 = vmatprep.subr.bf16.mxu0 0
    %588 = vmatpush1.bf16.msra.mxu0 0
    %589 = vmatprep.subr.bf16.mxu0 0
    %590 = vmatpush1.bf16.msra.mxu0 0
    %591 = vmatprep.subr.bf16.mxu0 0
    %592 = vmatpush1.bf16.msra.mxu0 0
    %593 = vmatprep.subr.bf16.mxu0 0
    %594 = vmatpush1.bf16.msra.mxu0 0
    %595 = vmatprep.subr.bf16.mxu0 0
    %596 = vmatpush1.bf16.msra.mxu0 0
    %597 = vmatprep.subr.bf16.mxu0 0
    %598 = vmatpush1.bf16.msra.mxu0 0
    %599 = vmatprep.subr.bf16.mxu0 0
    %600 = vmatpush1.bf16.msra.mxu0 0
    %601 = vmatprep.subr.bf16.mxu0 0
    %602 = vmatpush1.bf16.msra.mxu0 0
    %603 = vmatprep.subr.bf16.mxu0 0
    %604 = vmatpush1.bf16.msra.mxu0 0
    %605 = vmatprep.mubr.bf16.mxu0 0
    %606 = vmatmul.mubr.bf16.gmra.mrb[0].mxu0 %v550
    %v607 = vpop.f32.mrb[0].mxu0
    %v608 = vadd.f32 0.0, %v607
    %v609 = vpop.f32.mrb[0].mxu0
    %v610 = vpop.f32.mrb[0].mxu0
    %v611 = vadd.f32 0.0, %v610
    %v612 = vpop.f32.mrb[0].mxu0
    %613 = vmatprep.mubr.bf16.mxu0 0
    %614 = vmatmul.mubr.bf16.gmra.mrb[0].mxu0 %v553
    %v615 = vpop.f32.mrb[0].mxu0
    %v616 = vadd.f32 0.0, %v615
    %v617 = vpop.f32.mrb[0].mxu0
    %v618 = vpop.f32.mrb[0].mxu0
    %v619 = vadd.f32 0.0, %v618
    %v620 = vpop.f32.mrb[0].mxu0
    %621 = vmatprep.mubr.bf16.mxu0 0
    %622 = vmatmul.mubr.bf16.gmra.mrb[0].mxu0 %v556
    %v623 = vpop.f32.mrb[0].mxu0
    %v624 = vadd.f32 0.0, %v623
    %v625 = vpop.f32.mrb[0].mxu0
    %v626 = vpop.f32.mrb[0].mxu0
    %v627 = vadd.f32 0.0, %v626
    %v628 = vpop.f32.mrb[0].mxu0
    %629 = vmatprep.mubr.bf16.mxu0 0
    %630 = vmatmul.mubr.bf16.gmra.mrb[0].mxu0 %v559
    %v631 = vpop.f32.mrb[0].mxu0
    %v632 = vadd.f32 0.0, %v631
    %v633 = vpop.f32.mrb[0].mxu0
    %v634 = vpop.f32.mrb[0].mxu0
    %v635 = vadd.f32 0.0, %v634
    %v636 = vpop.f32.mrb[0].mxu0
    %637 = vmatprep.mubr.bf16.mxu0 0
    %638 = vmatmul.mubr.bf16.gmra.mrb[0].mxu0 %v562
    %v639 = vpop.f32.mrb[0].mxu0
    %v640 = vadd.f32 0.0, %v639
    %v641 = vpop.f32.mrb[0].mxu0
    %v642 = vpop.f32.mrb[0].mxu0
    %v643 = vadd.f32 0.0, %v642
    %v644 = vpop.f32.mrb[0].mxu0
    %645 = vmatprep.mubr.bf16.mxu0 0
    %646 = vmatmul.mubr.bf16.gmra.mrb[0].mxu0 %v565
    %v647 = vpop.f32.mrb[0].mxu0
    %v648 = vadd.f32 0.0, %v647
    %v649 = vpop.f32.mrb[0].mxu0
    %v650 = vpop.f32.mrb[0].mxu0
    %v651 = vadd.f32 0.0, %v650
    %v652 = vpop.f32.mrb[0].mxu0
    %653 = vmatprep.mubr.bf16.mxu0 0
    %654 = vmatmul.mubr.bf16.gmra.mrb[0].mxu0 %v568
    %v655 = vpop.f32.mrb[0].mxu0
    %v656 = vadd.f32 0.0, %v655
    %v657 = vpop.f32.mrb[0].mxu0
    %v658 = vpop.f32.mrb[0].mxu0
    %v659 = vadd.f32 0.0, %v658
    %v660 = vpop.f32.mrb[0].mxu0
    %661 = vmatprep.mubr.bf16.mxu0 0
    %662 = vmatmul.mubr.bf16.gmra.mrb[0].mxu0 %v571
    %v663 = vpop.f32.mrb[0].mxu0
    %v664 = vadd.f32 0.0, %v663
    %v665 = vpop.f32.mrb[0].mxu0
    %v666 = vpop.f32.mrb[0].mxu0
    %v667 = vadd.f32 0.0, %v666
    %v668 = vpop.f32.mrb[0].mxu0
    %669 = vdwg.mxu0
    %v670 = vadd.f32 %v449, %v608
    %v671 = vadd.f32 %v452, %v611
    %v672 = vadd.f32 %v457, %v616
    %v673 = vadd.f32 %v460, %v619
    %v674 = vadd.f32 %v465, %v624
    %v675 = vadd.f32 %v468, %v627
    %v676 = vadd.f32 %v473, %v632
    %v677 = vadd.f32 %v476, %v635
    %v678 = vadd.f32 %v481, %v640
    %v679 = vadd.f32 %v484, %v643
    %v680 = vadd.f32 %v489, %v648
    %v681 = vadd.f32 %v492, %v651
    %v682 = vadd.f32 %v497, %v656
    %v683 = vadd.f32 %v500, %v659
    %v684 = vadd.f32 %v505, %v664
    %v685 = vadd.f32 %v508, %v667
    %v686 = vld [vmem:[#allocation2 + $0x40] sm:$0x1f]
    %s687 = scalar_lea.vmem %s1, 24
    %v688 = vld [vmem:[%s687] sm:$0xf]
    %v689 = vld [vmem:[%s687 + $0x4] sm:$0xf]
    %vm690 = vsmask.f32 3328
    %v692 = vshrl.u32 %v511, 16
    %v694 = vrot.slane %v692, 4
    %v695 = vshll.u32 %v511, 16
    %v697 = vrot.slane %v695, 5
    %v698 = vor.u32 %v694, %v697
    %v699 = vrot.slane %v209, 4
    %v700 = vrot.slane %v205, 5
    %v701 = vor.u32 %v699, %v700
    %v702 = vsel %vm690, %v698, %v701
    %v703 = vrot.slane %v217, 4
    %v704 = vrot.slane %v213, 5
    %v705 = vor.u32 %v703, %v704
    %v706 = vsel %vm690, %v701, %v705
    %v707 = vrot.slane %v225, 4
    %v708 = vrot.slane %v221, 5
    %v709 = vor.u32 %v707, %v708
    %v710 = vsel %vm690, %v705, %v709
    %v711 = vrot.slane %v233, 4
    %v712 = vrot.slane %v229, 5
    %v713 = vor.u32 %v711, %v712
    %v714 = vsel %vm690, %v709, %v713
    %v715 = vrot.slane %v241, 4
    %v716 = vrot.slane %v237, 5
    %v717 = vor.u32 %v715, %v716
    %v718 = vsel %vm690, %v713, %v717
    %v719 = vrot.slane %v249, 4
    %v720 = vrot.slane %v245, 5
    %v721 = vor.u32 %v719, %v720
    %v722 = vsel %vm690, %v717, %v721
    %v723 = vrot.slane %v257, 4
    %v724 = vrot.slane %v253, 5
    %v725 = vor.u32 %v723, %v724
    %v726 = vsel %vm690, %v721, %v725
    %v728 = vshrl.u32 %v686, 16
    %v730 = vrot.slane %v728, 4
    %v731 = vshll.u32 %v686, 16
    %v733 = vrot.slane %v731, 5
    %v734 = vor.u32 %v730, %v733
    %v735 = vsel %vm690, %v725, %v734
    %v738 = vunpack.c.l.b16 %v688
    %v739 = vunpack.c.l.b16 %v689
    %v740 = vpack.c.b16 %v739, %v738
    %v743 = vsel %vm75, %v702, 0
    %v746 = vsel %vm75, %v706, 0
    %v749 = vsel %vm75, %v710, 0
    %v752 = vsel %vm75, %v714, 0
    %v755 = vsel %vm75, %v718, 0
    %v758 = vsel %vm75, %v722, 0
    %v761 = vsel %vm75, %v726, 0
    %v764 = vsel %vm75, %v735, 0
    %766 = vmatprep.subr.bf16.mxu0 0
    %767 = vmatpush1.bf16.msra.mxu0 %v740
    %768 = vmatprep.subr.bf16.mxu0 0
    %769 = vmatpush1.bf16.msra.mxu0 0
    %770 = vmatprep.subr.bf16.mxu0 0
    %771 = vmatpush1.bf16.msra.mxu0 0
    %772 = vmatprep.subr.bf16.mxu0 0
    %773 = vmatpush1.bf16.msra.mxu0 0
    %774 = vmatprep.subr.bf16.mxu0 0
    %775 = vmatpush1.bf16.msra.mxu0 0
    %776 = vmatprep.subr.bf16.mxu0 0
    %777 = vmatpush1.bf16.msra.mxu0 0
    %778 = vmatprep.subr.bf16.mxu0 0
    %779 = vmatpush1.bf16.msra.mxu0 0
    %780 = vmatprep.subr.bf16.mxu0 0
    %781 = vmatpush1.bf16.msra.mxu0 0
    %782 = vmatprep.subr.bf16.mxu0 0
    %783 = vmatpush1.bf16.msra.mxu0 0
    %784 = vmatprep.subr.bf16.mxu0 0
    %785 = vmatpush1.bf16.msra.mxu0 0
    %786 = vmatprep.subr.bf16.mxu0 0
    %787 = vmatpush1.bf16.msra.mxu0 0
    %788 = vmatprep.subr.bf16.mxu0 0
    %789 = vmatpush1.bf16.msra.mxu0 0
    %790 = vmatprep.subr.bf16.mxu0 0
    %791 = vmatpush1.bf16.msra.mxu0 0
    %792 = vmatprep.subr.bf16.mxu0 0
    %793 = vmatpush1.bf16.msra.mxu0 0
    %794 = vmatprep.subr.bf16.mxu0 0
    %795 = vmatpush1.bf16.msra.mxu0 0
    %796 = vmatprep.subr.bf16.mxu0 0
    %797 = vmatpush1.bf16.msra.mxu0 0
    %798 = vmatprep.mubr.bf16.mxu0 0
    %799 = vmatmul.mubr.bf16.gmra.mrb[0].mxu0 %v743
    %v800 = vpop.f32.mrb[0].mxu0
    %v801 = vadd.f32 0.0, %v800
    %v802 = vpop.f32.mrb[0].mxu0
    %v803 = vpop.f32.mrb[0].mxu0
    %v804 = vadd.f32 0.0, %v803
    %v805 = vpop.f32.mrb[0].mxu0
    %806 = vmatprep.mubr.bf16.mxu0 0
    %807 = vmatmul.mubr.bf16.gmra.mrb[0].mxu0 %v746
    %v808 = vpop.f32.mrb[0].mxu0
    %v809 = vadd.f32 0.0, %v808
    %v810 = vpop.f32.mrb[0].mxu0
    %v811 = vpop.f32.mrb[0].mxu0
    %v812 = vadd.f32 0.0, %v811
    %v813 = vpop.f32.mrb[0].mxu0
    %814 = vmatprep.mubr.bf16.mxu0 0
    %815 = vmatmul.mubr.bf16.gmra.mrb[0].mxu0 %v749
    %v816 = vpop.f32.mrb[0].mxu0
    %v817 = vadd.f32 0.0, %v816
    %v818 = vpop.f32.mrb[0].mxu0
    %v819 = vpop.f32.mrb[0].mxu0
    %v820 = vadd.f32 0.0, %v819
    %v821 = vpop.f32.mrb[0].mxu0
    %822 = vmatprep.mubr.bf16.mxu0 0
    %823 = vmatmul.mubr.bf16.gmra.mrb[0].mxu0 %v752
    %v824 = vpop.f32.mrb[0].mxu0
    %v825 = vadd.f32 0.0, %v824
    %v826 = vpop.f32.mrb[0].mxu0
    %v827 = vpop.f32.mrb[0].mxu0
    %v828 = vadd.f32 0.0, %v827
    %v829 = vpop.f32.mrb[0].mxu0
    %830 = vmatprep.mubr.bf16.mxu0 0
    %831 = vmatmul.mubr.bf16.gmra.mrb[0].mxu0 %v755
    %v832 = vpop.f32.mrb[0].mxu0
    %v833 = vadd.f32 0.0, %v832
    %v834 = vpop.f32.mrb[0].mxu0
    %v835 = vpop.f32.mrb[0].mxu0
    %v836 = vadd.f32 0.0, %v835
    %v837 = vpop.f32.mrb[0].mxu0
    %838 = vmatprep.mubr.bf16.mxu0 0
    %839 = vmatmul.mubr.bf16.gmra.mrb[0].mxu0 %v758
    %v840 = vpop.f32.mrb[0].mxu0
    %v841 = vadd.f32 0.0, %v840
    %v842 = vpop.f32.mrb[0].mxu0
    %v843 = vpop.f32.mrb[0].mxu0
    %v844 = vadd.f32 0.0, %v843
    %v845 = vpop.f32.mrb[0].mxu0
    %846 = vmatprep.mubr.bf16.mxu0 0
    %847 = vmatmul.mubr.bf16.gmra.mrb[0].mxu0 %v761
    %v848 = vpop.f32.mrb[0].mxu0
    %v849 = vadd.f32 0.0, %v848
    %v850 = vpop.f32.mrb[0].mxu0
    %v851 = vpop.f32.mrb[0].mxu0
    %v852 = vadd.f32 0.0, %v851
    %v853 = vpop.f32.mrb[0].mxu0
    %854 = vmatprep.mubr.bf16.mxu0 0
    %855 = vmatmul.mubr.bf16.gmra.mrb[0].mxu0 %v764
    %v856 = vpop.f32.mrb[0].mxu0
    %v857 = vadd.f32 0.0, %v856
    %v858 = vpop.f32.mrb[0].mxu0
    %v859 = vpop.f32.mrb[0].mxu0
    %v860 = vadd.f32 0.0, %v859
    %v861 = vpop.f32.mrb[0].mxu0
    %862 = vdwg.mxu0
    %v863 = vadd.f32 %v670, %v801
    %v864 = vadd.f32 %v671, %v804
    %v865 = vadd.f32 %v672, %v809
    %v866 = vadd.f32 %v673, %v812
    %v867 = vadd.f32 %v674, %v817
    %v868 = vadd.f32 %v675, %v820
    %v869 = vadd.f32 %v676, %v825
    %v870 = vadd.f32 %v677, %v828
    %v871 = vadd.f32 %v678, %v833
    %v872 = vadd.f32 %v679, %v836
    %v873 = vadd.f32 %v680, %v841
    %v874 = vadd.f32 %v681, %v844
    %v875 = vadd.f32 %v682, %v849
    %v876 = vadd.f32 %v683, %v852
    %v877 = vadd.f32 %v684, %v857
    %v878 = vadd.f32 %v685, %v860
    %v879 = vld [vmem:[%s2] sm:$0x1]
    %v881 = vlaneseq
    %v882 = vshrl.u32 %v881, 7
    %v883 = vsub.s32 0, %v882
    %v884 = vrot.slane %v879, %v883
    %v886 = vadd.f32 %v863, %v884
    %v887 = vadd.f32 %v864, %v884
    %v888 = vadd.f32 %v865, %v884
    %v889 = vadd.f32 %v866, %v884
    %v890 = vadd.f32 %v867, %v884
    %v891 = vadd.f32 %v868, %v884
    %v892 = vadd.f32 %v869, %v884
    %v893 = vadd.f32 %v870, %v884
    %v894 = vadd.f32 %v871, %v884
    %v895 = vadd.f32 %v872, %v884
    %v896 = vadd.f32 %v873, %v884
    %v897 = vadd.f32 %v874, %v884
    %v898 = vadd.f32 %v875, %v884
    %v899 = vadd.f32 %v876, %v884
    %v900 = vadd.f32 %v877, %v884
    %v901 = vadd.f32 %v878, %v884
    %v902 = vmax.f32 %v886, 0.0
    %v903 = vmax.f32 %v887, 0.0
    %v904 = vmax.f32 %v888, 0.0
    %v905 = vmax.f32 %v889, 0.0
    %v906 = vmax.f32 %v890, 0.0
    %v907 = vmax.f32 %v891, 0.0
    %v908 = vmax.f32 %v892, 0.0
    %v909 = vmax.f32 %v893, 0.0
    %v910 = vmax.f32 %v894, 0.0
    %v911 = vmax.f32 %v895, 0.0
    %v912 = vmax.f32 %v896, 0.0
    %v913 = vmax.f32 %v897, 0.0
    %v914 = vmax.f32 %v898, 0.0
    %v915 = vmax.f32 %v899, 0.0
    %v916 = vmax.f32 %v900, 0.0
    %v917 = vmax.f32 %v901, 0.0
    %v918 = vpack.c.bf16 %v903, %v902
    %v919 = vpack.c.bf16 %v905, %v904
    %v920 = vpack.c.bf16 %v907, %v906
    %v921 = vpack.c.bf16 %v909, %v908
    %v922 = vpack.c.bf16 %v911, %v910
    %v923 = vpack.c.bf16 %v913, %v912
    %v924 = vpack.c.bf16 %v915, %v914
    %v925 = vpack.c.bf16 %v917, %v916
    %926 = vst.msk [vmem:[#allocation3] sm:$0xff] %vm85, %v918
    %927 = vst.msk [vmem:[#allocation3 + $0x8] sm:$0xff] %vm85, %v919
    %928 = vst.msk [vmem:[#allocation3 + $0x10] sm:$0xff] %vm85, %v920
    %929 = vst.msk [vmem:[#allocation3 + $0x18] sm:$0xff] %vm85, %v921
    %930 = vst.msk [vmem:[#allocation3 + $0x20] sm:$0xff] %vm85, %v922
    %931 = vst.msk [vmem:[#allocation3 + $0x28] sm:$0xff] %vm85, %v923
    %932 = vst.msk [vmem:[#allocation3 + $0x30] sm:$0xff] %vm85, %v924
    %933 = vst.msk [vmem:[#allocation3 + $0x38] sm:$0xff] %vm85, %v925
    %v934 = vld [vmem:[#allocation3] sm:$0xff]
    %v935 = vld [vmem:[#allocation3 + $0x8] sm:$0xff]
    %v936 = vld [vmem:[#allocation3 + $0x10] sm:$0xff]
    %v937 = vld [vmem:[#allocation3 + $0x18] sm:$0xff]
    %v938 = vld [vmem:[#allocation3 + $0x20] sm:$0xff]
    %v939 = vld [vmem:[#allocation3 + $0x28] sm:$0xff]
    %v940 = vld [vmem:[#allocation3 + $0x30] sm:$0xff]
    %v941 = vld [vmem:[#allocation5] sm:$0xf]
    %v942 = vld [vmem:[#allocation5 + $0x4] sm:$0xf]
    %v943 = vld [vmem:[#allocation5 + $0x8] sm:$0xf]
    %v944 = vld [vmem:[#allocation5 + $0xc] sm:$0xf]
    %v945 = vld [vmem:[#allocation3 + $0x38] sm:$0x1]
    %s946 = scalar_lea.vmem [#allocation5], 16
    %v947 = vld [vmem:[%s946] sm:$0xf]
    %v948 = vld [vmem:[%s946 + $0x4] sm:$0xf]
    %v949 = vld [vmem:[%s946 + $0x8] sm:$0xf]
    %v950 = vld [vmem:[%s946 + $0xc] sm:$0xf]
    %v952 = vshrl.u32 %v934, 16
    %v954 = vshll.u32 %v934, 16
    %v956 = vrot.slane %v954, 1
    %v957 = vor.u32 %v952, %v956
    %v959 = vshll.u32 %v935, 16
    %v961 = vrot.slane %v959, 1
    %v962 = vsel %vm196, %v957, %v961
    %v963 = vshrl.u32 %v935, 16
    %v965 = vor.u32 %v963, %v961
    %v967 = vshll.u32 %v936, 16
    %v969 = vrot.slane %v967, 1
    %v970 = vsel %vm196, %v965, %v969
    %v971 = vshrl.u32 %v936, 16
    %v973 = vor.u32 %v971, %v969
    %v975 = vshll.u32 %v937, 16
    %v977 = vrot.slane %v975, 1
    %v978 = vsel %vm196, %v973, %v977
    %v979 = vshrl.u32 %v937, 16
    %v981 = vor.u32 %v979, %v977
    %v983 = vshll.u32 %v938, 16
    %v985 = vrot.slane %v983, 1
    %v986 = vsel %vm196, %v981, %v985
    %v987 = vshrl.u32 %v938, 16
    %v989 = vor.u32 %v987, %v985
    %v991 = vshll.u32 %v939, 16
    %v993 = vrot.slane %v991, 1
    %v994 = vsel %vm196, %v989, %v993
    %v995 = vshrl.u32 %v939, 16
    %v997 = vor.u32 %v995, %v993
    %v999 = vshll.u32 %v940, 16
    %v1001 = vrot.slane %v999, 1
    %v1002 = vsel %vm196, %v997, %v1001
    %v1003 = vshrl.u32 %v940, 16
    %v1005 = vor.u32 %v1003, %v1001
    %v1007 = vshll.u32 %v945, 16
    %v1009 = vrot.slane %v1007, 1
    %v1010 = vsel %vm196, %v1005, %v1009
    %v1015 = vunpack.c.l.b16 %v947
    %v1016 = vunpack.c.l.b16 %v948
    %v1017 = vunpack.c.l.b16 %v949
    %v1018 = vunpack.c.l.b16 %v950
    %v1019 = vpack.c.b16 %v1016, %v1015
    %v1020 = vpack.c.b16 %v1018, %v1017
    %v1024 = vsel %vm85, %v962, 0
    %v1027 = vsel %vm85, %v970, 0
    %v1030 = vsel %vm85, %v978, 0
    %v1033 = vsel %vm85, %v986, 0
    %v1036 = vsel %vm85, %v994, 0
    %v1039 = vsel %vm85, %v1002, 0
    %v1042 = vsel %vm85, %v1010, 0
    %1044 = vmatprep.subr.bf16.mxu0 0
    %1045 = vmatpush1.bf16.msra.mxu0 %v1019
    %1046 = vmatprep.subr.bf16.mxu0 0
    %1047 = vmatpush1.bf16.msra.mxu0 %v1020
    %1048 = vmatprep.subr.bf16.mxu0 0
    %1049 = vmatpush1.bf16.msra.mxu0 0
    %1050 = vmatprep.subr.bf16.mxu0 0
    %1051 = vmatpush1.bf16.msra.mxu0 0
    %1052 = vmatprep.subr.bf16.mxu0 0
    %1053 = vmatpush1.bf16.msra.mxu0 0
    %1054 = vmatprep.subr.bf16.mxu0 0
    %1055 = vmatpush1.bf16.msra.mxu0 0
    %1056 = vmatprep.subr.bf16.mxu0 0
    %1057 = vmatpush1.bf16.msra.mxu0 0
    %1058 = vmatprep.subr.bf16.mxu0 0
    %1059 = vmatpush1.bf16.msra.mxu0 0
    %1060 = vmatprep.subr.bf16.mxu0 0
    %1061 = vmatpush1.bf16.msra.mxu0 0
    %1062 = vmatprep.subr.bf16.mxu0 0
    %1063 = vmatpush1.bf16.msra.mxu0 0
    %1064 = vmatprep.subr.bf16.mxu0 0
    %1065 = vmatpush1.bf16.msra.mxu0 0
    %1066 = vmatprep.subr.bf16.mxu0 0
    %1067 = vmatpush1.bf16.msra.mxu0 0
    %1068 = vmatprep.subr.bf16.mxu0 0
    %1069 = vmatpush1.bf16.msra.mxu0 0
    %1070 = vmatprep.subr.bf16.mxu0 0
    %1071 = vmatpush1.bf16.msra.mxu0 0
    %1072 = vmatprep.subr.bf16.mxu0 0
    %1073 = vmatpush1.bf16.msra.mxu0 0
    %1074 = vmatprep.subr.bf16.mxu0 0
    %1075 = vmatpush1.bf16.msra.mxu0 0
    %1076 = vmatprep.mubr.bf16.mxu0 0
    %1077 = vmatmul.mubr.bf16.gmra.mrb[0].mxu0 %v1024
    %v1078 = vpop.f32.mrb[0].mxu0
    %v1079 = vadd.f32 0.0, %v1078
    %v1080 = vpop.f32.mrb[0].mxu0
    %v1081 = vpop.f32.mrb[0].mxu0
    %v1082 = vadd.f32 0.0, %v1081
    %v1083 = vpop.f32.mrb[0].mxu0
    %1084 = vmatprep.mubr.bf16.mxu0 0
    %1085 = vmatmul.mubr.bf16.gmra.mrb[0].mxu0 %v1027
    %v1086 = vpop.f32.mrb[0].mxu0
    %v1087 = vadd.f32 0.0, %v1086
    %v1088 = vpop.f32.mrb[0].mxu0
    %v1089 = vpop.f32.mrb[0].mxu0
    %v1090 = vadd.f32 0.0, %v1089
    %v1091 = vpop.f32.mrb[0].mxu0
    %1092 = vmatprep.mubr.bf16.mxu0 0
    %1093 = vmatmul.mubr.bf16.gmra.mrb[0].mxu0 %v1030
    %v1094 = vpop.f32.mrb[0].mxu0
    %v1095 = vadd.f32 0.0, %v1094
    %v1096 = vpop.f32.mrb[0].mxu0
    %v1097 = vpop.f32.mrb[0].mxu0
    %v1098 = vadd.f32 0.0, %v1097
    %v1099 = vpop.f32.mrb[0].mxu0
    %1100 = vmatprep.mubr.bf16.mxu0 0
    %1101 = vmatmul.mubr.bf16.gmra.mrb[0].mxu0 %v1033
    %v1102 = vpop.f32.mrb[0].mxu0
    %v1103 = vadd.f32 0.0, %v1102
    %v1104 = vpop.f32.mrb[0].mxu0
    %v1105 = vpop.f32.mrb[0].mxu0
    %v1106 = vadd.f32 0.0, %v1105
    %v1107 = vpop.f32.mrb[0].mxu0
    %1108 = vmatprep.mubr.bf16.mxu0 0
    %1109 = vmatmul.mubr.bf16.gmra.mrb[0].mxu0 %v1036
    %v1110 = vpop.f32.mrb[0].mxu0
    %v1111 = vadd.f32 0.0, %v1110
    %v1112 = vpop.f32.mrb[0].mxu0
    %v1113 = vpop.f32.mrb[0].mxu0
    %v1114 = vadd.f32 0.0, %v1113
    %v1115 = vpop.f32.mrb[0].mxu0
    %1116 = vmatprep.mubr.bf16.mxu0 0
    %1117 = vmatmul.mubr.bf16.gmra.mrb[0].mxu0 %v1039
    %v1118 = vpop.f32.mrb[0].mxu0
    %v1119 = vadd.f32 0.0, %v1118
    %v1120 = vpop.f32.mrb[0].mxu0
    %v1121 = vpop.f32.mrb[0].mxu0
    %v1122 = vadd.f32 0.0, %v1121
    %v1123 = vpop.f32.mrb[0].mxu0
    %1124 = vmatprep.mubr.bf16.mxu0 0
    %1125 = vmatmul.mubr.bf16.gmra.mrb[0].mxu0 %v1042
    %v1126 = vpop.f32.mrb[0].mxu0
    %v1127 = vadd.f32 0.0, %v1126
    %v1128 = vpop.f32.mrb[0].mxu0
    %v1129 = vpop.f32.mrb[0].mxu0
    %v1130 = vadd.f32 0.0, %v1129
    %v1131 = vpop.f32.mrb[0].mxu0
    %1132 = vdwg.mxu0
    %v1137 = vunpack.c.l.b16 %v941
    %v1138 = vunpack.c.l.b16 %v942
    %v1139 = vunpack.c.l.b16 %v943
    %v1140 = vunpack.c.l.b16 %v944
    %v1141 = vpack.c.b16 %v1138, %v1137
    %v1142 = vpack.c.b16 %v1140, %v1139
    %v1145 = vsel %vm85, %v934, 0
    %v1147 = vsel %vm85, %v935, 0
    %v1149 = vsel %vm85, %v936, 0
    %v1151 = vsel %vm85, %v937, 0
    %v1153 = vsel %vm85, %v938, 0
    %v1155 = vsel %vm85, %v939, 0
    %v1157 = vsel %vm85, %v940, 0
    %1159 = vmatprep.subr.bf16.mxu0 0
    %1160 = vmatpush1.bf16.msra.mxu0 %v1141
    %1161 = vmatprep.subr.bf16.mxu0 0
    %1162 = vmatpush1.bf16.msra.mxu0 %v1142
    %1163 = vmatprep.subr.bf16.mxu0 0
    %1164 = vmatpush1.bf16.msra.mxu0 0
    %1165 = vmatprep.subr.bf16.mxu0 0
    %1166 = vmatpush1.bf16.msra.mxu0 0
    %1167 = vmatprep.subr.bf16.mxu0 0
    %1168 = vmatpush1.bf16.msra.mxu0 0
    %1169 = vmatprep.subr.bf16.mxu0 0
    %1170 = vmatpush1.bf16.msra.mxu0 0
    %1171 = vmatprep.subr.bf16.mxu0 0
    %1172 = vmatpush1.bf16.msra.mxu0 0
    %1173 = vmatprep.subr.bf16.mxu0 0
    %1174 = vmatpush1.bf16.msra.mxu0 0
    %1175 = vmatprep.subr.bf16.mxu0 0
    %1176 = vmatpush1.bf16.msra.mxu0 0
    %1177 = vmatprep.subr.bf16.mxu0 0
    %1178 = vmatpush1.bf16.msra.mxu0 0
    %1179 = vmatprep.subr.bf16.mxu0 0
    %1180 = vmatpush1.bf16.msra.mxu0 0
    %1181 = vmatprep.subr.bf16.mxu0 0
    %1182 = vmatpush1.bf16.msra.mxu0 0
    %1183 = vmatprep.subr.bf16.mxu0 0
    %1184 = vmatpush1.bf16.msra.mxu0 0
    %1185 = vmatprep.subr.bf16.mxu0 0
    %1186 = vmatpush1.bf16.msra.mxu0 0
    %1187 = vmatprep.subr.bf16.mxu0 0
    %1188 = vmatpush1.bf16.msra.mxu0 0
    %1189 = vmatprep.subr.bf16.mxu0 0
    %1190 = vmatpush1.bf16.msra.mxu0 0
    %1191 = vmatprep.mubr.bf16.mxu0 0
    %1192 = vmatmul.mubr.bf16.gmra.mrb[0].mxu0 %v1145
    %v1193 = vpop.f32.mrb[0].mxu0
    %v1194 = vadd.f32 %v1079, %v1193
    %v1195 = vpop.f32.mrb[0].mxu0
    %v1196 = vpop.f32.mrb[0].mxu0
    %v1197 = vadd.f32 %v1082, %v1196
    %v1198 = vpop.f32.mrb[0].mxu0
    %1199 = vmatprep.mubr.bf16.mxu0 0
    %1200 = vmatmul.mubr.bf16.gmra.mrb[0].mxu0 %v1147
    %v1201 = vpop.f32.mrb[0].mxu0
    %v1202 = vadd.f32 %v1087, %v1201
    %v1203 = vpop.f32.mrb[0].mxu0
    %v1204 = vpop.f32.mrb[0].mxu0
    %v1205 = vadd.f32 %v1090, %v1204
    %v1206 = vpop.f32.mrb[0].mxu0
    %1207 = vmatprep.mubr.bf16.mxu0 0
    %1208 = vmatmul.mubr.bf16.gmra.mrb[0].mxu0 %v1149
    %v1209 = vpop.f32.mrb[0].mxu0
    %v1210 = vadd.f32 %v1095, %v1209
    %v1211 = vpop.f32.mrb[0].mxu0
    %v1212 = vpop.f32.mrb[0].mxu0
    %v1213 = vadd.f32 %v1098, %v1212
    %v1214 = vpop.f32.mrb[0].mxu0
    %1215 = vmatprep.mubr.bf16.mxu0 0
    %1216 = vmatmul.mubr.bf16.gmra.mrb[0].mxu0 %v1151
    %v1217 = vpop.f32.mrb[0].mxu0
    %v1218 = vadd.f32 %v1103, %v1217
    %v1219 = vpop.f32.mrb[0].mxu0
    %v1220 = vpop.f32.mrb[0].mxu0
    %v1221 = vadd.f32 %v1106, %v1220
    %v1222 = vpop.f32.mrb[0].mxu0
    %1223 = vmatprep.mubr.bf16.mxu0 0
    %1224 = vmatmul.mubr.bf16.gmra.mrb[0].mxu0 %v1153
    %v1225 = vpop.f32.mrb[0].mxu0
    %v1226 = vadd.f32 %v1111, %v1225
    %v1227 = vpop.f32.mrb[0].mxu0
    %v1228 = vpop.f32.mrb[0].mxu0
    %v1229 = vadd.f32 %v1114, %v1228
    %v1230 = vpop.f32.mrb[0].mxu0
    %1231 = vmatprep.mubr.bf16.mxu0 0
    %1232 = vmatmul.mubr.bf16.gmra.mrb[0].mxu0 %v1155
    %v1233 = vpop.f32.mrb[0].mxu0
    %v1234 = vadd.f32 %v1119, %v1233
    %v1235 = vpop.f32.mrb[0].mxu0
    %v1236 = vpop.f32.mrb[0].mxu0
    %v1237 = vadd.f32 %v1122, %v1236
    %v1238 = vpop.f32.mrb[0].mxu0
    %1239 = vmatprep.mubr.bf16.mxu0 0
    %1240 = vmatmul.mubr.bf16.gmra.mrb[0].mxu0 %v1157
    %v1241 = vpop.f32.mrb[0].mxu0
    %v1242 = vadd.f32 %v1127, %v1241
    %v1243 = vpop.f32.mrb[0].mxu0
    %v1244 = vpop.f32.mrb[0].mxu0
    %v1245 = vadd.f32 %v1130, %v1244
    %v1246 = vpop.f32.mrb[0].mxu0
    %1247 = vdwg.mxu0
    %v1248 = vld [vmem:[#allocation3] sm:$0xfe]
    %s1249 = scalar_lea.vmem [#allocation5], 32
    %v1250 = vld [vmem:[%s1249] sm:$0xf]
    %v1251 = vld [vmem:[%s1249 + $0x4] sm:$0xf]
    %v1252 = vld [vmem:[%s1249 + $0x8] sm:$0xf]
    %v1253 = vld [vmem:[%s1249 + $0xc] sm:$0xf]
    %vm1262 = vcmask 1046528
    %v1263 = vrot.slane %v1248, 1
    %v1264 = vrot.slane %v935, 1
    %v1265 = vsel %vm1262, %v1263, %v1264
    %v1266 = vrot.slane %v936, 1
    %v1267 = vsel %vm1262, %v1264, %v1266
    %v1268 = vrot.slane %v937, 1
    %v1269 = vsel %vm1262, %v1266, %v1268
    %v1270 = vrot.slane %v938, 1
    %v1271 = vsel %vm1262, %v1268, %v1270
    %v1272 = vrot.slane %v939, 1
    %v1273 = vsel %vm1262, %v1270, %v1272
    %v1274 = vrot.slane %v940, 1
    %v1275 = vsel %vm1262, %v1272, %v1274
    %v1276 = vrot.slane %v945, 1
    %v1277 = vsel %vm1262, %v1274, %v1276
    %v1282 = vunpack.c.l.b16 %v1250
    %v1283 = vunpack.c.l.b16 %v1251
    %v1284 = vunpack.c.l.b16 %v1252
    %v1285 = vunpack.c.l.b16 %v1253
    %v1286 = vpack.c.b16 %v1283, %v1282
    %v1287 = vpack.c.b16 %v1285, %v1284
    %v1291 = vsel %vm85, %v1265, 0
    %v1294 = vsel %vm85, %v1267, 0
    %v1297 = vsel %vm85, %v1269, 0
    %v1300 = vsel %vm85, %v1271, 0
    %v1303 = vsel %vm85, %v1273, 0
    %v1306 = vsel %vm85, %v1275, 0
    %v1309 = vsel %vm85, %v1277, 0
    %1311 = vmatprep.subr.bf16.mxu0 0
    %1312 = vmatpush1.bf16.msra.mxu0 %v1286
    %1313 = vmatprep.subr.bf16.mxu0 0
    %1314 = vmatpush1.bf16.msra.mxu0 %v1287
    %1315 = vmatprep.subr.bf16.mxu0 0
    %1316 = vmatpush1.bf16.msra.mxu0 0
    %1317 = vmatprep.subr.bf16.mxu0 0
    %1318 = vmatpush1.bf16.msra.mxu0 0
    %1319 = vmatprep.subr.bf16.mxu0 0
    %1320 = vmatpush1.bf16.msra.mxu0 0
    %1321 = vmatprep.subr.bf16.mxu0 0
    %1322 = vmatpush1.bf16.msra.mxu0 0
    %1323 = vmatprep.subr.bf16.mxu0 0
    %1324 = vmatpush1.bf16.msra.mxu0 0
    %1325 = vmatprep.subr.bf16.mxu0 0
    %1326 = vmatpush1.bf16.msra.mxu0 0
    %1327 = vmatprep.subr.bf16.mxu0 0
    %1328 = vmatpush1.bf16.msra.mxu0 0
    %1329 = vmatprep.subr.bf16.mxu0 0
    %1330 = vmatpush1.bf16.msra.mxu0 0
    %1331 = vmatprep.subr.bf16.mxu0 0
    %1332 = vmatpush1.bf16.msra.mxu0 0
    %1333 = vmatprep.subr.bf16.mxu0 0
    %1334 = vmatpush1.bf16.msra.mxu0 0
    %1335 = vmatprep.subr.bf16.mxu0 0
    %1336 = vmatpush1.bf16.msra.mxu0 0
    %1337 = vmatprep.subr.bf16.mxu0 0
    %1338 = vmatpush1.bf16.msra.mxu0 0
    %1339 = vmatprep.subr.bf16.mxu0 0
    %1340 = vmatpush1.bf16.msra.mxu0 0
    %1341 = vmatprep.subr.bf16.mxu0 0
    %1342 = vmatpush1.bf16.msra.mxu0 0
    %1343 = vmatprep.mubr.bf16.mxu0 0
    %1344 = vmatmul.mubr.bf16.gmra.mrb[0].mxu0 %v1291
    %v1345 = vpop.f32.mrb[0].mxu0
    %v1346 = vadd.f32 0.0, %v1345
    %v1347 = vpop.f32.mrb[0].mxu0
    %v1348 = vpop.f32.mrb[0].mxu0
    %v1349 = vadd.f32 0.0, %v1348
    %v1350 = vpop.f32.mrb[0].mxu0
    %1351 = vmatprep.mubr.bf16.mxu0 0
    %1352 = vmatmul.mubr.bf16.gmra.mrb[0].mxu0 %v1294
    %v1353 = vpop.f32.mrb[0].mxu0
    %v1354 = vadd.f32 0.0, %v1353
    %v1355 = vpop.f32.mrb[0].mxu0
    %v1356 = vpop.f32.mrb[0].mxu0
    %v1357 = vadd.f32 0.0, %v1356
    %v1358 = vpop.f32.mrb[0].mxu0
    %1359 = vmatprep.mubr.bf16.mxu0 0
    %1360 = vmatmul.mubr.bf16.gmra.mrb[0].mxu0 %v1297
    %v1361 = vpop.f32.mrb[0].mxu0
    %v1362 = vadd.f32 0.0, %v1361
    %v1363 = vpop.f32.mrb[0].mxu0
    %v1364 = vpop.f32.mrb[0].mxu0
    %v1365 = vadd.f32 0.0, %v1364
    %v1366 = vpop.f32.mrb[0].mxu0
    %1367 = vmatprep.mubr.bf16.mxu0 0
    %1368 = vmatmul.mubr.bf16.gmra.mrb[0].mxu0 %v1300
    %v1369 = vpop.f32.mrb[0].mxu0
    %v1370 = vadd.f32 0.0, %v1369
    %v1371 = vpop.f32.mrb[0].mxu0
    %v1372 = vpop.f32.mrb[0].mxu0
    %v1373 = vadd.f32 0.0, %v1372
    %v1374 = vpop.f32.mrb[0].mxu0
    %1375 = vmatprep.mubr.bf16.mxu0 0
    %1376 = vmatmul.mubr.bf16.gmra.mrb[0].mxu0 %v1303
    %v1377 = vpop.f32.mrb[0].mxu0
    %v1378 = vadd.f32 0.0, %v1377
    %v1379 = vpop.f32.mrb[0].mxu0
    %v1380 = vpop.f32.mrb[0].mxu0
    %v1381 = vadd.f32 0.0, %v1380
    %v1382 = vpop.f32.mrb[0].mxu0
    %1383 = vmatprep.mubr.bf16.mxu0 0
    %1384 = vmatmul.mubr.bf16.gmra.mrb[0].mxu0 %v1306
    %v1385 = vpop.f32.mrb[0].mxu0
    %v1386 = vadd.f32 0.0, %v1385
    %v1387 = vpop.f32.mrb[0].mxu0
    %v1388 = vpop.f32.mrb[0].mxu0
    %v1389 = vadd.f32 0.0, %v1388
    %v1390 = vpop.f32.mrb[0].mxu0
    %1391 = vmatprep.mubr.bf16.mxu0 0
    %1392 = vmatmul.mubr.bf16.gmra.mrb[0].mxu0 %v1309
    %v1393 = vpop.f32.mrb[0].mxu0
    %v1394 = vadd.f32 0.0, %v1393
    %v1395 = vpop.f32.mrb[0].mxu0
    %v1396 = vpop.f32.mrb[0].mxu0
    %v1397 = vadd.f32 0.0, %v1396
    %v1398 = vpop.f32.mrb[0].mxu0
    %1399 = vdwg.mxu0
    %v1400 = vadd.f32 %v1194, %v1346
    %v1401 = vadd.f32 %v1197, %v1349
    %v1402 = vadd.f32 %v1202, %v1354
    %v1403 = vadd.f32 %v1205, %v1357
    %v1404 = vadd.f32 %v1210, %v1362
    %v1405 = vadd.f32 %v1213, %v1365
    %v1406 = vadd.f32 %v1218, %v1370
    %v1407 = vadd.f32 %v1221, %v1373
    %v1408 = vadd.f32 %v1226, %v1378
    %v1409 = vadd.f32 %v1229, %v1381
    %v1410 = vadd.f32 %v1234, %v1386
    %v1411 = vadd.f32 %v1237, %v1389
    %v1412 = vadd.f32 %v1242, %v1394
    %v1413 = vadd.f32 %v1245, %v1397
    %v1414 = vld [vmem:[#allocation3] sm:$0xf0]
    %v1415 = vld [vmem:[#allocation3 + $0x38] sm:$0xf]
    %s1416 = scalar_lea.vmem [#allocation5], 48
    %v1417 = vld [vmem:[%s1416] sm:$0xf]
    %v1418 = vld [vmem:[%s1416 + $0x4] sm:$0xf]
    %v1419 = vld [vmem:[%s1416 + $0x8] sm:$0xf]
    %v1420 = vld [vmem:[%s1416 + $0xc] sm:$0xf]
    %v1423 = vrot.slane %v1414, 4
    %v1424 = vrot.slane %v935, 4
    %v1425 = vsel %vm525, %v1423, %v1424
    %v1426 = vrot.slane %v936, 4
    %v1427 = vsel %vm525, %v1424, %v1426
    %v1428 = vrot.slane %v937, 4
    %v1429 = vsel %vm525, %v1426, %v1428
    %v1430 = vrot.slane %v938, 4
    %v1431 = vsel %vm525, %v1428, %v1430
    %v1432 = vrot.slane %v939, 4
    %v1433 = vsel %vm525, %v1430, %v1432
    %v1434 = vrot.slane %v940, 4
    %v1435 = vsel %vm525, %v1432, %v1434
    %v1436 = vrot.slane %v1415, 4
    %v1437 = vsel %vm525, %v1434, %v1436
    %v1442 = vunpack.c.l.b16 %v1417
    %v1443 = vunpack.c.l.b16 %v1418
    %v1444 = vunpack.c.l.b16 %v1419
    %v1445 = vunpack.c.l.b16 %v1420
    %v1446 = vpack.c.b16 %v1443, %v1442
    %v1447 = vpack.c.b16 %v1445, %v1444
    %v1451 = vsel %vm85, %v1425, 0
    %v1454 = vsel %vm85, %v1427, 0
    %v1457 = vsel %vm85, %v1429, 0
    %v1460 = vsel %vm85, %v1431, 0
    %v1463 = vsel %vm85, %v1433, 0
    %v1466 = vsel %vm85, %v1435, 0
    %v1469 = vsel %vm85, %v1437, 0
    %1471 = vmatprep.subr.bf16.mxu0 0
    %1472 = vmatpush1.bf16.msra.mxu0 %v1446
    %1473 = vmatprep.subr.bf16.mxu0 0
    %1474 = vmatpush1.bf16.msra.mxu0 %v1447
    %1475 = vmatprep.subr.bf16.mxu0 0
    %1476 = vmatpush1.bf16.msra.mxu0 0
    %1477 = vmatprep.subr.bf16.mxu0 0
    %1478 = vmatpush1.bf16.msra.mxu0 0
    %1479 = vmatprep.subr.bf16.mxu0 0
    %1480 = vmatpush1.bf16.msra.mxu0 0
    %1481 = vmatprep.subr.bf16.mxu0 0
    %1482 = vmatpush1.bf16.msra.mxu0 0
    %1483 = vmatprep.subr.bf16.mxu0 0
    %1484 = vmatpush1.bf16.msra.mxu0 0
    %1485 = vmatprep.subr.bf16.mxu0 0
    %1486 = vmatpush1.bf16.msra.mxu0 0
    %1487 = vmatprep.subr.bf16.mxu0 0
    %1488 = vmatpush1.bf16.msra.mxu0 0
    %1489 = vmatprep.subr.bf16.mxu0 0
    %1490 = vmatpush1.bf16.msra.mxu0 0
    %1491 = vmatprep.subr.bf16.mxu0 0
    %1492 = vmatpush1.bf16.msra.mxu0 0
    %1493 = vmatprep.subr.bf16.mxu0 0
    %1494 = vmatpush1.bf16.msra.mxu0 0
    %1495 = vmatprep.subr.bf16.mxu0 0
    %1496 = vmatpush1.bf16.msra.mxu0 0
    %1497 = vmatprep.subr.bf16.mxu0 0
    %1498 = vmatpush1.bf16.msra.mxu0 0
    %1499 = vmatprep.subr.bf16.mxu0 0
    %1500 = vmatpush1.bf16.msra.mxu0 0
    %1501 = vmatprep.subr.bf16.mxu0 0
    %1502 = vmatpush1.bf16.msra.mxu0 0
    %1503 = vmatprep.mubr.bf16.mxu0 0
    %1504 = vmatmul.mubr.bf16.gmra.mrb[0].mxu0 %v1451
    %v1505 = vpop.f32.mrb[0].mxu0
    %v1506 = vadd.f32 0.0, %v1505
    %v1507 = vpop.f32.mrb[0].mxu0
    %v1508 = vpop.f32.mrb[0].mxu0
    %v1509 = vadd.f32 0.0, %v1508
    %v1510 = vpop.f32.mrb[0].mxu0
    %1511 = vmatprep.mubr.bf16.mxu0 0
    %1512 = vmatmul.mubr.bf16.gmra.mrb[0].mxu0 %v1454
    %v1513 = vpop.f32.mrb[0].mxu0
    %v1514 = vadd.f32 0.0, %v1513
    %v1515 = vpop.f32.mrb[0].mxu0
    %v1516 = vpop.f32.mrb[0].mxu0
    %v1517 = vadd.f32 0.0, %v1516
    %v1518 = vpop.f32.mrb[0].mxu0
    %1519 = vmatprep.mubr.bf16.mxu0 0
    %1520 = vmatmul.mubr.bf16.gmra.mrb[0].mxu0 %v1457
    %v1521 = vpop.f32.mrb[0].mxu0
    %v1522 = vadd.f32 0.0, %v1521
    %v1523 = vpop.f32.mrb[0].mxu0
    %v1524 = vpop.f32.mrb[0].mxu0
    %v1525 = vadd.f32 0.0, %v1524
    %v1526 = vpop.f32.mrb[0].mxu0
    %1527 = vmatprep.mubr.bf16.mxu0 0
    %1528 = vmatmul.mubr.bf16.gmra.mrb[0].mxu0 %v1460
    %v1529 = vpop.f32.mrb[0].mxu0
    %v1530 = vadd.f32 0.0, %v1529
    %v1531 = vpop.f32.mrb[0].mxu0
    %v1532 = vpop.f32.mrb[0].mxu0
    %v1533 = vadd.f32 0.0, %v1532
    %v1534 = vpop.f32.mrb[0].mxu0
    %1535 = vmatprep.mubr.bf16.mxu0 0
    %1536 = vmatmul.mubr.bf16.gmra.mrb[0].mxu0 %v1463
    %v1537 = vpop.f32.mrb[0].mxu0
    %v1538 = vadd.f32 0.0, %v1537
    %v1539 = vpop.f32.mrb[0].mxu0
    %v1540 = vpop.f32.mrb[0].mxu0
    %v1541 = vadd.f32 0.0, %v1540
    %v1542 = vpop.f32.mrb[0].mxu0
    %1543 = vmatprep.mubr.bf16.mxu0 0
    %1544 = vmatmul.mubr.bf16.gmra.mrb[0].mxu0 %v1466
    %v1545 = vpop.f32.mrb[0].mxu0
    %v1546 = vadd.f32 0.0, %v1545
    %v1547 = vpop.f32.mrb[0].mxu0
    %v1548 = vpop.f32.mrb[0].mxu0
    %v1549 = vadd.f32 0.0, %v1548
    %v1550 = vpop.f32.mrb[0].mxu0
    %1551 = vmatprep.mubr.bf16.mxu0 0
    %1552 = vmatmul.mubr.bf16.gmra.mrb[0].mxu0 %v1469
    %v1553 = vpop.f32.mrb[0].mxu0
    %v1554 = vadd.f32 0.0, %v1553
    %v1555 = vpop.f32.mrb[0].mxu0
    %v1556 = vpop.f32.mrb[0].mxu0
    %v1557 = vadd.f32 0.0, %v1556
    %v1558 = vpop.f32.mrb[0].mxu0
    %1559 = vdwg.mxu0
    %v1560 = vadd.f32 %v1400, %v1506
    %v1561 = vadd.f32 %v1401, %v1509
    %v1562 = vadd.f32 %v1402, %v1514
    %v1563 = vadd.f32 %v1403, %v1517
    %v1564 = vadd.f32 %v1404, %v1522
    %v1565 = vadd.f32 %v1405, %v1525
    %v1566 = vadd.f32 %v1406, %v1530
    %v1567 = vadd.f32 %v1407, %v1533
    %v1568 = vadd.f32 %v1408, %v1538
    %v1569 = vadd.f32 %v1409, %v1541
    %v1570 = vadd.f32 %v1410, %v1546
    %v1571 = vadd.f32 %v1411, %v1549
    %v1572 = vadd.f32 %v1412, %v1554
    %v1573 = vadd.f32 %v1413, %v1557
    %v1574 = vld [vmem:[#allocation3 + $0x38] sm:$0x1f]
    %s1575 = scalar_lea.vmem [#allocation5], 64
    %v1576 = vld [vmem:[%s1575] sm:$0xf]
    %v1577 = vld [vmem:[%s1575 + $0x4] sm:$0xf]
    %v1578 = vld [vmem:[%s1575 + $0x8] sm:$0xf]
    %v1579 = vld [vmem:[%s1575 + $0xc] sm:$0xf]
    %v1581 = vshrl.u32 %v1414, 16
    %v1583 = vrot.slane %v1581, 4
    %v1584 = vshll.u32 %v1414, 16
    %v1586 = vrot.slane %v1584, 5
    %v1587 = vor.u32 %v1583, %v1586
    %v1588 = vrot.slane %v963, 4
    %v1589 = vrot.slane %v959, 5
    %v1590 = vor.u32 %v1588, %v1589
    %v1591 = vsel %vm690, %v1587, %v1590
    %v1592 = vrot.slane %v971, 4
    %v1593 = vrot.slane %v967, 5
    %v1594 = vor.u32 %v1592, %v1593
    %v1595 = vsel %vm690, %v1590, %v1594
    %v1596 = vrot.slane %v979, 4
    %v1597 = vrot.slane %v975, 5
    %v1598 = vor.u32 %v1596, %v1597
    %v1599 = vsel %vm690, %v1594, %v1598
    %v1600 = vrot.slane %v987, 4
    %v1601 = vrot.slane %v983, 5
    %v1602 = vor.u32 %v1600, %v1601
    %v1603 = vsel %vm690, %v1598, %v1602
    %v1604 = vrot.slane %v995, 4
    %v1605 = vrot.slane %v991, 5
    %v1606 = vor.u32 %v1604, %v1605
    %v1607 = vsel %vm690, %v1602, %v1606
    %v1608 = vrot.slane %v1003, 4
    %v1609 = vrot.slane %v999, 5
    %v1610 = vor.u32 %v1608, %v1609
    %v1611 = vsel %vm690, %v1606, %v1610
    %v1613 = vshrl.u32 %v1574, 16
    %v1615 = vrot.slane %v1613, 4
    %v1616 = vshll.u32 %v1574, 16
    %v1618 = vrot.slane %v1616, 5
    %v1619 = vor.u32 %v1615, %v1618
    %v1620 = vsel %vm690, %v1610, %v1619
    %v1625 = vunpack.c.l.b16 %v1576
    %v1626 = vunpack.c.l.b16 %v1577
    %v1627 = vunpack.c.l.b16 %v1578
    %v1628 = vunpack.c.l.b16 %v1579
    %v1629 = vpack.c.b16 %v1626, %v1625
    %v1630 = vpack.c.b16 %v1628, %v1627
    %v1634 = vsel %vm85, %v1591, 0
    %v1637 = vsel %vm85, %v1595, 0
    %v1640 = vsel %vm85, %v1599, 0
    %v1643 = vsel %vm85, %v1603, 0
    %v1646 = vsel %vm85, %v1607, 0
    %v1649 = vsel %vm85, %v1611, 0
    %v1652 = vsel %vm85, %v1620, 0
    %1654 = vmatprep.subr.bf16.mxu0 0
    %1655 = vmatpush1.bf16.msra.mxu0 %v1629
    %1656 = vmatprep.subr.bf16.mxu0 0
    %1657 = vmatpush1.bf16.msra.mxu0 %v1630
    %1658 = vmatprep.subr.bf16.mxu0 0
    %1659 = vmatpush1.bf16.msra.mxu0 0
    %1660 = vmatprep.subr.bf16.mxu0 0
    %1661 = vmatpush1.bf16.msra.mxu0 0
    %1662 = vmatprep.subr.bf16.mxu0 0
    %1663 = vmatpush1.bf16.msra.mxu0 0
    %1664 = vmatprep.subr.bf16.mxu0 0
    %1665 = vmatpush1.bf16.msra.mxu0 0
    %1666 = vmatprep.subr.bf16.mxu0 0
    %1667 = vmatpush1.bf16.msra.mxu0 0
    %1668 = vmatprep.subr.bf16.mxu0 0
    %1669 = vmatpush1.bf16.msra.mxu0 0
    %1670 = vmatprep.subr.bf16.mxu0 0
    %1671 = vmatpush1.bf16.msra.mxu0 0
    %1672 = vmatprep.subr.bf16.mxu0 0
    %1673 = vmatpush1.bf16.msra.mxu0 0
    %1674 = vmatprep.subr.bf16.mxu0 0
    %1675 = vmatpush1.bf16.msra.mxu0 0
    %1676 = vmatprep.subr.bf16.mxu0 0
    %1677 = vmatpush1.bf16.msra.mxu0 0
    %1678 = vmatprep.subr.bf16.mxu0 0
    %1679 = vmatpush1.bf16.msra.mxu0 0
    %1680 = vmatprep.subr.bf16.mxu0 0
    %1681 = vmatpush1.bf16.msra.mxu0 0
    %1682 = vmatprep.subr.bf16.mxu0 0
    %1683 = vmatpush1.bf16.msra.mxu0 0
    %1684 = vmatprep.subr.bf16.mxu0 0
    %1685 = vmatpush1.bf16.msra.mxu0 0
    %1686 = vmatprep.mubr.bf16.mxu0 0
    %1687 = vmatmul.mubr.bf16.gmra.mrb[0].mxu0 %v1634
    %v1688 = vpop.f32.mrb[0].mxu0
    %v1689 = vadd.f32 0.0, %v1688
    %v1690 = vpop.f32.mrb[0].mxu0
    %v1691 = vpop.f32.mrb[0].mxu0
    %v1692 = vadd.f32 0.0, %v1691
    %v1693 = vpop.f32.mrb[0].mxu0
    %1694 = vmatprep.mubr.bf16.mxu0 0
    %1695 = vmatmul.mubr.bf16.gmra.mrb[0].mxu0 %v1637
    %v1696 = vpop.f32.mrb[0].mxu0
    %v1697 = vadd.f32 0.0, %v1696
    %v1698 = vpop.f32.mrb[0].mxu0
    %v1699 = vpop.f32.mrb[0].mxu0
    %v1700 = vadd.f32 0.0, %v1699
    %v1701 = vpop.f32.mrb[0].mxu0
    %1702 = vmatprep.mubr.bf16.mxu0 0
    %1703 = vmatmul.mubr.bf16.gmra.mrb[0].mxu0 %v1640
    %v1704 = vpop.f32.mrb[0].mxu0
    %v1705 = vadd.f32 0.0, %v1704
    %v1706 = vpop.f32.mrb[0].mxu0
    %v1707 = vpop.f32.mrb[0].mxu0
    %v1708 = vadd.f32 0.0, %v1707
    %v1709 = vpop.f32.mrb[0].mxu0
    %1710 = vmatprep.mubr.bf16.mxu0 0
    %1711 = vmatmul.mubr.bf16.gmra.mrb[0].mxu0 %v1643
    %v1712 = vpop.f32.mrb[0].mxu0
    %v1713 = vadd.f32 0.0, %v1712
    %v1714 = vpop.f32.mrb[0].mxu0
    %v1715 = vpop.f32.mrb[0].mxu0
    %v1716 = vadd.f32 0.0, %v1715
    %v1717 = vpop.f32.mrb[0].mxu0
    %1718 = vmatprep.mubr.bf16.mxu0 0
    %1719 = vmatmul.mubr.bf16.gmra.mrb[0].mxu0 %v1646
    %v1720 = vpop.f32.mrb[0].mxu0
    %v1721 = vadd.f32 0.0, %v1720
    %v1722 = vpop.f32.mrb[0].mxu0
    %v1723 = vpop.f32.mrb[0].mxu0
    %v1724 = vadd.f32 0.0, %v1723
    %v1725 = vpop.f32.mrb[0].mxu0
    %1726 = vmatprep.mubr.bf16.mxu0 0
    %1727 = vmatmul.mubr.bf16.gmra.mrb[0].mxu0 %v1649
    %v1728 = vpop.f32.mrb[0].mxu0
    %v1729 = vadd.f32 0.0, %v1728
    %v1730 = vpop.f32.mrb[0].mxu0
    %v1731 = vpop.f32.mrb[0].mxu0
    %v1732 = vadd.f32 0.0, %v1731
    %v1733 = vpop.f32.mrb[0].mxu0
    %1734 = vmatprep.mubr.bf16.mxu0 0
    %1735 = vmatmul.mubr.bf16.gmra.mrb[0].mxu0 %v1652
    %v1736 = vpop.f32.mrb[0].mxu0
    %v1737 = vadd.f32 0.0, %v1736
    %v1738 = vpop.f32.mrb[0].mxu0
    %v1739 = vpop.f32.mrb[0].mxu0
    %v1740 = vadd.f32 0.0, %v1739
    %v1741 = vpop.f32.mrb[0].mxu0
    %1742 = vdwg.mxu0
    %v1743 = vadd.f32 %v1560, %v1689
    %v1744 = vadd.f32 %v1561, %v1692
    %v1745 = vadd.f32 %v1562, %v1697
    %v1746 = vadd.f32 %v1563, %v1700
    %v1747 = vadd.f32 %v1564, %v1705
    %v1748 = vadd.f32 %v1565, %v1708
    %v1749 = vadd.f32 %v1566, %v1713
    %v1750 = vadd.f32 %v1567, %v1716
    %v1751 = vadd.f32 %v1568, %v1721
    %v1752 = vadd.f32 %v1569, %v1724
    %v1753 = vadd.f32 %v1570, %v1729
    %v1754 = vadd.f32 %v1571, %v1732
    %v1755 = vadd.f32 %v1572, %v1737
    %v1756 = vadd.f32 %v1573, %v1740
    %v1757 = vld [vmem:[#allocation3] sm:$0xe0]
    %s1758 = scalar_lea.vmem [#allocation5], 80
    %v1759 = vld [vmem:[%s1758] sm:$0xf]
    %v1760 = vld [vmem:[%s1758 + $0x4] sm:$0xf]
    %v1761 = vld [vmem:[%s1758 + $0x8] sm:$0xf]
    %v1762 = vld [vmem:[%s1758 + $0xc] sm:$0xf]
    %vm1765 = vcmask 1042432
    %v1766 = vrot.slane %v1757, 5
    %v1767 = vrot.slane %v935, 5
    %v1768 = vsel %vm1765, %v1766, %v1767
    %v1769 = vrot.slane %v936, 5
    %v1770 = vsel %vm1765, %v1767, %v1769
    %v1771 = vrot.slane %v937, 5
    %v1772 = vsel %vm1765, %v1769, %v1771
    %v1773 = vrot.slane %v938, 5
    %v1774 = vsel %vm1765, %v1771, %v1773
    %v1775 = vrot.slane %v939, 5
    %v1776 = vsel %vm1765, %v1773, %v1775
    %v1777 = vrot.slane %v940, 5
    %v1778 = vsel %vm1765, %v1775, %v1777
    %v1779 = vrot.slane %v1574, 5
    %v1780 = vsel %vm1765, %v1777, %v1779
    %v1785 = vunpack.c.l.b16 %v1759
    %v1786 = vunpack.c.l.b16 %v1760
    %v1787 = vunpack.c.l.b16 %v1761
    %v1788 = vunpack.c.l.b16 %v1762
    %v1789 = vpack.c.b16 %v1786, %v1785
    %v1790 = vpack.c.b16 %v1788, %v1787
    %v1794 = vsel %vm85, %v1768, 0
    %v1797 = vsel %vm85, %v1770, 0
    %v1800 = vsel %vm85, %v1772, 0
    %v1803 = vsel %vm85, %v1774, 0
    %v1806 = vsel %vm85, %v1776, 0
    %v1809 = vsel %vm85, %v1778, 0
    %v1812 = vsel %vm85, %v1780, 0
    %1814 = vmatprep.subr.bf16.mxu0 0
    %1815 = vmatpush1.bf16.msra.mxu0 %v1789
    %1816 = vmatprep.subr.bf16.mxu0 0
    %1817 = vmatpush1.bf16.msra.mxu0 %v1790
    %1818 = vmatprep.subr.bf16.mxu0 0
    %1819 = vmatpush1.bf16.msra.mxu0 0
    %1820 = vmatprep.subr.bf16.mxu0 0
    %1821 = vmatpush1.bf16.msra.mxu0 0
    %1822 = vmatprep.subr.bf16.mxu0 0
    %1823 = vmatpush1.bf16.msra.mxu0 0
    %1824 = vmatprep.subr.bf16.mxu0 0
    %1825 = vmatpush1.bf16.msra.mxu0 0
    %1826 = vmatprep.subr.bf16.mxu0 0
    %1827 = vmatpush1.bf16.msra.mxu0 0
    %1828 = vmatprep.subr.bf16.mxu0 0
    %1829 = vmatpush1.bf16.msra.mxu0 0
    %1830 = vmatprep.subr.bf16.mxu0 0
    %1831 = vmatpush1.bf16.msra.mxu0 0
    %1832 = vmatprep.subr.bf16.mxu0 0
    %1833 = vmatpush1.bf16.msra.mxu0 0
    %1834 = vmatprep.subr.bf16.mxu0 0
    %1835 = vmatpush1.bf16.msra.mxu0 0
    %1836 = vmatprep.subr.bf16.mxu0 0
    %1837 = vmatpush1.bf16.msra.mxu0 0
    %1838 = vmatprep.subr.bf16.mxu0 0
    %1839 = vmatpush1.bf16.msra.mxu0 0
    %1840 = vmatprep.subr.bf16.mxu0 0
    %1841 = vmatpush1.bf16.msra.mxu0 0
    %1842 = vmatprep.subr.bf16.mxu0 0
    %1843 = vmatpush1.bf16.msra.mxu0 0
    %1844 = vmatprep.subr.bf16.mxu0 0
    %1845 = vmatpush1.bf16.msra.mxu0 0
    %1846 = vmatprep.mubr.bf16.mxu0 0
    %1847 = vmatmul.mubr.bf16.gmra.mrb[0].mxu0 %v1794
    %v1848 = vpop.f32.mrb[0].mxu0
    %v1849 = vadd.f32 0.0, %v1848
    %v1850 = vpop.f32.mrb[0].mxu0
    %v1851 = vpop.f32.mrb[0].mxu0
    %v1852 = vadd.f32 0.0, %v1851
    %v1853 = vpop.f32.mrb[0].mxu0
    %1854 = vmatprep.mubr.bf16.mxu0 0
    %1855 = vmatmul.mubr.bf16.gmra.mrb[0].mxu0 %v1797
    %v1856 = vpop.f32.mrb[0].mxu0
    %v1857 = vadd.f32 0.0, %v1856
    %v1858 = vpop.f32.mrb[0].mxu0
    %v1859 = vpop.f32.mrb[0].mxu0
    %v1860 = vadd.f32 0.0, %v1859
    %v1861 = vpop.f32.mrb[0].mxu0
    %1862 = vmatprep.mubr.bf16.mxu0 0
    %1863 = vmatmul.mubr.bf16.gmra.mrb[0].mxu0 %v1800
    %v1864 = vpop.f32.mrb[0].mxu0
    %v1865 = vadd.f32 0.0, %v1864
    %v1866 = vpop.f32.mrb[0].mxu0
    %v1867 = vpop.f32.mrb[0].mxu0
    %v1868 = vadd.f32 0.0, %v1867
    %v1869 = vpop.f32.mrb[0].mxu0
    %1870 = vmatprep.mubr.bf16.mxu0 0
    %1871 = vmatmul.mubr.bf16.gmra.mrb[0].mxu0 %v1803
    %v1872 = vpop.f32.mrb[0].mxu0
    %v1873 = vadd.f32 0.0, %v1872
    %v1874 = vpop.f32.mrb[0].mxu0
    %v1875 = vpop.f32.mrb[0].mxu0
    %v1876 = vadd.f32 0.0, %v1875
    %v1877 = vpop.f32.mrb[0].mxu0
    %1878 = vmatprep.mubr.bf16.mxu0 0
    %1879 = vmatmul.mubr.bf16.gmra.mrb[0].mxu0 %v1806
    %v1880 = vpop.f32.mrb[0].mxu0
    %v1881 = vadd.f32 0.0, %v1880
    %v1882 = vpop.f32.mrb[0].mxu0
    %v1883 = vpop.f32.mrb[0].mxu0
    %v1884 = vadd.f32 0.0, %v1883
    %v1885 = vpop.f32.mrb[0].mxu0
    %1886 = vmatprep.mubr.bf16.mxu0 0
    %1887 = vmatmul.mubr.bf16.gmra.mrb[0].mxu0 %v1809
    %v1888 = vpop.f32.mrb[0].mxu0
    %v1889 = vadd.f32 0.0, %v1888
    %v1890 = vpop.f32.mrb[0].mxu0
    %v1891 = vpop.f32.mrb[0].mxu0
    %v1892 = vadd.f32 0.0, %v1891
    %v1893 = vpop.f32.mrb[0].mxu0
    %1894 = vmatprep.mubr.bf16.mxu0 0
    %1895 = vmatmul.mubr.bf16.gmra.mrb[0].mxu0 %v1812
    %v1896 = vpop.f32.mrb[0].mxu0
    %v1897 = vadd.f32 0.0, %v1896
    %v1898 = vpop.f32.mrb[0].mxu0
    %v1899 = vpop.f32.mrb[0].mxu0
    %v1900 = vadd.f32 0.0, %v1899
    %v1901 = vpop.f32.mrb[0].mxu0
    %1902 = vdwg.mxu0
    %v1903 = vadd.f32 %v1743, %v1849
    %v1904 = vadd.f32 %v1744, %v1852
    %v1905 = vadd.f32 %v1745, %v1857
    %v1906 = vadd.f32 %v1746, %v1860
    %v1907 = vadd.f32 %v1747, %v1865
    %v1908 = vadd.f32 %v1748, %v1868
    %v1909 = vadd.f32 %v1749, %v1873
    %v1910 = vadd.f32 %v1750, %v1876
    %v1911 = vadd.f32 %v1751, %v1881
    %v1912 = vadd.f32 %v1752, %v1884
    %v1913 = vadd.f32 %v1753, %v1889
    %v1914 = vadd.f32 %v1754, %v1892
    %v1915 = vadd.f32 %v1755, %v1897
    %v1916 = vadd.f32 %v1756, %v1900
    %v1917 = vld [vmem:[#allocation3 + $0x38] sm:$0xff]
    %s1918 = scalar_lea.vmem [#allocation5], 96
    %v1919 = vld [vmem:[%s1918] sm:$0xf]
    %v1920 = vld [vmem:[%s1918 + $0x4] sm:$0xf]
    %v1921 = vld [vmem:[%s1918 + $0x8] sm:$0xf]
    %v1922 = vld [vmem:[%s1918 + $0xc] sm:$0xf]
    %v1927 = vunpack.c.l.b16 %v1919
    %v1928 = vunpack.c.l.b16 %v1920
    %v1929 = vunpack.c.l.b16 %v1921
    %v1930 = vunpack.c.l.b16 %v1922
    %v1931 = vpack.c.b16 %v1928, %v1927
    %v1932 = vpack.c.b16 %v1930, %v1929
    %v1936 = vsel %vm85, %v1917, 0
    %1938 = vmatprep.subr.bf16.mxu0 0
    %1939 = vmatpush1.bf16.msra.mxu0 %v1931
    %1940 = vmatprep.subr.bf16.mxu0 0
    %1941 = vmatpush1.bf16.msra.mxu0 %v1932
    %1942 = vmatprep.subr.bf16.mxu0 0
    %1943 = vmatpush1.bf16.msra.mxu0 0
    %1944 = vmatprep.subr.bf16.mxu0 0
    %1945 = vmatpush1.bf16.msra.mxu0 0
    %1946 = vmatprep.subr.bf16.mxu0 0
    %1947 = vmatpush1.bf16.msra.mxu0 0
    %1948 = vmatprep.subr.bf16.mxu0 0
    %1949 = vmatpush1.bf16.msra.mxu0 0
    %1950 = vmatprep.subr.bf16.mxu0 0
    %1951 = vmatpush1.bf16.msra.mxu0 0
    %1952 = vmatprep.subr.bf16.mxu0 0
    %1953 = vmatpush1.bf16.msra.mxu0 0
    %1954 = vmatprep.subr.bf16.mxu0 0
    %1955 = vmatpush1.bf16.msra.mxu0 0
    %1956 = vmatprep.subr.bf16.mxu0 0
    %1957 = vmatpush1.bf16.msra.mxu0 0
    %1958 = vmatprep.subr.bf16.mxu0 0
    %1959 = vmatpush1.bf16.msra.mxu0 0
    %1960 = vmatprep.subr.bf16.mxu0 0
    %1961 = vmatpush1.bf16.msra.mxu0 0
    %1962 = vmatprep.subr.bf16.mxu0 0
    %1963 = vmatpush1.bf16.msra.mxu0 0
    %1964 = vmatprep.subr.bf16.mxu0 0
    %1965 = vmatpush1.bf16.msra.mxu0 0
    %1966 = vmatprep.subr.bf16.mxu0 0
    %1967 = vmatpush1.bf16.msra.mxu0 0
    %1968 = vmatprep.subr.bf16.mxu0 0
    %1969 = vmatpush1.bf16.msra.mxu0 0
    %1970 = vmatprep.mubr.bf16.mxu0 0
    %1971 = vmatmul.mubr.bf16.gmra.mrb[0].mxu0 %v1147
    %v1972 = vpop.f32.mrb[0].mxu0
    %v1973 = vadd.f32 0.0, %v1972
    %v1974 = vpop.f32.mrb[0].mxu0
    %v1975 = vpop.f32.mrb[0].mxu0
    %v1976 = vadd.f32 0.0, %v1975
    %v1977 = vpop.f32.mrb[0].mxu0
    %1978 = vmatprep.mubr.bf16.mxu0 0
    %1979 = vmatmul.mubr.bf16.gmra.mrb[0].mxu0 %v1149
    %v1980 = vpop.f32.mrb[0].mxu0
    %v1981 = vadd.f32 0.0, %v1980
    %v1982 = vpop.f32.mrb[0].mxu0
    %v1983 = vpop.f32.mrb[0].mxu0
    %v1984 = vadd.f32 0.0, %v1983
    %v1985 = vpop.f32.mrb[0].mxu0
    %1986 = vmatprep.mubr.bf16.mxu0 0
    %1987 = vmatmul.mubr.bf16.gmra.mrb[0].mxu0 %v1151
    %v1988 = vpop.f32.mrb[0].mxu0
    %v1989 = vadd.f32 0.0, %v1988
    %v1990 = vpop.f32.mrb[0].mxu0
    %v1991 = vpop.f32.mrb[0].mxu0
    %v1992 = vadd.f32 0.0, %v1991
    %v1993 = vpop.f32.mrb[0].mxu0
    %1994 = vmatprep.mubr.bf16.mxu0 0
    %1995 = vmatmul.mubr.bf16.gmra.mrb[0].mxu0 %v1153
    %v1996 = vpop.f32.mrb[0].mxu0
    %v1997 = vadd.f32 0.0, %v1996
    %v1998 = vpop.f32.mrb[0].mxu0
    %v1999 = vpop.f32.mrb[0].mxu0
    %v2000 = vadd.f32 0.0, %v1999
    %v2001 = vpop.f32.mrb[0].mxu0
    %2002 = vmatprep.mubr.bf16.mxu0 0
    %2003 = vmatmul.mubr.bf16.gmra.mrb[0].mxu0 %v1155
    %v2004 = vpop.f32.mrb[0].mxu0
    %v2005 = vadd.f32 0.0, %v2004
    %v2006 = vpop.f32.mrb[0].mxu0
    %v2007 = vpop.f32.mrb[0].mxu0
    %v2008 = vadd.f32 0.0, %v2007
    %v2009 = vpop.f32.mrb[0].mxu0
    %2010 = vmatprep.mubr.bf16.mxu0 0
    %2011 = vmatmul.mubr.bf16.gmra.mrb[0].mxu0 %v1157
    %v2012 = vpop.f32.mrb[0].mxu0
    %v2013 = vadd.f32 0.0, %v2012
    %v2014 = vpop.f32.mrb[0].mxu0
    %v2015 = vpop.f32.mrb[0].mxu0
    %v2016 = vadd.f32 0.0, %v2015
    %v2017 = vpop.f32.mrb[0].mxu0
    %2018 = vmatprep.mubr.bf16.mxu0 0
    %2019 = vmatmul.mubr.bf16.gmra.mrb[0].mxu0 %v1936
    %v2020 = vpop.f32.mrb[0].mxu0
    %v2021 = vadd.f32 0.0, %v2020
    %v2022 = vpop.f32.mrb[0].mxu0
    %v2023 = vpop.f32.mrb[0].mxu0
    %v2024 = vadd.f32 0.0, %v2023
    %v2025 = vpop.f32.mrb[0].mxu0
    %2026 = vdwg.mxu0
    %v2027 = vadd.f32 %v1903, %v1973
    %v2028 = vadd.f32 %v1904, %v1976
    %v2029 = vadd.f32 %v1905, %v1981
    %v2030 = vadd.f32 %v1906, %v1984
    %v2031 = vadd.f32 %v1907, %v1989
    %v2032 = vadd.f32 %v1908, %v1992
    %v2033 = vadd.f32 %v1909, %v1997
    %v2034 = vadd.f32 %v1910, %v2000
    %v2035 = vadd.f32 %v1911, %v2005
    %v2036 = vadd.f32 %v1912, %v2008
    %v2037 = vadd.f32 %v1913, %v2013
    %v2038 = vadd.f32 %v1914, %v2016
    %v2039 = vadd.f32 %v1915, %v2021
    %v2040 = vadd.f32 %v1916, %v2024
    %v2041 = vld [vmem:[#allocation3 + $0x8] sm:$0xff]
    %v2042 = vld [vmem:[#allocation3 + $0x10] sm:$0xff]
    %v2043 = vld [vmem:[#allocation3 + $0x18] sm:$0xff]
    %v2044 = vld [vmem:[#allocation3 + $0x20] sm:$0xff]
    %v2045 = vld [vmem:[#allocation3 + $0x28] sm:$0xff]
    %v2046 = vld [vmem:[#allocation3 + $0x30] sm:$0xff]
    %v2047 = vld [vmem:[#allocation3 + $0x38] sm:$0xff]
    %v2048 = vld [vmem:[#allocation3 + $0x40] sm:$0x1]
    %s2049 = scalar_lea.vmem [#allocation5], 112
    %v2050 = vld [vmem:[%s2049] sm:$0xf]
    %v2051 = vld [vmem:[%s2049 + $0x4] sm:$0xf]
    %v2052 = vld [vmem:[%s2049 + $0x8] sm:$0xf]
    %v2053 = vld [vmem:[%s2049 + $0xc] sm:$0xf]
    %v2055 = vshrl.u32 %v2041, 16
    %v2057 = vshll.u32 %v2041, 16
    %v2059 = vrot.slane %v2057, 1
    %v2060 = vor.u32 %v2055, %v2059
    %v2062 = vshll.u32 %v2042, 16
    %v2064 = vrot.slane %v2062, 1
    %v2065 = vsel %vm196, %v2060, %v2064
    %v2066 = vshrl.u32 %v2042, 16
    %v2068 = vor.u32 %v2066, %v2064
    %v2070 = vshll.u32 %v2043, 16
    %v2072 = vrot.slane %v2070, 1
    %v2073 = vsel %vm196, %v2068, %v2072
    %v2074 = vshrl.u32 %v2043, 16
    %v2076 = vor.u32 %v2074, %v2072
    %v2078 = vshll.u32 %v2044, 16
    %v2080 = vrot.slane %v2078, 1
    %v2081 = vsel %vm196, %v2076, %v2080
    %v2082 = vshrl.u32 %v2044, 16
    %v2084 = vor.u32 %v2082, %v2080
    %v2086 = vshll.u32 %v2045, 16
    %v2088 = vrot.slane %v2086, 1
    %v2089 = vsel %vm196, %v2084, %v2088
    %v2090 = vshrl.u32 %v2045, 16
    %v2092 = vor.u32 %v2090, %v2088
    %v2094 = vshll.u32 %v2046, 16
    %v2096 = vrot.slane %v2094, 1
    %v2097 = vsel %vm196, %v2092, %v2096
    %v2098 = vshrl.u32 %v2046, 16
    %v2100 = vor.u32 %v2098, %v2096
    %v2102 = vshll.u32 %v2047, 16
    %v2104 = vrot.slane %v2102, 1
    %v2105 = vsel %vm196, %v2100, %v2104
    %v2106 = vshrl.u32 %v2047, 16
    %v2108 = vor.u32 %v2106, %v2104
    %v2110 = vshll.u32 %v2048, 16
    %v2112 = vrot.slane %v2110, 1
    %v2113 = vsel %vm196, %v2108, %v2112
    %v2118 = vunpack.c.l.b16 %v2050
    %v2119 = vunpack.c.l.b16 %v2051
    %v2120 = vunpack.c.l.b16 %v2052
    %v2121 = vunpack.c.l.b16 %v2053
    %v2122 = vpack.c.b16 %v2119, %v2118
    %v2123 = vpack.c.b16 %v2121, %v2120
    %v2127 = vsel %vm85, %v2065, 0
    %v2130 = vsel %vm85, %v2073, 0
    %v2133 = vsel %vm85, %v2081, 0
    %v2136 = vsel %vm85, %v2089, 0
    %v2139 = vsel %vm85, %v2097, 0
    %v2142 = vsel %vm85, %v2105, 0
    %v2145 = vsel %vm85, %v2113, 0
    %2147 = vmatprep.subr.bf16.mxu0 0
    %2148 = vmatpush1.bf16.msra.mxu0 %v2122
    %2149 = vmatprep.subr.bf16.mxu0 0
    %2150 = vmatpush1.bf16.msra.mxu0 %v2123
    %2151 = vmatprep.subr.bf16.mxu0 0
    %2152 = vmatpush1.bf16.msra.mxu0 0
    %2153 = vmatprep.subr.bf16.mxu0 0
    %2154 = vmatpush1.bf16.msra.mxu0 0
    %2155 = vmatprep.subr.bf16.mxu0 0
    %2156 = vmatpush1.bf16.msra.mxu0 0
    %2157 = vmatprep.subr.bf16.mxu0 0
    %2158 = vmatpush1.bf16.msra.mxu0 0
    %2159 = vmatprep.subr.bf16.mxu0 0
    %2160 = vmatpush1.bf16.msra.mxu0 0
    %2161 = vmatprep.subr.bf16.mxu0 0
    %2162 = vmatpush1.bf16.msra.mxu0 0
    %2163 = vmatprep.subr.bf16.mxu0 0
    %2164 = vmatpush1.bf16.msra.mxu0 0
    %2165 = vmatprep.subr.bf16.mxu0 0
    %2166 = vmatpush1.bf16.msra.mxu0 0
    %2167 = vmatprep.subr.bf16.mxu0 0
    %2168 = vmatpush1.bf16.msra.mxu0 0
    %2169 = vmatprep.subr.bf16.mxu0 0
    %2170 = vmatpush1.bf16.msra.mxu0 0
    %2171 = vmatprep.subr.bf16.mxu0 0
    %2172 = vmatpush1.bf16.msra.mxu0 0
    %2173 = vmatprep.subr.bf16.mxu0 0
    %2174 = vmatpush1.bf16.msra.mxu0 0
    %2175 = vmatprep.subr.bf16.mxu0 0
    %2176 = vmatpush1.bf16.msra.mxu0 0
    %2177 = vmatprep.subr.bf16.mxu0 0
    %2178 = vmatpush1.bf16.msra.mxu0 0
    %2179 = vmatprep.mubr.bf16.mxu0 0
    %2180 = vmatmul.mubr.bf16.gmra.mrb[0].mxu0 %v2127
    %v2181 = vpop.f32.mrb[0].mxu0
    %v2182 = vadd.f32 0.0, %v2181
    %v2183 = vpop.f32.mrb[0].mxu0
    %v2184 = vpop.f32.mrb[0].mxu0
    %v2185 = vadd.f32 0.0, %v2184
    %v2186 = vpop.f32.mrb[0].mxu0
    %2187 = vmatprep.mubr.bf16.mxu0 0
    %2188 = vmatmul.mubr.bf16.gmra.mrb[0].mxu0 %v2130
    %v2189 = vpop.f32.mrb[0].mxu0
    %v2190 = vadd.f32 0.0, %v2189
    %v2191 = vpop.f32.mrb[0].mxu0
    %v2192 = vpop.f32.mrb[0].mxu0
    %v2193 = vadd.f32 0.0, %v2192
    %v2194 = vpop.f32.mrb[0].mxu0
    %2195 = vmatprep.mubr.bf16.mxu0 0
    %2196 = vmatmul.mubr.bf16.gmra.mrb[0].mxu0 %v2133
    %v2197 = vpop.f32.mrb[0].mxu0
    %v2198 = vadd.f32 0.0, %v2197
    %v2199 = vpop.f32.mrb[0].mxu0
    %v2200 = vpop.f32.mrb[0].mxu0
    %v2201 = vadd.f32 0.0, %v2200
    %v2202 = vpop.f32.mrb[0].mxu0
    %2203 = vmatprep.mubr.bf16.mxu0 0
    %2204 = vmatmul.mubr.bf16.gmra.mrb[0].mxu0 %v2136
    %v2205 = vpop.f32.mrb[0].mxu0
    %v2206 = vadd.f32 0.0, %v2205
    %v2207 = vpop.f32.mrb[0].mxu0
    %v2208 = vpop.f32.mrb[0].mxu0
    %v2209 = vadd.f32 0.0, %v2208
    %v2210 = vpop.f32.mrb[0].mxu0
    %2211 = vmatprep.mubr.bf16.mxu0 0
    %2212 = vmatmul.mubr.bf16.gmra.mrb[0].mxu0 %v2139
    %v2213 = vpop.f32.mrb[0].mxu0
    %v2214 = vadd.f32 0.0, %v2213
    %v2215 = vpop.f32.mrb[0].mxu0
    %v2216 = vpop.f32.mrb[0].mxu0
    %v2217 = vadd.f32 0.0, %v2216
    %v2218 = vpop.f32.mrb[0].mxu0
    %2219 = vmatprep.mubr.bf16.mxu0 0
    %2220 = vmatmul.mubr.bf16.gmra.mrb[0].mxu0 %v2142
    %v2221 = vpop.f32.mrb[0].mxu0
    %v2222 = vadd.f32 0.0, %v2221
    %v2223 = vpop.f32.mrb[0].mxu0
    %v2224 = vpop.f32.mrb[0].mxu0
    %v2225 = vadd.f32 0.0, %v2224
    %v2226 = vpop.f32.mrb[0].mxu0
    %2227 = vmatprep.mubr.bf16.mxu0 0
    %2228 = vmatmul.mubr.bf16.gmra.mrb[0].mxu0 %v2145
    %v2229 = vpop.f32.mrb[0].mxu0
    %v2230 = vadd.f32 0.0, %v2229
    %v2231 = vpop.f32.mrb[0].mxu0
    %v2232 = vpop.f32.mrb[0].mxu0
    %v2233 = vadd.f32 0.0, %v2232
    %v2234 = vpop.f32.mrb[0].mxu0
    %2235 = vdwg.mxu0
    %v2236 = vadd.f32 %v2027, %v2182
    %v2237 = vadd.f32 %v2028, %v2185
    %v2238 = vadd.f32 %v2029, %v2190
    %v2239 = vadd.f32 %v2030, %v2193
    %v2240 = vadd.f32 %v2031, %v2198
    %v2241 = vadd.f32 %v2032, %v2201
    %v2242 = vadd.f32 %v2033, %v2206
    %v2243 = vadd.f32 %v2034, %v2209
    %v2244 = vadd.f32 %v2035, %v2214
    %v2245 = vadd.f32 %v2036, %v2217
    %v2246 = vadd.f32 %v2037, %v2222
    %v2247 = vadd.f32 %v2038, %v2225
    %v2248 = vadd.f32 %v2039, %v2230
    %v2249 = vadd.f32 %v2040, %v2233
    %v2250 = vld [vmem:[#allocation3 + $0x8] sm:$0xfe]
    %s2251 = scalar_lea.vmem [#allocation5], 128
    %v2252 = vld [vmem:[%s2251] sm:$0xf]
    %v2253 = vld [vmem:[%s2251 + $0x4] sm:$0xf]
    %v2254 = vld [vmem:[%s2251 + $0x8] sm:$0xf]
    %v2255 = vld [vmem:[%s2251 + $0xc] sm:$0xf]
    %v2264 = vrot.slane %v2250, 1
    %v2265 = vrot.slane %v2042, 1
    %v2266 = vsel %vm1262, %v2264, %v2265
    %v2267 = vrot.slane %v2043, 1
    %v2268 = vsel %vm1262, %v2265, %v2267
    %v2269 = vrot.slane %v2044, 1
    %v2270 = vsel %vm1262, %v2267, %v2269
    %v2271 = vrot.slane %v2045, 1
    %v2272 = vsel %vm1262, %v2269, %v2271
    %v2273 = vrot.slane %v2046, 1
    %v2274 = vsel %vm1262, %v2271, %v2273
    %v2275 = vrot.slane %v2047, 1
    %v2276 = vsel %vm1262, %v2273, %v2275
    %v2277 = vrot.slane %v2048, 1
    %v2278 = vsel %vm1262, %v2275, %v2277
    %v2283 = vunpack.c.l.b16 %v2252
    %v2284 = vunpack.c.l.b16 %v2253
    %v2285 = vunpack.c.l.b16 %v2254
    %v2286 = vunpack.c.l.b16 %v2255
    %v2287 = vpack.c.b16 %v2284, %v2283
    %v2288 = vpack.c.b16 %v2286, %v2285
    %v2292 = vsel %vm85, %v2266, 0
    %v2295 = vsel %vm85, %v2268, 0
    %v2298 = vsel %vm85, %v2270, 0
    %v2301 = vsel %vm85, %v2272, 0
    %v2304 = vsel %vm85, %v2274, 0
    %v2307 = vsel %vm85, %v2276, 0
    %v2310 = vsel %vm85, %v2278, 0
    %2312 = vmatprep.subr.bf16.mxu0 0
    %2313 = vmatpush1.bf16.msra.mxu0 %v2287
    %2314 = vmatprep.subr.bf16.mxu0 0
    %2315 = vmatpush1.bf16.msra.mxu0 %v2288
    %2316 = vmatprep.subr.bf16.mxu0 0
    %2317 = vmatpush1.bf16.msra.mxu0 0
    %2318 = vmatprep.subr.bf16.mxu0 0
    %2319 = vmatpush1.bf16.msra.mxu0 0
    %2320 = vmatprep.subr.bf16.mxu0 0
    %2321 = vmatpush1.bf16.msra.mxu0 0
    %2322 = vmatprep.subr.bf16.mxu0 0
    %2323 = vmatpush1.bf16.msra.mxu0 0
    %2324 = vmatprep.subr.bf16.mxu0 0
    %2325 = vmatpush1.bf16.msra.mxu0 0
    %2326 = vmatprep.subr.bf16.mxu0 0
    %2327 = vmatpush1.bf16.msra.mxu0 0
    %2328 = vmatprep.subr.bf16.mxu0 0
    %2329 = vmatpush1.bf16.msra.mxu0 0
    %2330 = vmatprep.subr.bf16.mxu0 0
    %2331 = vmatpush1.bf16.msra.mxu0 0
    %2332 = vmatprep.subr.bf16.mxu0 0
    %2333 = vmatpush1.bf16.msra.mxu0 0
    %2334 = vmatprep.subr.bf16.mxu0 0
    %2335 = vmatpush1.bf16.msra.mxu0 0
    %2336 = vmatprep.subr.bf16.mxu0 0
    %2337 = vmatpush1.bf16.msra.mxu0 0
    %2338 = vmatprep.subr.bf16.mxu0 0
    %2339 = vmatpush1.bf16.msra.mxu0 0
    %2340 = vmatprep.subr.bf16.mxu0 0
    %2341 = vmatpush1.bf16.msra.mxu0 0
    %2342 = vmatprep.subr.bf16.mxu0 0
    %2343 = vmatpush1.bf16.msra.mxu0 0
    %2344 = vmatprep.mubr.bf16.mxu0 0
    %2345 = vmatmul.mubr.bf16.gmra.mrb[0].mxu0 %v2292
    %v2346 = vpop.f32.mrb[0].mxu0
    %v2347 = vadd.f32 0.0, %v2346
    %v2348 = vpop.f32.mrb[0].mxu0
    %v2349 = vpop.f32.mrb[0].mxu0
    %v2350 = vadd.f32 0.0, %v2349
    %v2351 = vpop.f32.mrb[0].mxu0
    %2352 = vmatprep.mubr.bf16.mxu0 0
    %2353 = vmatmul.mubr.bf16.gmra.mrb[0].mxu0 %v2295
    %v2354 = vpop.f32.mrb[0].mxu0
    %v2355 = vadd.f32 0.0, %v2354
    %v2356 = vpop.f32.mrb[0].mxu0
    %v2357 = vpop.f32.mrb[0].mxu0
    %v2358 = vadd.f32 0.0, %v2357
    %v2359 = vpop.f32.mrb[0].mxu0
    %2360 = vmatprep.mubr.bf16.mxu0 0
    %2361 = vmatmul.mubr.bf16.gmra.mrb[0].mxu0 %v2298
    %v2362 = vpop.f32.mrb[0].mxu0
    %v2363 = vadd.f32 0.0, %v2362
    %v2364 = vpop.f32.mrb[0].mxu0
    %v2365 = vpop.f32.mrb[0].mxu0
    %v2366 = vadd.f32 0.0, %v2365
    %v2367 = vpop.f32.mrb[0].mxu0
    %2368 = vmatprep.mubr.bf16.mxu0 0
    %2369 = vmatmul.mubr.bf16.gmra.mrb[0].mxu0 %v2301
    %v2370 = vpop.f32.mrb[0].mxu0
    %v2371 = vadd.f32 0.0, %v2370
    %v2372 = vpop.f32.mrb[0].mxu0
    %v2373 = vpop.f32.mrb[0].mxu0
    %v2374 = vadd.f32 0.0, %v2373
    %v2375 = vpop.f32.mrb[0].mxu0
    %2376 = vmatprep.mubr.bf16.mxu0 0
    %2377 = vmatmul.mubr.bf16.gmra.mrb[0].mxu0 %v2304
    %v2378 = vpop.f32.mrb[0].mxu0
    %v2379 = vadd.f32 0.0, %v2378
    %v2380 = vpop.f32.mrb[0].mxu0
    %v2381 = vpop.f32.mrb[0].mxu0
    %v2382 = vadd.f32 0.0, %v2381
    %v2383 = vpop.f32.mrb[0].mxu0
    %2384 = vmatprep.mubr.bf16.mxu0 0
    %2385 = vmatmul.mubr.bf16.gmra.mrb[0].mxu0 %v2307
    %v2386 = vpop.f32.mrb[0].mxu0
    %v2387 = vadd.f32 0.0, %v2386
    %v2388 = vpop.f32.mrb[0].mxu0
    %v2389 = vpop.f32.mrb[0].mxu0
    %v2390 = vadd.f32 0.0, %v2389
    %v2391 = vpop.f32.mrb[0].mxu0
    %2392 = vmatprep.mubr.bf16.mxu0 0
    %2393 = vmatmul.mubr.bf16.gmra.mrb[0].mxu0 %v2310
    %v2394 = vpop.f32.mrb[0].mxu0
    %v2395 = vadd.f32 0.0, %v2394
    %v2396 = vpop.f32.mrb[0].mxu0
    %v2397 = vpop.f32.mrb[0].mxu0
    %v2398 = vadd.f32 0.0, %v2397
    %v2399 = vpop.f32.mrb[0].mxu0
    %2400 = vdwg.mxu0
    %v2401 = vadd.f32 %v2236, %v2347
    %v2402 = vadd.f32 %v2237, %v2350
    %v2403 = vadd.f32 %v2238, %v2355
    %v2404 = vadd.f32 %v2239, %v2358
    %v2405 = vadd.f32 %v2240, %v2363
    %v2406 = vadd.f32 %v2241, %v2366
    %v2407 = vadd.f32 %v2242, %v2371
    %v2408 = vadd.f32 %v2243, %v2374
    %v2409 = vadd.f32 %v2244, %v2379
    %v2410 = vadd.f32 %v2245, %v2382
    %v2411 = vadd.f32 %v2246, %v2387
    %v2412 = vadd.f32 %v2247, %v2390
    %v2413 = vadd.f32 %v2248, %v2395
    %v2414 = vadd.f32 %v2249, %v2398
    %v2415 = vld [vmem:[%s4] sm:$0x1]
    %v2417 = vlaneseq
    %v2418 = vshrl.u32 %v2417, 7
    %v2419 = vsub.s32 0, %v2418
    %v2420 = vrot.slane %v2415, %v2419
    %v2422 = vadd.f32 %v2401, %v2420
    %v2423 = vadd.f32 %v2402, %v2420
    %v2424 = vadd.f32 %v2403, %v2420
    %v2425 = vadd.f32 %v2404, %v2420
    %v2426 = vadd.f32 %v2405, %v2420
    %v2427 = vadd.f32 %v2406, %v2420
    %v2428 = vadd.f32 %v2407, %v2420
    %v2429 = vadd.f32 %v2408, %v2420
    %v2430 = vadd.f32 %v2409, %v2420
    %v2431 = vadd.f32 %v2410, %v2420
    %v2432 = vadd.f32 %v2411, %v2420
    %v2433 = vadd.f32 %v2412, %v2420
    %v2434 = vadd.f32 %v2413, %v2420
    %v2435 = vadd.f32 %v2414, %v2420
    %v2436 = vmax.f32 %v2422, 0.0
    %v2437 = vmax.f32 %v2423, 0.0
    %v2438 = vmax.f32 %v2424, 0.0
    %v2439 = vmax.f32 %v2425, 0.0
    %v2440 = vmax.f32 %v2426, 0.0
    %v2441 = vmax.f32 %v2427, 0.0
    %v2442 = vmax.f32 %v2428, 0.0
    %v2443 = vmax.f32 %v2429, 0.0
    %v2444 = vmax.f32 %v2430, 0.0
    %v2445 = vmax.f32 %v2431, 0.0
    %v2446 = vmax.f32 %v2432, 0.0
    %v2447 = vmax.f32 %v2433, 0.0
    %v2448 = vmax.f32 %v2434, 0.0
    %v2449 = vmax.f32 %v2435, 0.0
    %v2450 = vpack.c.bf16 %v2437, %v2436
    %v2451 = vpack.c.bf16 %v2439, %v2438
    %v2452 = vpack.c.bf16 %v2441, %v2440
    %v2453 = vpack.c.bf16 %v2443, %v2442
    %v2454 = vpack.c.bf16 %v2445, %v2444
    %v2455 = vpack.c.bf16 %v2447, %v2446
    %v2456 = vpack.c.bf16 %v2449, %v2448
    %2457 = vst.msk [vmem:[#allocation4] sm:$0xff] %vm85, %v2450
    %2458 = vst.msk [vmem:[#allocation4 + $0x8] sm:$0xff] %vm85, %v2451
    %2459 = vst.msk [vmem:[#allocation4 + $0x10] sm:$0xff] %vm85, %v2452
    %2460 = vst.msk [vmem:[#allocation4 + $0x18] sm:$0xff] %vm85, %v2453
    %2461 = vst.msk [vmem:[#allocation4 + $0x20] sm:$0xff] %vm85, %v2454
    %2462 = vst.msk [vmem:[#allocation4 + $0x28] sm:$0xff] %vm85, %v2455
    %2463 = vst.msk [vmem:[#allocation4 + $0x30] sm:$0xff] %vm85, %v2456
    %v2464 = vld [vmem:[#allocation4] sm:$0xff]
    %v2465 = vld [vmem:[#allocation4 + $0x8] sm:$0xff]
    %v2466 = vld [vmem:[#allocation4 + $0x10] sm:$0xff]
    %v2467 = vld [vmem:[#allocation4 + $0x18] sm:$0xff]
    %v2468 = vld [vmem:[#allocation4 + $0x20] sm:$0xff]
    %v2469 = vld [vmem:[#allocation4 + $0x28] sm:$0xff]
    %v2470 = vld [vmem:[#allocation8] sm:$0xf]
    %v2471 = vld [vmem:[#allocation8 + $0x4] sm:$0xf]
    %v2472 = vld [vmem:[#allocation8 + $0x8] sm:$0xf]
    %v2473 = vld [vmem:[#allocation8 + $0xc] sm:$0xf]
    %v2474 = vld [vmem:[#allocation4 + $0x30] sm:$0x1]
    %s2475 = scalar_lea.vmem [#allocation8], 16
    %v2476 = vld [vmem:[%s2475] sm:$0xf]
    %v2477 = vld [vmem:[%s2475 + $0x4] sm:$0xf]
    %v2478 = vld [vmem:[%s2475 + $0x8] sm:$0xf]
    %v2479 = vld [vmem:[%s2475 + $0xc] sm:$0xf]
    %v2481 = vshrl.u32 %v2464, 16
    %v2483 = vshll.u32 %v2464, 16
    %v2485 = vrot.slane %v2483, 1
    %v2486 = vor.u32 %v2481, %v2485
    %v2488 = vshll.u32 %v2465, 16
    %v2490 = vrot.slane %v2488, 1
    %v2491 = vsel %vm196, %v2486, %v2490
    %v2492 = vshrl.u32 %v2465, 16
    %v2494 = vor.u32 %v2492, %v2490
    %v2496 = vshll.u32 %v2466, 16
    %v2498 = vrot.slane %v2496, 1
    %v2499 = vsel %vm196, %v2494, %v2498
    %v2500 = vshrl.u32 %v2466, 16
    %v2502 = vor.u32 %v2500, %v2498
    %v2504 = vshll.u32 %v2467, 16
    %v2506 = vrot.slane %v2504, 1
    %v2507 = vsel %vm196, %v2502, %v2506
    %v2508 = vshrl.u32 %v2467, 16
    %v2510 = vor.u32 %v2508, %v2506
    %v2512 = vshll.u32 %v2468, 16
    %v2514 = vrot.slane %v2512, 1
    %v2515 = vsel %vm196, %v2510, %v2514
    %v2516 = vshrl.u32 %v2468, 16
    %v2518 = vor.u32 %v2516, %v2514
    %v2520 = vshll.u32 %v2469, 16
    %v2522 = vrot.slane %v2520, 1
    %v2523 = vsel %vm196, %v2518, %v2522
    %v2524 = vshrl.u32 %v2469, 16
    %v2526 = vor.u32 %v2524, %v2522
    %v2528 = vshll.u32 %v2474, 16
    %v2530 = vrot.slane %v2528, 1
    %v2531 = vsel %vm196, %v2526, %v2530
    %v2536 = vunpack.c.l.b16 %v2476
    %v2537 = vunpack.c.l.b16 %v2477
    %v2538 = vunpack.c.l.b16 %v2478
    %v2539 = vunpack.c.l.b16 %v2479
    %v2540 = vpack.c.b16 %v2537, %v2536
    %v2541 = vpack.c.b16 %v2539, %v2538
    %v2545 = vsel %vm85, %v2491, 0
    %v2548 = vsel %vm85, %v2499, 0
    %v2551 = vsel %vm85, %v2507, 0
    %v2554 = vsel %vm85, %v2515, 0
    %v2557 = vsel %vm85, %v2523, 0
    %v2560 = vsel %vm85, %v2531, 0
    %2562 = vmatprep.subr.bf16.mxu0 0
    %2563 = vmatpush1.bf16.msra.mxu0 %v2540
    %2564 = vmatprep.subr.bf16.mxu0 0
    %2565 = vmatpush1.bf16.msra.mxu0 %v2541
    %2566 = vmatprep.subr.bf16.mxu0 0
    %2567 = vmatpush1.bf16.msra.mxu0 0
    %2568 = vmatprep.subr.bf16.mxu0 0
    %2569 = vmatpush1.bf16.msra.mxu0 0
    %2570 = vmatprep.subr.bf16.mxu0 0
    %2571 = vmatpush1.bf16.msra.mxu0 0
    %2572 = vmatprep.subr.bf16.mxu0 0
    %2573 = vmatpush1.bf16.msra.mxu0 0
    %2574 = vmatprep.subr.bf16.mxu0 0
    %2575 = vmatpush1.bf16.msra.mxu0 0
    %2576 = vmatprep.subr.bf16.mxu0 0
    %2577 = vmatpush1.bf16.msra.mxu0 0
    %2578 = vmatprep.subr.bf16.mxu0 0
    %2579 = vmatpush1.bf16.msra.mxu0 0
    %2580 = vmatprep.subr.bf16.mxu0 0
    %2581 = vmatpush1.bf16.msra.mxu0 0
    %2582 = vmatprep.subr.bf16.mxu0 0
    %2583 = vmatpush1.bf16.msra.mxu0 0
    %2584 = vmatprep.subr.bf16.mxu0 0
    %2585 = vmatpush1.bf16.msra.mxu0 0
    %2586 = vmatprep.subr.bf16.mxu0 0
    %2587 = vmatpush1.bf16.msra.mxu0 0
    %2588 = vmatprep.subr.bf16.mxu0 0
    %2589 = vmatpush1.bf16.msra.mxu0 0
    %2590 = vmatprep.subr.bf16.mxu0 0
    %2591 = vmatpush1.bf16.msra.mxu0 0
    %2592 = vmatprep.subr.bf16.mxu0 0
    %2593 = vmatpush1.bf16.msra.mxu0 0
    %2594 = vmatprep.mubr.bf16.mxu0 0
    %2595 = vmatmul.mubr.bf16.gmra.mrb[0].mxu0 %v2545
    %v2596 = vpop.f32.mrb[0].mxu0
    %v2597 = vadd.f32 0.0, %v2596
    %v2598 = vpop.f32.mrb[0].mxu0
    %v2599 = vpop.f32.mrb[0].mxu0
    %v2600 = vadd.f32 0.0, %v2599
    %v2601 = vpop.f32.mrb[0].mxu0
    %2602 = vmatprep.mubr.bf16.mxu0 0
    %2603 = vmatmul.mubr.bf16.gmra.mrb[0].mxu0 %v2548
    %v2604 = vpop.f32.mrb[0].mxu0
    %v2605 = vadd.f32 0.0, %v2604
    %v2606 = vpop.f32.mrb[0].mxu0
    %v2607 = vpop.f32.mrb[0].mxu0
    %v2608 = vadd.f32 0.0, %v2607
    %v2609 = vpop.f32.mrb[0].mxu0
    %2610 = vmatprep.mubr.bf16.mxu0 0
    %2611 = vmatmul.mubr.bf16.gmra.mrb[0].mxu0 %v2551
    %v2612 = vpop.f32.mrb[0].mxu0
    %v2613 = vadd.f32 0.0, %v2612
    %v2614 = vpop.f32.mrb[0].mxu0
    %v2615 = vpop.f32.mrb[0].mxu0
    %v2616 = vadd.f32 0.0, %v2615
    %v2617 = vpop.f32.mrb[0].mxu0
    %2618 = vmatprep.mubr.bf16.mxu0 0
    %2619 = vmatmul.mubr.bf16.gmra.mrb[0].mxu0 %v2554
    %v2620 = vpop.f32.mrb[0].mxu0
    %v2621 = vadd.f32 0.0, %v2620
    %v2622 = vpop.f32.mrb[0].mxu0
    %v2623 = vpop.f32.mrb[0].mxu0
    %v2624 = vadd.f32 0.0, %v2623
    %v2625 = vpop.f32.mrb[0].mxu0
    %2626 = vmatprep.mubr.bf16.mxu0 0
    %2627 = vmatmul.mubr.bf16.gmra.mrb[0].mxu0 %v2557
    %v2628 = vpop.f32.mrb[0].mxu0
    %v2629 = vadd.f32 0.0, %v2628
    %v2630 = vpop.f32.mrb[0].mxu0
    %v2631 = vpop.f32.mrb[0].mxu0
    %v2632 = vadd.f32 0.0, %v2631
    %v2633 = vpop.f32.mrb[0].mxu0
    %2634 = vmatprep.mubr.bf16.mxu0 0
    %2635 = vmatmul.mubr.bf16.gmra.mrb[0].mxu0 %v2560
    %v2636 = vpop.f32.mrb[0].mxu0
    %v2637 = vadd.f32 0.0, %v2636
    %v2638 = vpop.f32.mrb[0].mxu0
    %v2639 = vpop.f32.mrb[0].mxu0
    %v2640 = vadd.f32 0.0, %v2639
    %v2641 = vpop.f32.mrb[0].mxu0
    %2642 = vdwg.mxu0
    %v2647 = vunpack.c.l.b16 %v2470
    %v2648 = vunpack.c.l.b16 %v2471
    %v2649 = vunpack.c.l.b16 %v2472
    %v2650 = vunpack.c.l.b16 %v2473
    %v2651 = vpack.c.b16 %v2648, %v2647
    %v2652 = vpack.c.b16 %v2650, %v2649
    %v2655 = vsel %vm85, %v2464, 0
    %v2657 = vsel %vm85, %v2465, 0
    %v2659 = vsel %vm85, %v2466, 0
    %v2661 = vsel %vm85, %v2467, 0
    %v2663 = vsel %vm85, %v2468, 0
    %v2665 = vsel %vm85, %v2469, 0
    %2667 = vmatprep.subr.bf16.mxu0 0
    %2668 = vmatpush1.bf16.msra.mxu0 %v2651
    %2669 = vmatprep.subr.bf16.mxu0 0
    %2670 = vmatpush1.bf16.msra.mxu0 %v2652
    %2671 = vmatprep.subr.bf16.mxu0 0
    %2672 = vmatpush1.bf16.msra.mxu0 0
    %2673 = vmatprep.subr.bf16.mxu0 0
    %2674 = vmatpush1.bf16.msra.mxu0 0
    %2675 = vmatprep.subr.bf16.mxu0 0
    %2676 = vmatpush1.bf16.msra.mxu0 0
    %2677 = vmatprep.subr.bf16.mxu0 0
    %2678 = vmatpush1.bf16.msra.mxu0 0
    %2679 = vmatprep.subr.bf16.mxu0 0
    %2680 = vmatpush1.bf16.msra.mxu0 0
    %2681 = vmatprep.subr.bf16.mxu0 0
    %2682 = vmatpush1.bf16.msra.mxu0 0
    %2683 = vmatprep.subr.bf16.mxu0 0
    %2684 = vmatpush1.bf16.msra.mxu0 0
    %2685 = vmatprep.subr.bf16.mxu0 0
    %2686 = vmatpush1.bf16.msra.mxu0 0
    %2687 = vmatprep.subr.bf16.mxu0 0
    %2688 = vmatpush1.bf16.msra.mxu0 0
    %2689 = vmatprep.subr.bf16.mxu0 0
    %2690 = vmatpush1.bf16.msra.mxu0 0
    %2691 = vmatprep.subr.bf16.mxu0 0
    %2692 = vmatpush1.bf16.msra.mxu0 0
    %2693 = vmatprep.subr.bf16.mxu0 0
    %2694 = vmatpush1.bf16.msra.mxu0 0
    %2695 = vmatprep.subr.bf16.mxu0 0
    %2696 = vmatpush1.bf16.msra.mxu0 0
    %2697 = vmatprep.subr.bf16.mxu0 0
    %2698 = vmatpush1.bf16.msra.mxu0 0
    %2699 = vmatprep.mubr.bf16.mxu0 0
    %2700 = vmatmul.mubr.bf16.gmra.mrb[0].mxu0 %v2655
    %v2701 = vpop.f32.mrb[0].mxu0
    %v2702 = vadd.f32 %v2597, %v2701
    %v2703 = vpop.f32.mrb[0].mxu0
    %v2704 = vpop.f32.mrb[0].mxu0
    %v2705 = vadd.f32 %v2600, %v2704
    %v2706 = vpop.f32.mrb[0].mxu0
    %2707 = vmatprep.mubr.bf16.mxu0 0
    %2708 = vmatmul.mubr.bf16.gmra.mrb[0].mxu0 %v2657
    %v2709 = vpop.f32.mrb[0].mxu0
    %v2710 = vadd.f32 %v2605, %v2709
    %v2711 = vpop.f32.mrb[0].mxu0
    %v2712 = vpop.f32.mrb[0].mxu0
    %v2713 = vadd.f32 %v2608, %v2712
    %v2714 = vpop.f32.mrb[0].mxu0
    %2715 = vmatprep.mubr.bf16.mxu0 0
    %2716 = vmatmul.mubr.bf16.gmra.mrb[0].mxu0 %v2659
    %v2717 = vpop.f32.mrb[0].mxu0
    %v2718 = vadd.f32 %v2613, %v2717
    %v2719 = vpop.f32.mrb[0].mxu0
    %v2720 = vpop.f32.mrb[0].mxu0
    %v2721 = vadd.f32 %v2616, %v2720
    %v2722 = vpop.f32.mrb[0].mxu0
    %2723 = vmatprep.mubr.bf16.mxu0 0
    %2724 = vmatmul.mubr.bf16.gmra.mrb[0].mxu0 %v2661
    %v2725 = vpop.f32.mrb[0].mxu0
    %v2726 = vadd.f32 %v2621, %v2725
    %v2727 = vpop.f32.mrb[0].mxu0
    %v2728 = vpop.f32.mrb[0].mxu0
    %v2729 = vadd.f32 %v2624, %v2728
    %v2730 = vpop.f32.mrb[0].mxu0
    %2731 = vmatprep.mubr.bf16.mxu0 0
    %2732 = vmatmul.mubr.bf16.gmra.mrb[0].mxu0 %v2663
    %v2733 = vpop.f32.mrb[0].mxu0
    %v2734 = vadd.f32 %v2629, %v2733
    %v2735 = vpop.f32.mrb[0].mxu0
    %v2736 = vpop.f32.mrb[0].mxu0
    %v2737 = vadd.f32 %v2632, %v2736
    %v2738 = vpop.f32.mrb[0].mxu0
    %2739 = vmatprep.mubr.bf16.mxu0 0
    %2740 = vmatmul.mubr.bf16.gmra.mrb[0].mxu0 %v2665
    %v2741 = vpop.f32.mrb[0].mxu0
    %v2742 = vadd.f32 %v2637, %v2741
    %v2743 = vpop.f32.mrb[0].mxu0
    %v2744 = vpop.f32.mrb[0].mxu0
    %v2745 = vadd.f32 %v2640, %v2744
    %v2746 = vpop.f32.mrb[0].mxu0
    %2747 = vdwg.mxu0
    %v2748 = vld [vmem:[#allocation4] sm:$0xfe]
    %s2749 = scalar_lea.vmem [#allocation8], 32
    %v2750 = vld [vmem:[%s2749] sm:$0xf]
    %v2751 = vld [vmem:[%s2749 + $0x4] sm:$0xf]
    %v2752 = vld [vmem:[%s2749 + $0x8] sm:$0xf]
    %v2753 = vld [vmem:[%s2749 + $0xc] sm:$0xf]
    %v2761 = vrot.slane %v2748, 1
    %v2762 = vrot.slane %v2465, 1
    %v2763 = vsel %vm1262, %v2761, %v2762
    %v2764 = vrot.slane %v2466, 1
    %v2765 = vsel %vm1262, %v2762, %v2764
    %v2766 = vrot.slane %v2467, 1
    %v2767 = vsel %vm1262, %v2764, %v2766
    %v2768 = vrot.slane %v2468, 1
    %v2769 = vsel %vm1262, %v2766, %v2768
    %v2770 = vrot.slane %v2469, 1
    %v2771 = vsel %vm1262, %v2768, %v2770
    %v2772 = vrot.slane %v2474, 1
    %v2773 = vsel %vm1262, %v2770, %v2772
    %v2778 = vunpack.c.l.b16 %v2750
    %v2779 = vunpack.c.l.b16 %v2751
    %v2780 = vunpack.c.l.b16 %v2752
    %v2781 = vunpack.c.l.b16 %v2753
    %v2782 = vpack.c.b16 %v2779, %v2778
    %v2783 = vpack.c.b16 %v2781, %v2780
    %v2787 = vsel %vm85, %v2763, 0
    %v2790 = vsel %vm85, %v2765, 0
    %v2793 = vsel %vm85, %v2767, 0
    %v2796 = vsel %vm85, %v2769, 0
    %v2799 = vsel %vm85, %v2771, 0
    %v2802 = vsel %vm85, %v2773, 0
    %2804 = vmatprep.subr.bf16.mxu0 0
    %2805 = vmatpush1.bf16.msra.mxu0 %v2782
    %2806 = vmatprep.subr.bf16.mxu0 0
    %2807 = vmatpush1.bf16.msra.mxu0 %v2783
    %2808 = vmatprep.subr.bf16.mxu0 0
    %2809 = vmatpush1.bf16.msra.mxu0 0
    %2810 = vmatprep.subr.bf16.mxu0 0
    %2811 = vmatpush1.bf16.msra.mxu0 0
    %2812 = vmatprep.subr.bf16.mxu0 0
    %2813 = vmatpush1.bf16.msra.mxu0 0
    %2814 = vmatprep.subr.bf16.mxu0 0
    %2815 = vmatpush1.bf16.msra.mxu0 0
    %2816 = vmatprep.subr.bf16.mxu0 0
    %2817 = vmatpush1.bf16.msra.mxu0 0
    %2818 = vmatprep.subr.bf16.mxu0 0
    %2819 = vmatpush1.bf16.msra.mxu0 0
    %2820 = vmatprep.subr.bf16.mxu0 0
    %2821 = vmatpush1.bf16.msra.mxu0 0
    %2822 = vmatprep.subr.bf16.mxu0 0
    %2823 = vmatpush1.bf16.msra.mxu0 0
    %2824 = vmatprep.subr.bf16.mxu0 0
    %2825 = vmatpush1.bf16.msra.mxu0 0
    %2826 = vmatprep.subr.bf16.mxu0 0
    %2827 = vmatpush1.bf16.msra.mxu0 0
    %2828 = vmatprep.subr.bf16.mxu0 0
    %2829 = vmatpush1.bf16.msra.mxu0 0
    %2830 = vmatprep.subr.bf16.mxu0 0
    %2831 = vmatpush1.bf16.msra.mxu0 0
    %2832 = vmatprep.subr.bf16.mxu0 0
    %2833 = vmatpush1.bf16.msra.mxu0 0
    %2834 = vmatprep.subr.bf16.mxu0 0
    %2835 = vmatpush1.bf16.msra.mxu0 0
    %2836 = vmatprep.mubr.bf16.mxu0 0
    %2837 = vmatmul.mubr.bf16.gmra.mrb[0].mxu0 %v2787
    %v2838 = vpop.f32.mrb[0].mxu0
    %v2839 = vadd.f32 0.0, %v2838
    %v2840 = vpop.f32.mrb[0].mxu0
    %v2841 = vpop.f32.mrb[0].mxu0
    %v2842 = vadd.f32 0.0, %v2841
    %v2843 = vpop.f32.mrb[0].mxu0
    %2844 = vmatprep.mubr.bf16.mxu0 0
    %2845 = vmatmul.mubr.bf16.gmra.mrb[0].mxu0 %v2790
    %v2846 = vpop.f32.mrb[0].mxu0
    %v2847 = vadd.f32 0.0, %v2846
    %v2848 = vpop.f32.mrb[0].mxu0
    %v2849 = vpop.f32.mrb[0].mxu0
    %v2850 = vadd.f32 0.0, %v2849
    %v2851 = vpop.f32.mrb[0].mxu0
    %2852 = vmatprep.mubr.bf16.mxu0 0
    %2853 = vmatmul.mubr.bf16.gmra.mrb[0].mxu0 %v2793
    %v2854 = vpop.f32.mrb[0].mxu0
    %v2855 = vadd.f32 0.0, %v2854
    %v2856 = vpop.f32.mrb[0].mxu0
    %v2857 = vpop.f32.mrb[0].mxu0
    %v2858 = vadd.f32 0.0, %v2857
    %v2859 = vpop.f32.mrb[0].mxu0
    %2860 = vmatprep.mubr.bf16.mxu0 0
    %2861 = vmatmul.mubr.bf16.gmra.mrb[0].mxu0 %v2796
    %v2862 = vpop.f32.mrb[0].mxu0
    %v2863 = vadd.f32 0.0, %v2862
    %v2864 = vpop.f32.mrb[0].mxu0
    %v2865 = vpop.f32.mrb[0].mxu0
    %v2866 = vadd.f32 0.0, %v2865
    %v2867 = vpop.f32.mrb[0].mxu0
    %2868 = vmatprep.mubr.bf16.mxu0 0
    %2869 = vmatmul.mubr.bf16.gmra.mrb[0].mxu0 %v2799
    %v2870 = vpop.f32.mrb[0].mxu0
    %v2871 = vadd.f32 0.0, %v2870
    %v2872 = vpop.f32.mrb[0].mxu0
    %v2873 = vpop.f32.mrb[0].mxu0
    %v2874 = vadd.f32 0.0, %v2873
    %v2875 = vpop.f32.mrb[0].mxu0
    %2876 = vmatprep.mubr.bf16.mxu0 0
    %2877 = vmatmul.mubr.bf16.gmra.mrb[0].mxu0 %v2802
    %v2878 = vpop.f32.mrb[0].mxu0
    %v2879 = vadd.f32 0.0, %v2878
    %v2880 = vpop.f32.mrb[0].mxu0
    %v2881 = vpop.f32.mrb[0].mxu0
    %v2882 = vadd.f32 0.0, %v2881
    %v2883 = vpop.f32.mrb[0].mxu0
    %2884 = vdwg.mxu0
    %v2885 = vadd.f32 %v2702, %v2839
    %v2886 = vadd.f32 %v2705, %v2842
    %v2887 = vadd.f32 %v2710, %v2847
    %v2888 = vadd.f32 %v2713, %v2850
    %v2889 = vadd.f32 %v2718, %v2855
    %v2890 = vadd.f32 %v2721, %v2858
    %v2891 = vadd.f32 %v2726, %v2863
    %v2892 = vadd.f32 %v2729, %v2866
    %v2893 = vadd.f32 %v2734, %v2871
    %v2894 = vadd.f32 %v2737, %v2874
    %v2895 = vadd.f32 %v2742, %v2879
    %v2896 = vadd.f32 %v2745, %v2882
    %v2897 = vld [vmem:[#allocation4] sm:$0xf0]
    %v2898 = vld [vmem:[#allocation4 + $0x30] sm:$0xf]
    %s2899 = scalar_lea.vmem [#allocation8], 48
    %v2900 = vld [vmem:[%s2899] sm:$0xf]
    %v2901 = vld [vmem:[%s2899 + $0x4] sm:$0xf]
    %v2902 = vld [vmem:[%s2899 + $0x8] sm:$0xf]
    %v2903 = vld [vmem:[%s2899 + $0xc] sm:$0xf]
    %v2906 = vrot.slane %v2897, 4
    %v2907 = vrot.slane %v2465, 4
    %v2908 = vsel %vm525, %v2906, %v2907
    %v2909 = vrot.slane %v2466, 4
    %v2910 = vsel %vm525, %v2907, %v2909
    %v2911 = vrot.slane %v2467, 4
    %v2912 = vsel %vm525, %v2909, %v2911
    %v2913 = vrot.slane %v2468, 4
    %v2914 = vsel %vm525, %v2911, %v2913
    %v2915 = vrot.slane %v2469, 4
    %v2916 = vsel %vm525, %v2913, %v2915
    %v2917 = vrot.slane %v2898, 4
    %v2918 = vsel %vm525, %v2915, %v2917
    %v2923 = vunpack.c.l.b16 %v2900
    %v2924 = vunpack.c.l.b16 %v2901
    %v2925 = vunpack.c.l.b16 %v2902
    %v2926 = vunpack.c.l.b16 %v2903
    %v2927 = vpack.c.b16 %v2924, %v2923
    %v2928 = vpack.c.b16 %v2926, %v2925
    %v2932 = vsel %vm85, %v2908, 0
    %v2935 = vsel %vm85, %v2910, 0
    %v2938 = vsel %vm85, %v2912, 0
    %v2941 = vsel %vm85, %v2914, 0
    %v2944 = vsel %vm85, %v2916, 0
    %v2947 = vsel %vm85, %v2918, 0
    %2949 = vmatprep.subr.bf16.mxu0 0
    %2950 = vmatpush1.bf16.msra.mxu0 %v2927
    %2951 = vmatprep.subr.bf16.mxu0 0
    %2952 = vmatpush1.bf16.msra.mxu0 %v2928
    %2953 = vmatprep.subr.bf16.mxu0 0
    %2954 = vmatpush1.bf16.msra.mxu0 0
    %2955 = vmatprep.subr.bf16.mxu0 0
    %2956 = vmatpush1.bf16.msra.mxu0 0
    %2957 = vmatprep.subr.bf16.mxu0 0
    %2958 = vmatpush1.bf16.msra.mxu0 0
    %2959 = vmatprep.subr.bf16.mxu0 0
    %2960 = vmatpush1.bf16.msra.mxu0 0
    %2961 = vmatprep.subr.bf16.mxu0 0
    %2962 = vmatpush1.bf16.msra.mxu0 0
    %2963 = vmatprep.subr.bf16.mxu0 0
    %2964 = vmatpush1.bf16.msra.mxu0 0
    %2965 = vmatprep.subr.bf16.mxu0 0
    %2966 = vmatpush1.bf16.msra.mxu0 0
    %2967 = vmatprep.subr.bf16.mxu0 0
    %2968 = vmatpush1.bf16.msra.mxu0 0
    %2969 = vmatprep.subr.bf16.mxu0 0
    %2970 = vmatpush1.bf16.msra.mxu0 0
    %2971 = vmatprep.subr.bf16.mxu0 0
    %2972 = vmatpush1.bf16.msra.mxu0 0
    %2973 = vmatprep.subr.bf16.mxu0 0
    %2974 = vmatpush1.bf16.msra.mxu0 0
    %2975 = vmatprep.subr.bf16.mxu0 0
    %2976 = vmatpush1.bf16.msra.mxu0 0
    %2977 = vmatprep.subr.bf16.mxu0 0
    %2978 = vmatpush1.bf16.msra.mxu0 0
    %2979 = vmatprep.subr.bf16.mxu0 0
    %2980 = vmatpush1.bf16.msra.mxu0 0
    %2981 = vmatprep.mubr.bf16.mxu0 0
    %2982 = vmatmul.mubr.bf16.gmra.mrb[0].mxu0 %v2932
    %v2983 = vpop.f32.mrb[0].mxu0
    %v2984 = vadd.f32 0.0, %v2983
    %v2985 = vpop.f32.mrb[0].mxu0
    %v2986 = vpop.f32.mrb[0].mxu0
    %v2987 = vadd.f32 0.0, %v2986
    %v2988 = vpop.f32.mrb[0].mxu0
    %2989 = vmatprep.mubr.bf16.mxu0 0
    %2990 = vmatmul.mubr.bf16.gmra.mrb[0].mxu0 %v2935
    %v2991 = vpop.f32.mrb[0].mxu0
    %v2992 = vadd.f32 0.0, %v2991
    %v2993 = vpop.f32.mrb[0].mxu0
    %v2994 = vpop.f32.mrb[0].mxu0
    %v2995 = vadd.f32 0.0, %v2994
    %v2996 = vpop.f32.mrb[0].mxu0
    %2997 = vmatprep.mubr.bf16.mxu0 0
    %2998 = vmatmul.mubr.bf16.gmra.mrb[0].mxu0 %v2938
    %v2999 = vpop.f32.mrb[0].mxu0
    %v3000 = vadd.f32 0.0, %v2999
    %v3001 = vpop.f32.mrb[0].mxu0
    %v3002 = vpop.f32.mrb[0].mxu0
    %v3003 = vadd.f32 0.0, %v3002
    %v3004 = vpop.f32.mrb[0].mxu0
    %3005 = vmatprep.mubr.bf16.mxu0 0
    %3006 = vmatmul.mubr.bf16.gmra.mrb[0].mxu0 %v2941
    %v3007 = vpop.f32.mrb[0].mxu0
    %v3008 = vadd.f32 0.0, %v3007
    %v3009 = vpop.f32.mrb[0].mxu0
    %v3010 = vpop.f32.mrb[0].mxu0
    %v3011 = vadd.f32 0.0, %v3010
    %v3012 = vpop.f32.mrb[0].mxu0
    %3013 = vmatprep.mubr.bf16.mxu0 0
    %3014 = vmatmul.mubr.bf16.gmra.mrb[0].mxu0 %v2944
    %v3015 = vpop.f32.mrb[0].mxu0
    %v3016 = vadd.f32 0.0, %v3015
    %v3017 = vpop.f32.mrb[0].mxu0
    %v3018 = vpop.f32.mrb[0].mxu0
    %v3019 = vadd.f32 0.0, %v3018
    %v3020 = vpop.f32.mrb[0].mxu0
    %3021 = vmatprep.mubr.bf16.mxu0 0
    %3022 = vmatmul.mubr.bf16.gmra.mrb[0].mxu0 %v2947
    %v3023 = vpop.f32.mrb[0].mxu0
    %v3024 = vadd.f32 0.0, %v3023
    %v3025 = vpop.f32.mrb[0].mxu0
    %v3026 = vpop.f32.mrb[0].mxu0
    %v3027 = vadd.f32 0.0, %v3026
    %v3028 = vpop.f32.mrb[0].mxu0
    %3029 = vdwg.mxu0
    %v3030 = vadd.f32 %v2885, %v2984
    %v3031 = vadd.f32 %v2886, %v2987
    %v3032 = vadd.f32 %v2887, %v2992
    %v3033 = vadd.f32 %v2888, %v2995
    %v3034 = vadd.f32 %v2889, %v3000
    %v3035 = vadd.f32 %v2890, %v3003
    %v3036 = vadd.f32 %v2891, %v3008
    %v3037 = vadd.f32 %v2892, %v3011
    %v3038 = vadd.f32 %v2893, %v3016
    %v3039 = vadd.f32 %v2894, %v3019
    %v3040 = vadd.f32 %v2895, %v3024
    %v3041 = vadd.f32 %v2896, %v3027
    %v3042 = vld [vmem:[#allocation4 + $0x30] sm:$0x1f]
    %s3043 = scalar_lea.vmem [#allocation8], 64
    %v3044 = vld [vmem:[%s3043] sm:$0xf]
    %v3045 = vld [vmem:[%s3043 + $0x4] sm:$0xf]
    %v3046 = vld [vmem:[%s3043 + $0x8] sm:$0xf]
    %v3047 = vld [vmem:[%s3043 + $0xc] sm:$0xf]
    %v3049 = vshrl.u32 %v2897, 16
    %v3051 = vrot.slane %v3049, 4
    %v3052 = vshll.u32 %v2897, 16
    %v3054 = vrot.slane %v3052, 5
    %v3055 = vor.u32 %v3051, %v3054
    %v3056 = vrot.slane %v2492, 4
    %v3057 = vrot.slane %v2488, 5
    %v3058 = vor.u32 %v3056, %v3057
    %v3059 = vsel %vm690, %v3055, %v3058
    %v3060 = vrot.slane %v2500, 4
    %v3061 = vrot.slane %v2496, 5
    %v3062 = vor.u32 %v3060, %v3061
    %v3063 = vsel %vm690, %v3058, %v3062
    %v3064 = vrot.slane %v2508, 4
    %v3065 = vrot.slane %v2504, 5
    %v3066 = vor.u32 %v3064, %v3065
    %v3067 = vsel %vm690, %v3062, %v3066
    %v3068 = vrot.slane %v2516, 4
    %v3069 = vrot.slane %v2512, 5
    %v3070 = vor.u32 %v3068, %v3069
    %v3071 = vsel %vm690, %v3066, %v3070
    %v3072 = vrot.slane %v2524, 4
    %v3073 = vrot.slane %v2520, 5
    %v3074 = vor.u32 %v3072, %v3073
    %v3075 = vsel %vm690, %v3070, %v3074
    %v3077 = vshrl.u32 %v3042, 16
    %v3079 = vrot.slane %v3077, 4
    %v3080 = vshll.u32 %v3042, 16
    %v3082 = vrot.slane %v3080, 5
    %v3083 = vor.u32 %v3079, %v3082
    %v3084 = vsel %vm690, %v3074, %v3083
    %v3089 = vunpack.c.l.b16 %v3044
    %v3090 = vunpack.c.l.b16 %v3045
    %v3091 = vunpack.c.l.b16 %v3046
    %v3092 = vunpack.c.l.b16 %v3047
    %v3093 = vpack.c.b16 %v3090, %v3089
    %v3094 = vpack.c.b16 %v3092, %v3091
    %v3098 = vsel %vm85, %v3059, 0
    %v3101 = vsel %vm85, %v3063, 0
    %v3104 = vsel %vm85, %v3067, 0
    %v3107 = vsel %vm85, %v3071, 0
    %v3110 = vsel %vm85, %v3075, 0
    %v3113 = vsel %vm85, %v3084, 0
    %3115 = vmatprep.subr.bf16.mxu0 0
    %3116 = vmatpush1.bf16.msra.mxu0 %v3093
    %3117 = vmatprep.subr.bf16.mxu0 0
    %3118 = vmatpush1.bf16.msra.mxu0 %v3094
    %3119 = vmatprep.subr.bf16.mxu0 0
    %3120 = vmatpush1.bf16.msra.mxu0 0
    %3121 = vmatprep.subr.bf16.mxu0 0
    %3122 = vmatpush1.bf16.msra.mxu0 0
    %3123 = vmatprep.subr.bf16.mxu0 0
    %3124 = vmatpush1.bf16.msra.mxu0 0
    %3125 = vmatprep.subr.bf16.mxu0 0
    %3126 = vmatpush1.bf16.msra.mxu0 0
    %3127 = vmatprep.subr.bf16.mxu0 0
    %3128 = vmatpush1.bf16.msra.mxu0 0
    %3129 = vmatprep.subr.bf16.mxu0 0
    %3130 = vmatpush1.bf16.msra.mxu0 0
    %3131 = vmatprep.subr.bf16.mxu0 0
    %3132 = vmatpush1.bf16.msra.mxu0 0
    %3133 = vmatprep.subr.bf16.mxu0 0
    %3134 = vmatpush1.bf16.msra.mxu0 0
    %3135 = vmatprep.subr.bf16.mxu0 0
    %3136 = vmatpush1.bf16.msra.mxu0 0
    %3137 = vmatprep.subr.bf16.mxu0 0
    %3138 = vmatpush1.bf16.msra.mxu0 0
    %3139 = vmatprep.subr.bf16.mxu0 0
    %3140 = vmatpush1.bf16.msra.mxu0 0
    %3141 = vmatprep.subr.bf16.mxu0 0
    %3142 = vmatpush1.bf16.msra.mxu0 0
    %3143 = vmatprep.subr.bf16.mxu0 0
    %3144 = vmatpush1.bf16.msra.mxu0 0
    %3145 = vmatprep.subr.bf16.mxu0 0
    %3146 = vmatpush1.bf16.msra.mxu0 0
    %3147 = vmatprep.mubr.bf16.mxu0 0
    %3148 = vmatmul.mubr.bf16.gmra.mrb[0].mxu0 %v3098
    %v3149 = vpop.f32.mrb[0].mxu0
    %v3150 = vadd.f32 0.0, %v3149
    %v3151 = vpop.f32.mrb[0].mxu0
    %v3152 = vpop.f32.mrb[0].mxu0
    %v3153 = vadd.f32 0.0, %v3152
    %v3154 = vpop.f32.mrb[0].mxu0
    %3155 = vmatprep.mubr.bf16.mxu0 0
    %3156 = vmatmul.mubr.bf16.gmra.mrb[0].mxu0 %v3101
    %v3157 = vpop.f32.mrb[0].mxu0
    %v3158 = vadd.f32 0.0, %v3157
    %v3159 = vpop.f32.mrb[0].mxu0
    %v3160 = vpop.f32.mrb[0].mxu0
    %v3161 = vadd.f32 0.0, %v3160
    %v3162 = vpop.f32.mrb[0].mxu0
    %3163 = vmatprep.mubr.bf16.mxu0 0
    %3164 = vmatmul.mubr.bf16.gmra.mrb[0].mxu0 %v3104
    %v3165 = vpop.f32.mrb[0].mxu0
    %v3166 = vadd.f32 0.0, %v3165
    %v3167 = vpop.f32.mrb[0].mxu0
    %v3168 = vpop.f32.mrb[0].mxu0
    %v3169 = vadd.f32 0.0, %v3168
    %v3170 = vpop.f32.mrb[0].mxu0
    %3171 = vmatprep.mubr.bf16.mxu0 0
    %3172 = vmatmul.mubr.bf16.gmra.mrb[0].mxu0 %v3107
    %v3173 = vpop.f32.mrb[0].mxu0
    %v3174 = vadd.f32 0.0, %v3173
    %v3175 = vpop.f32.mrb[0].mxu0
    %v3176 = vpop.f32.mrb[0].mxu0
    %v3177 = vadd.f32 0.0, %v3176
    %v3178 = vpop.f32.mrb[0].mxu0
    %3179 = vmatprep.mubr.bf16.mxu0 0
    %3180 = vmatmul.mubr.bf16.gmra.mrb[0].mxu0 %v3110
    %v3181 = vpop.f32.mrb[0].mxu0
    %v3182 = vadd.f32 0.0, %v3181
    %v3183 = vpop.f32.mrb[0].mxu0
    %v3184 = vpop.f32.mrb[0].mxu0
    %v3185 = vadd.f32 0.0, %v3184
    %v3186 = vpop.f32.mrb[0].mxu0
    %3187 = vmatprep.mubr.bf16.mxu0 0
    %3188 = vmatmul.mubr.bf16.gmra.mrb[0].mxu0 %v3113
    %v3189 = vpop.f32.mrb[0].mxu0
    %v3190 = vadd.f32 0.0, %v3189
    %v3191 = vpop.f32.mrb[0].mxu0
    %v3192 = vpop.f32.mrb[0].mxu0
    %v3193 = vadd.f32 0.0, %v3192
    %v3194 = vpop.f32.mrb[0].mxu0
    %3195 = vdwg.mxu0
    %v3196 = vadd.f32 %v3030, %v3150
    %v3197 = vadd.f32 %v3031, %v3153
    %v3198 = vadd.f32 %v3032, %v3158
    %v3199 = vadd.f32 %v3033, %v3161
    %v3200 = vadd.f32 %v3034, %v3166
    %v3201 = vadd.f32 %v3035, %v3169
    %v3202 = vadd.f32 %v3036, %v3174
    %v3203 = vadd.f32 %v3037, %v3177
    %v3204 = vadd.f32 %v3038, %v3182
    %v3205 = vadd.f32 %v3039, %v3185
    %v3206 = vadd.f32 %v3040, %v3190
    %v3207 = vadd.f32 %v3041, %v3193
    %v3208 = vld [vmem:[#allocation4] sm:$0xe0]
    %s3209 = scalar_lea.vmem [#allocation8], 80
    %v3210 = vld [vmem:[%s3209] sm:$0xf]
    %v3211 = vld [vmem:[%s3209 + $0x4] sm:$0xf]
    %v3212 = vld [vmem:[%s3209 + $0x8] sm:$0xf]
    %v3213 = vld [vmem:[%s3209 + $0xc] sm:$0xf]
    %v3216 = vrot.slane %v3208, 5
    %v3217 = vrot.slane %v2465, 5
    %v3218 = vsel %vm1765, %v3216, %v3217
    %v3219 = vrot.slane %v2466, 5
    %v3220 = vsel %vm1765, %v3217, %v3219
    %v3221 = vrot.slane %v2467, 5
    %v3222 = vsel %vm1765, %v3219, %v3221
    %v3223 = vrot.slane %v2468, 5
    %v3224 = vsel %vm1765, %v3221, %v3223
    %v3225 = vrot.slane %v2469, 5
    %v3226 = vsel %vm1765, %v3223, %v3225
    %v3227 = vrot.slane %v3042, 5
    %v3228 = vsel %vm1765, %v3225, %v3227
    %v3233 = vunpack.c.l.b16 %v3210
    %v3234 = vunpack.c.l.b16 %v3211
    %v3235 = vunpack.c.l.b16 %v3212
    %v3236 = vunpack.c.l.b16 %v3213
    %v3237 = vpack.c.b16 %v3234, %v3233
    %v3238 = vpack.c.b16 %v3236, %v3235
    %v3242 = vsel %vm85, %v3218, 0
    %v3245 = vsel %vm85, %v3220, 0
    %v3248 = vsel %vm85, %v3222, 0
    %v3251 = vsel %vm85, %v3224, 0
    %v3254 = vsel %vm85, %v3226, 0
    %v3257 = vsel %vm85, %v3228, 0
    %3259 = vmatprep.subr.bf16.mxu0 0
    %3260 = vmatpush1.bf16.msra.mxu0 %v3237
    %3261 = vmatprep.subr.bf16.mxu0 0
    %3262 = vmatpush1.bf16.msra.mxu0 %v3238
    %3263 = vmatprep.subr.bf16.mxu0 0
    %3264 = vmatpush1.bf16.msra.mxu0 0
    %3265 = vmatprep.subr.bf16.mxu0 0
    %3266 = vmatpush1.bf16.msra.mxu0 0
    %3267 = vmatprep.subr.bf16.mxu0 0
    %3268 = vmatpush1.bf16.msra.mxu0 0
    %3269 = vmatprep.subr.bf16.mxu0 0
    %3270 = vmatpush1.bf16.msra.mxu0 0
    %3271 = vmatprep.subr.bf16.mxu0 0
    %3272 = vmatpush1.bf16.msra.mxu0 0
    %3273 = vmatprep.subr.bf16.mxu0 0
    %3274 = vmatpush1.bf16.msra.mxu0 0
    %3275 = vmatprep.subr.bf16.mxu0 0
    %3276 = vmatpush1.bf16.msra.mxu0 0
    %3277 = vmatprep.subr.bf16.mxu0 0
    %3278 = vmatpush1.bf16.msra.mxu0 0
    %3279 = vmatprep.subr.bf16.mxu0 0
    %3280 = vmatpush1.bf16.msra.mxu0 0
    %3281 = vmatprep.subr.bf16.mxu0 0
    %3282 = vmatpush1.bf16.msra.mxu0 0
    %3283 = vmatprep.subr.bf16.mxu0 0
    %3284 = vmatpush1.bf16.msra.mxu0 0
    %3285 = vmatprep.subr.bf16.mxu0 0
    %3286 = vmatpush1.bf16.msra.mxu0 0
    %3287 = vmatprep.subr.bf16.mxu0 0
    %3288 = vmatpush1.bf16.msra.mxu0 0
    %3289 = vmatprep.subr.bf16.mxu0 0
    %3290 = vmatpush1.bf16.msra.mxu0 0
    %3291 = vmatprep.mubr.bf16.mxu0 0
    %3292 = vmatmul.mubr.bf16.gmra.mrb[0].mxu0 %v3242
    %v3293 = vpop.f32.mrb[0].mxu0
    %v3294 = vadd.f32 0.0, %v3293
    %v3295 = vpop.f32.mrb[0].mxu0
    %v3296 = vpop.f32.mrb[0].mxu0
    %v3297 = vadd.f32 0.0, %v3296
    %v3298 = vpop.f32.mrb[0].mxu0
    %3299 = vmatprep.mubr.bf16.mxu0 0
    %3300 = vmatmul.mubr.bf16.gmra.mrb[0].mxu0 %v3245
    %v3301 = vpop.f32.mrb[0].mxu0
    %v3302 = vadd.f32 0.0, %v3301
    %v3303 = vpop.f32.mrb[0].mxu0
    %v3304 = vpop.f32.mrb[0].mxu0
    %v3305 = vadd.f32 0.0, %v3304
    %v3306 = vpop.f32.mrb[0].mxu0
    %3307 = vmatprep.mubr.bf16.mxu0 0
    %3308 = vmatmul.mubr.bf16.gmra.mrb[0].mxu0 %v3248
    %v3309 = vpop.f32.mrb[0].mxu0
    %v3310 = vadd.f32 0.0, %v3309
    %v3311 = vpop.f32.mrb[0].mxu0
    %v3312 = vpop.f32.mrb[0].mxu0
    %v3313 = vadd.f32 0.0, %v3312
    %v3314 = vpop.f32.mrb[0].mxu0
    %3315 = vmatprep.mubr.bf16.mxu0 0
    %3316 = vmatmul.mubr.bf16.gmra.mrb[0].mxu0 %v3251
    %v3317 = vpop.f32.mrb[0].mxu0
    %v3318 = vadd.f32 0.0, %v3317
    %v3319 = vpop.f32.mrb[0].mxu0
    %v3320 = vpop.f32.mrb[0].mxu0
    %v3321 = vadd.f32 0.0, %v3320
    %v3322 = vpop.f32.mrb[0].mxu0
    %3323 = vmatprep.mubr.bf16.mxu0 0
    %3324 = vmatmul.mubr.bf16.gmra.mrb[0].mxu0 %v3254
    %v3325 = vpop.f32.mrb[0].mxu0
    %v3326 = vadd.f32 0.0, %v3325
    %v3327 = vpop.f32.mrb[0].mxu0
    %v3328 = vpop.f32.mrb[0].mxu0
    %v3329 = vadd.f32 0.0, %v3328
    %v3330 = vpop.f32.mrb[0].mxu0
    %3331 = vmatprep.mubr.bf16.mxu0 0
    %3332 = vmatmul.mubr.bf16.gmra.mrb[0].mxu0 %v3257
    %v3333 = vpop.f32.mrb[0].mxu0
    %v3334 = vadd.f32 0.0, %v3333
    %v3335 = vpop.f32.mrb[0].mxu0
    %v3336 = vpop.f32.mrb[0].mxu0
    %v3337 = vadd.f32 0.0, %v3336
    %v3338 = vpop.f32.mrb[0].mxu0
    %3339 = vdwg.mxu0
    %v3340 = vadd.f32 %v3196, %v3294
    %v3341 = vadd.f32 %v3197, %v3297
    %v3342 = vadd.f32 %v3198, %v3302
    %v3343 = vadd.f32 %v3199, %v3305
    %v3344 = vadd.f32 %v3200, %v3310
    %v3345 = vadd.f32 %v3201, %v3313
    %v3346 = vadd.f32 %v3202, %v3318
    %v3347 = vadd.f32 %v3203, %v3321
    %v3348 = vadd.f32 %v3204, %v3326
    %v3349 = vadd.f32 %v3205, %v3329
    %v3350 = vadd.f32 %v3206, %v3334
    %v3351 = vadd.f32 %v3207, %v3337
    %v3352 = vld [vmem:[#allocation4 + $0x30] sm:$0xff]
    %s3353 = scalar_lea.vmem [#allocation8], 96
    %v3354 = vld [vmem:[%s3353] sm:$0xf]
    %v3355 = vld [vmem:[%s3353 + $0x4] sm:$0xf]
    %v3356 = vld [vmem:[%s3353 + $0x8] sm:$0xf]
    %v3357 = vld [vmem:[%s3353 + $0xc] sm:$0xf]
    %v3362 = vunpack.c.l.b16 %v3354
    %v3363 = vunpack.c.l.b16 %v3355
    %v3364 = vunpack.c.l.b16 %v3356
    %v3365 = vunpack.c.l.b16 %v3357
    %v3366 = vpack.c.b16 %v3363, %v3362
    %v3367 = vpack.c.b16 %v3365, %v3364
    %v3371 = vsel %vm85, %v3352, 0
    %3373 = vmatprep.subr.bf16.mxu0 0
    %3374 = vmatpush1.bf16.msra.mxu0 %v3366
    %3375 = vmatprep.subr.bf16.mxu0 0
    %3376 = vmatpush1.bf16.msra.mxu0 %v3367
    %3377 = vmatprep.subr.bf16.mxu0 0
    %3378 = vmatpush1.bf16.msra.mxu0 0
    %3379 = vmatprep.subr.bf16.mxu0 0
    %3380 = vmatpush1.bf16.msra.mxu0 0
    %3381 = vmatprep.subr.bf16.mxu0 0
    %3382 = vmatpush1.bf16.msra.mxu0 0
    %3383 = vmatprep.subr.bf16.mxu0 0
    %3384 = vmatpush1.bf16.msra.mxu0 0
    %3385 = vmatprep.subr.bf16.mxu0 0
    %3386 = vmatpush1.bf16.msra.mxu0 0
    %3387 = vmatprep.subr.bf16.mxu0 0
    %3388 = vmatpush1.bf16.msra.mxu0 0
    %3389 = vmatprep.subr.bf16.mxu0 0
    %3390 = vmatpush1.bf16.msra.mxu0 0
    %3391 = vmatprep.subr.bf16.mxu0 0
    %3392 = vmatpush1.bf16.msra.mxu0 0
    %3393 = vmatprep.subr.bf16.mxu0 0
    %3394 = vmatpush1.bf16.msra.mxu0 0
    %3395 = vmatprep.subr.bf16.mxu0 0
    %3396 = vmatpush1.bf16.msra.mxu0 0
    %3397 = vmatprep.subr.bf16.mxu0 0
    %3398 = vmatpush1.bf16.msra.mxu0 0
    %3399 = vmatprep.subr.bf16.mxu0 0
    %3400 = vmatpush1.bf16.msra.mxu0 0
    %3401 = vmatprep.subr.bf16.mxu0 0
    %3402 = vmatpush1.bf16.msra.mxu0 0
    %3403 = vmatprep.subr.bf16.mxu0 0
    %3404 = vmatpush1.bf16.msra.mxu0 0
    %3405 = vmatprep.mubr.bf16.mxu0 0
    %3406 = vmatmul.mubr.bf16.gmra.mrb[0].mxu0 %v2657
    %v3407 = vpop.f32.mrb[0].mxu0
    %v3408 = vadd.f32 0.0, %v3407
    %v3409 = vpop.f32.mrb[0].mxu0
    %v3410 = vpop.f32.mrb[0].mxu0
    %v3411 = vadd.f32 0.0, %v3410
    %v3412 = vpop.f32.mrb[0].mxu0
    %3413 = vmatprep.mubr.bf16.mxu0 0
    %3414 = vmatmul.mubr.bf16.gmra.mrb[0].mxu0 %v2659
    %v3415 = vpop.f32.mrb[0].mxu0
    %v3416 = vadd.f32 0.0, %v3415
    %v3417 = vpop.f32.mrb[0].mxu0
    %v3418 = vpop.f32.mrb[0].mxu0
    %v3419 = vadd.f32 0.0, %v3418
    %v3420 = vpop.f32.mrb[0].mxu0
    %3421 = vmatprep.mubr.bf16.mxu0 0
    %3422 = vmatmul.mubr.bf16.gmra.mrb[0].mxu0 %v2661
    %v3423 = vpop.f32.mrb[0].mxu0
    %v3424 = vadd.f32 0.0, %v3423
    %v3425 = vpop.f32.mrb[0].mxu0
    %v3426 = vpop.f32.mrb[0].mxu0
    %v3427 = vadd.f32 0.0, %v3426
    %v3428 = vpop.f32.mrb[0].mxu0
    %3429 = vmatprep.mubr.bf16.mxu0 0
    %3430 = vmatmul.mubr.bf16.gmra.mrb[0].mxu0 %v2663
    %v3431 = vpop.f32.mrb[0].mxu0
    %v3432 = vadd.f32 0.0, %v3431
    %v3433 = vpop.f32.mrb[0].mxu0
    %v3434 = vpop.f32.mrb[0].mxu0
    %v3435 = vadd.f32 0.0, %v3434
    %v3436 = vpop.f32.mrb[0].mxu0
    %3437 = vmatprep.mubr.bf16.mxu0 0
    %3438 = vmatmul.mubr.bf16.gmra.mrb[0].mxu0 %v2665
    %v3439 = vpop.f32.mrb[0].mxu0
    %v3440 = vadd.f32 0.0, %v3439
    %v3441 = vpop.f32.mrb[0].mxu0
    %v3442 = vpop.f32.mrb[0].mxu0
    %v3443 = vadd.f32 0.0, %v3442
    %v3444 = vpop.f32.mrb[0].mxu0
    %3445 = vmatprep.mubr.bf16.mxu0 0
    %3446 = vmatmul.mubr.bf16.gmra.mrb[0].mxu0 %v3371
    %v3447 = vpop.f32.mrb[0].mxu0
    %v3448 = vadd.f32 0.0, %v3447
    %v3449 = vpop.f32.mrb[0].mxu0
    %v3450 = vpop.f32.mrb[0].mxu0
    %v3451 = vadd.f32 0.0, %v3450
    %v3452 = vpop.f32.mrb[0].mxu0
    %3453 = vdwg.mxu0
    %v3454 = vadd.f32 %v3340, %v3408
    %v3455 = vadd.f32 %v3341, %v3411
    %v3456 = vadd.f32 %v3342, %v3416
    %v3457 = vadd.f32 %v3343, %v3419
    %v3458 = vadd.f32 %v3344, %v3424
    %v3459 = vadd.f32 %v3345, %v3427
    %v3460 = vadd.f32 %v3346, %v3432
    %v3461 = vadd.f32 %v3347, %v3435
    %v3462 = vadd.f32 %v3348, %v3440
    %v3463 = vadd.f32 %v3349, %v3443
    %v3464 = vadd.f32 %v3350, %v3448
    %v3465 = vadd.f32 %v3351, %v3451
    %v3466 = vld [vmem:[#allocation4 + $0x8] sm:$0xff]
    %v3467 = vld [vmem:[#allocation4 + $0x10] sm:$0xff]
    %v3468 = vld [vmem:[#allocation4 + $0x18] sm:$0xff]
    %v3469 = vld [vmem:[#allocation4 + $0x20] sm:$0xff]
    %v3470 = vld [vmem:[#allocation4 + $0x28] sm:$0xff]
    %v3471 = vld [vmem:[#allocation4 + $0x30] sm:$0xff]
    %v3472 = vld [vmem:[#allocation4 + $0x38] sm:$0x1]
    %s3473 = scalar_lea.vmem [#allocation8], 112
    %v3474 = vld [vmem:[%s3473] sm:$0xf]
    %v3475 = vld [vmem:[%s3473 + $0x4] sm:$0xf]
    %v3476 = vld [vmem:[%s3473 + $0x8] sm:$0xf]
    %v3477 = vld [vmem:[%s3473 + $0xc] sm:$0xf]
    %v3479 = vshrl.u32 %v3466, 16
    %v3481 = vshll.u32 %v3466, 16
    %v3483 = vrot.slane %v3481, 1
    %v3484 = vor.u32 %v3479, %v3483
    %v3486 = vshll.u32 %v3467, 16
    %v3488 = vrot.slane %v3486, 1
    %v3489 = vsel %vm196, %v3484, %v3488
    %v3490 = vshrl.u32 %v3467, 16
    %v3492 = vor.u32 %v3490, %v3488
    %v3494 = vshll.u32 %v3468, 16
    %v3496 = vrot.slane %v3494, 1
    %v3497 = vsel %vm196, %v3492, %v3496
    %v3498 = vshrl.u32 %v3468, 16
    %v3500 = vor.u32 %v3498, %v3496
    %v3502 = vshll.u32 %v3469, 16
    %v3504 = vrot.slane %v3502, 1
    %v3505 = vsel %vm196, %v3500, %v3504
    %v3506 = vshrl.u32 %v3469, 16
    %v3508 = vor.u32 %v3506, %v3504
    %v3510 = vshll.u32 %v3470, 16
    %v3512 = vrot.slane %v3510, 1
    %v3513 = vsel %vm196, %v3508, %v3512
    %v3514 = vshrl.u32 %v3470, 16
    %v3516 = vor.u32 %v3514, %v3512
    %v3518 = vshll.u32 %v3471, 16
    %v3520 = vrot.slane %v3518, 1
    %v3521 = vsel %vm196, %v3516, %v3520
    %v3522 = vshrl.u32 %v3471, 16
    %v3524 = vor.u32 %v3522, %v3520
    %v3526 = vshll.u32 %v3472, 16
    %v3528 = vrot.slane %v3526, 1
    %v3529 = vsel %vm196, %v3524, %v3528
    %v3534 = vunpack.c.l.b16 %v3474
    %v3535 = vunpack.c.l.b16 %v3475
    %v3536 = vunpack.c.l.b16 %v3476
    %v3537 = vunpack.c.l.b16 %v3477
    %v3538 = vpack.c.b16 %v3535, %v3534
    %v3539 = vpack.c.b16 %v3537, %v3536
    %v3543 = vsel %vm85, %v3489, 0
    %v3546 = vsel %vm85, %v3497, 0
    %v3549 = vsel %vm85, %v3505, 0
    %v3552 = vsel %vm85, %v3513, 0
    %v3555 = vsel %vm85, %v3521, 0
    %v3558 = vsel %vm85, %v3529, 0
    %3560 = vmatprep.subr.bf16.mxu0 0
    %3561 = vmatpush1.bf16.msra.mxu0 %v3538
    %3562 = vmatprep.subr.bf16.mxu0 0
    %3563 = vmatpush1.bf16.msra.mxu0 %v3539
    %3564 = vmatprep.subr.bf16.mxu0 0
    %3565 = vmatpush1.bf16.msra.mxu0 0
    %3566 = vmatprep.subr.bf16.mxu0 0
    %3567 = vmatpush1.bf16.msra.mxu0 0
    %3568 = vmatprep.subr.bf16.mxu0 0
    %3569 = vmatpush1.bf16.msra.mxu0 0
    %3570 = vmatprep.subr.bf16.mxu0 0
    %3571 = vmatpush1.bf16.msra.mxu0 0
    %3572 = vmatprep.subr.bf16.mxu0 0
    %3573 = vmatpush1.bf16.msra.mxu0 0
    %3574 = vmatprep.subr.bf16.mxu0 0
    %3575 = vmatpush1.bf16.msra.mxu0 0
    %3576 = vmatprep.subr.bf16.mxu0 0
    %3577 = vmatpush1.bf16.msra.mxu0 0
    %3578 = vmatprep.subr.bf16.mxu0 0
    %3579 = vmatpush1.bf16.msra.mxu0 0
    %3580 = vmatprep.subr.bf16.mxu0 0
    %3581 = vmatpush1.bf16.msra.mxu0 0
    %3582 = vmatprep.subr.bf16.mxu0 0
    %3583 = vmatpush1.bf16.msra.mxu0 0
    %3584 = vmatprep.subr.bf16.mxu0 0
    %3585 = vmatpush1.bf16.msra.mxu0 0
    %3586 = vmatprep.subr.bf16.mxu0 0
    %3587 = vmatpush1.bf16.msra.mxu0 0
    %3588 = vmatprep.subr.bf16.mxu0 0
    %3589 = vmatpush1.bf16.msra.mxu0 0
    %3590 = vmatprep.subr.bf16.mxu0 0
    %3591 = vmatpush1.bf16.msra.mxu0 0
    %3592 = vmatprep.mubr.bf16.mxu0 0
    %3593 = vmatmul.mubr.bf16.gmra.mrb[0].mxu0 %v3543
    %v3594 = vpop.f32.mrb[0].mxu0
    %v3595 = vadd.f32 0.0, %v3594
    %v3596 = vpop.f32.mrb[0].mxu0
    %v3597 = vpop.f32.mrb[0].mxu0
    %v3598 = vadd.f32 0.0, %v3597
    %v3599 = vpop.f32.mrb[0].mxu0
    %3600 = vmatprep.mubr.bf16.mxu0 0
    %3601 = vmatmul.mubr.bf16.gmra.mrb[0].mxu0 %v3546
    %v3602 = vpop.f32.mrb[0].mxu0
    %v3603 = vadd.f32 0.0, %v3602
    %v3604 = vpop.f32.mrb[0].mxu0
    %v3605 = vpop.f32.mrb[0].mxu0
    %v3606 = vadd.f32 0.0, %v3605
    %v3607 = vpop.f32.mrb[0].mxu0
    %3608 = vmatprep.mubr.bf16.mxu0 0
    %3609 = vmatmul.mubr.bf16.gmra.mrb[0].mxu0 %v3549
    %v3610 = vpop.f32.mrb[0].mxu0
    %v3611 = vadd.f32 0.0, %v3610
    %v3612 = vpop.f32.mrb[0].mxu0
    %v3613 = vpop.f32.mrb[0].mxu0
    %v3614 = vadd.f32 0.0, %v3613
    %v3615 = vpop.f32.mrb[0].mxu0
    %3616 = vmatprep.mubr.bf16.mxu0 0
    %3617 = vmatmul.mubr.bf16.gmra.mrb[0].mxu0 %v3552
    %v3618 = vpop.f32.mrb[0].mxu0
    %v3619 = vadd.f32 0.0, %v3618
    %v3620 = vpop.f32.mrb[0].mxu0
    %v3621 = vpop.f32.mrb[0].mxu0
    %v3622 = vadd.f32 0.0, %v3621
    %v3623 = vpop.f32.mrb[0].mxu0
    %3624 = vmatprep.mubr.bf16.mxu0 0
    %3625 = vmatmul.mubr.bf16.gmra.mrb[0].mxu0 %v3555
    %v3626 = vpop.f32.mrb[0].mxu0
    %v3627 = vadd.f32 0.0, %v3626
    %v3628 = vpop.f32.mrb[0].mxu0
    %v3629 = vpop.f32.mrb[0].mxu0
    %v3630 = vadd.f32 0.0, %v3629
    %v3631 = vpop.f32.mrb[0].mxu0
    %3632 = vmatprep.mubr.bf16.mxu0 0
    %3633 = vmatmul.mubr.bf16.gmra.mrb[0].mxu0 %v3558
    %v3634 = vpop.f32.mrb[0].mxu0
    %v3635 = vadd.f32 0.0, %v3634
    %v3636 = vpop.f32.mrb[0].mxu0
    %v3637 = vpop.f32.mrb[0].mxu0
    %v3638 = vadd.f32 0.0, %v3637
    %v3639 = vpop.f32.mrb[0].mxu0
    %3640 = vdwg.mxu0
    %v3641 = vadd.f32 %v3454, %v3595
    %v3642 = vadd.f32 %v3455, %v3598
    %v3643 = vadd.f32 %v3456, %v3603
    %v3644 = vadd.f32 %v3457, %v3606
    %v3645 = vadd.f32 %v3458, %v3611
    %v3646 = vadd.f32 %v3459, %v3614
    %v3647 = vadd.f32 %v3460, %v3619
    %v3648 = vadd.f32 %v3461, %v3622
    %v3649 = vadd.f32 %v3462, %v3627
    %v3650 = vadd.f32 %v3463, %v3630
    %v3651 = vadd.f32 %v3464, %v3635
    %v3652 = vadd.f32 %v3465, %v3638
    %v3653 = vld [vmem:[#allocation4 + $0x8] sm:$0xfe]
    %s3654 = scalar_lea.vmem [#allocation8], 128
    %v3655 = vld [vmem:[%s3654] sm:$0xf]
    %v3656 = vld [vmem:[%s3654 + $0x4] sm:$0xf]
    %v3657 = vld [vmem:[%s3654 + $0x8] sm:$0xf]
    %v3658 = vld [vmem:[%s3654 + $0xc] sm:$0xf]
    %v3666 = vrot.slane %v3653, 1
    %v3667 = vrot.slane %v3467, 1
    %v3668 = vsel %vm1262, %v3666, %v3667
    %v3669 = vrot.slane %v3468, 1
    %v3670 = vsel %vm1262, %v3667, %v3669
    %v3671 = vrot.slane %v3469, 1
    %v3672 = vsel %vm1262, %v3669, %v3671
    %v3673 = vrot.slane %v3470, 1
    %v3674 = vsel %vm1262, %v3671, %v3673
    %v3675 = vrot.slane %v3471, 1
    %v3676 = vsel %vm1262, %v3673, %v3675
    %v3677 = vrot.slane %v3472, 1
    %v3678 = vsel %vm1262, %v3675, %v3677
    %v3683 = vunpack.c.l.b16 %v3655
    %v3684 = vunpack.c.l.b16 %v3656
    %v3685 = vunpack.c.l.b16 %v3657
    %v3686 = vunpack.c.l.b16 %v3658
    %v3687 = vpack.c.b16 %v3684, %v3683
    %v3688 = vpack.c.b16 %v3686, %v3685
    %v3692 = vsel %vm85, %v3668, 0
    %v3695 = vsel %vm85, %v3670, 0
    %v3698 = vsel %vm85, %v3672, 0
    %v3701 = vsel %vm85, %v3674, 0
    %v3704 = vsel %vm85, %v3676, 0
    %v3707 = vsel %vm85, %v3678, 0
    %3709 = vmatprep.subr.bf16.mxu0 0
    %3710 = vmatpush1.bf16.msra.mxu0 %v3687
    %3711 = vmatprep.subr.bf16.mxu0 0
    %3712 = vmatpush1.bf16.msra.mxu0 %v3688
    %3713 = vmatprep.subr.bf16.mxu0 0
    %3714 = vmatpush1.bf16.msra.mxu0 0
    %3715 = vmatprep.subr.bf16.mxu0 0
    %3716 = vmatpush1.bf16.msra.mxu0 0
    %3717 = vmatprep.subr.bf16.mxu0 0
    %3718 = vmatpush1.bf16.msra.mxu0 0
    %3719 = vmatprep.subr.bf16.mxu0 0
    %3720 = vmatpush1.bf16.msra.mxu0 0
    %3721 = vmatprep.subr.bf16.mxu0 0
    %3722 = vmatpush1.bf16.msra.mxu0 0
    %3723 = vmatprep.subr.bf16.mxu0 0
    %3724 = vmatpush1.bf16.msra.mxu0 0
    %3725 = vmatprep.subr.bf16.mxu0 0
    %3726 = vmatpush1.bf16.msra.mxu0 0
    %3727 = vmatprep.subr.bf16.mxu0 0
    %3728 = vmatpush1.bf16.msra.mxu0 0
    %3729 = vmatprep.subr.bf16.mxu0 0
    %3730 = vmatpush1.bf16.msra.mxu0 0
    %3731 = vmatprep.subr.bf16.mxu0 0
    %3732 = vmatpush1.bf16.msra.mxu0 0
    %3733 = vmatprep.subr.bf16.mxu0 0
    %3734 = vmatpush1.bf16.msra.mxu0 0
    %3735 = vmatprep.subr.bf16.mxu0 0
    %3736 = vmatpush1.bf16.msra.mxu0 0
    %3737 = vmatprep.subr.bf16.mxu0 0
    %3738 = vmatpush1.bf16.msra.mxu0 0
    %3739 = vmatprep.subr.bf16.mxu0 0
    %3740 = vmatpush1.bf16.msra.mxu0 0
    %3741 = vmatprep.mubr.bf16.mxu0 0
    %3742 = vmatmul.mubr.bf16.gmra.mrb[0].mxu0 %v3692
    %v3743 = vpop.f32.mrb[0].mxu0
    %v3744 = vadd.f32 0.0, %v3743
    %v3745 = vpop.f32.mrb[0].mxu0
    %v3746 = vpop.f32.mrb[0].mxu0
    %v3747 = vadd.f32 0.0, %v3746
    %v3748 = vpop.f32.mrb[0].mxu0
    %3749 = vmatprep.mubr.bf16.mxu0 0
    %3750 = vmatmul.mubr.bf16.gmra.mrb[0].mxu0 %v3695
    %v3751 = vpop.f32.mrb[0].mxu0
    %v3752 = vadd.f32 0.0, %v3751
    %v3753 = vpop.f32.mrb[0].mxu0
    %v3754 = vpop.f32.mrb[0].mxu0
    %v3755 = vadd.f32 0.0, %v3754
    %v3756 = vpop.f32.mrb[0].mxu0
    %3757 = vmatprep.mubr.bf16.mxu0 0
    %3758 = vmatmul.mubr.bf16.gmra.mrb[0].mxu0 %v3698
    %v3759 = vpop.f32.mrb[0].mxu0
    %v3760 = vadd.f32 0.0, %v3759
    %v3761 = vpop.f32.mrb[0].mxu0
    %v3762 = vpop.f32.mrb[0].mxu0
    %v3763 = vadd.f32 0.0, %v3762
    %v3764 = vpop.f32.mrb[0].mxu0
    %3765 = vmatprep.mubr.bf16.mxu0 0
    %3766 = vmatmul.mubr.bf16.gmra.mrb[0].mxu0 %v3701
    %v3767 = vpop.f32.mrb[0].mxu0
    %v3768 = vadd.f32 0.0, %v3767
    %v3769 = vpop.f32.mrb[0].mxu0
    %v3770 = vpop.f32.mrb[0].mxu0
    %v3771 = vadd.f32 0.0, %v3770
    %v3772 = vpop.f32.mrb[0].mxu0
    %3773 = vmatprep.mubr.bf16.mxu0 0
    %3774 = vmatmul.mubr.bf16.gmra.mrb[0].mxu0 %v3704
    %v3775 = vpop.f32.mrb[0].mxu0
    %v3776 = vadd.f32 0.0, %v3775
    %v3777 = vpop.f32.mrb[0].mxu0
    %v3778 = vpop.f32.mrb[0].mxu0
    %v3779 = vadd.f32 0.0, %v3778
    %v3780 = vpop.f32.mrb[0].mxu0
    %3781 = vmatprep.mubr.bf16.mxu0 0
    %3782 = vmatmul.mubr.bf16.gmra.mrb[0].mxu0 %v3707
    %v3783 = vpop.f32.mrb[0].mxu0
    %v3784 = vadd.f32 0.0, %v3783
    %v3785 = vpop.f32.mrb[0].mxu0
    %v3786 = vpop.f32.mrb[0].mxu0
    %v3787 = vadd.f32 0.0, %v3786
    %v3788 = vpop.f32.mrb[0].mxu0
    %3789 = vdwg.mxu0
    %v3790 = vadd.f32 %v3641, %v3744
    %v3791 = vadd.f32 %v3642, %v3747
    %v3792 = vadd.f32 %v3643, %v3752
    %v3793 = vadd.f32 %v3644, %v3755
    %v3794 = vadd.f32 %v3645, %v3760
    %v3795 = vadd.f32 %v3646, %v3763
    %v3796 = vadd.f32 %v3647, %v3768
    %v3797 = vadd.f32 %v3648, %v3771
    %v3798 = vadd.f32 %v3649, %v3776
    %v3799 = vadd.f32 %v3650, %v3779
    %v3800 = vadd.f32 %v3651, %v3784
    %v3801 = vadd.f32 %v3652, %v3787
    %v3802 = vld [vmem:[%s6] sm:$0x1]
    %v3804 = vlaneseq
    %v3805 = vshrl.u32 %v3804, 7
    %v3806 = vsub.s32 0, %v3805
    %v3807 = vrot.slane %v3802, %v3806
    %v3809 = vadd.f32 %v3790, %v3807
    %v3810 = vadd.f32 %v3791, %v3807
    %v3811 = vadd.f32 %v3792, %v3807
    %v3812 = vadd.f32 %v3793, %v3807
    %v3813 = vadd.f32 %v3794, %v3807
    %v3814 = vadd.f32 %v3795, %v3807
    %v3815 = vadd.f32 %v3796, %v3807
    %v3816 = vadd.f32 %v3797, %v3807
    %v3817 = vadd.f32 %v3798, %v3807
    %v3818 = vadd.f32 %v3799, %v3807
    %v3819 = vadd.f32 %v3800, %v3807
    %v3820 = vadd.f32 %v3801, %v3807
    %v3821 = vmax.f32 %v3809, 0.0
    %v3822 = vmax.f32 %v3810, 0.0
    %v3823 = vmax.f32 %v3811, 0.0
    %v3824 = vmax.f32 %v3812, 0.0
    %v3825 = vmax.f32 %v3813, 0.0
    %v3826 = vmax.f32 %v3814, 0.0
    %v3827 = vmax.f32 %v3815, 0.0
    %v3828 = vmax.f32 %v3816, 0.0
    %v3829 = vmax.f32 %v3817, 0.0
    %v3830 = vmax.f32 %v3818, 0.0
    %v3831 = vmax.f32 %v3819, 0.0
    %v3832 = vmax.f32 %v3820, 0.0
    %v3833 = vpack.c.bf16 %v3822, %v3821
    %v3834 = vpack.c.bf16 %v3824, %v3823
    %v3835 = vpack.c.bf16 %v3826, %v3825
    %v3836 = vpack.c.bf16 %v3828, %v3827
    %v3837 = vpack.c.bf16 %v3830, %v3829
    %v3838 = vpack.c.bf16 %v3832, %v3831
    %3839 = vst.msk [vmem:[#allocation3] sm:$0xff] %vm85, %v3833
    %3840 = vst.msk [vmem:[#allocation3 + $0x8] sm:$0xff] %vm85, %v3834
    %3841 = vst.msk [vmem:[#allocation3 + $0x10] sm:$0xff] %vm85, %v3835
    %3842 = vst.msk [vmem:[#allocation3 + $0x18] sm:$0xff] %vm85, %v3836
    %3843 = vst.msk [vmem:[#allocation3 + $0x20] sm:$0xff] %vm85, %v3837
    %3844 = vst.msk [vmem:[#allocation3 + $0x28] sm:$0xff] %vm85, %v3838
    %v3845 = vld [vmem:[#allocation3] sm:$0xff]
    %v3846 = vld [vmem:[#allocation3 + $0x8] sm:$0xff]
    %v3847 = vld [vmem:[#allocation3 + $0x10] sm:$0xff]
    %v3848 = vld [vmem:[#allocation3 + $0x18] sm:$0xff]
    %v3849 = vld [vmem:[#allocation3 + $0x20] sm:$0xff]
    %v3850 = vld [vmem:[#allocation10] sm:$0xf]
    %v3851 = vld [vmem:[#allocation10 + $0x4] sm:$0xf]
    %v3852 = vld [vmem:[#allocation10 + $0x8] sm:$0xf]
    %v3853 = vld [vmem:[#allocation10 + $0xc] sm:$0xf]
    %v3854 = vld [vmem:[#allocation3 + $0x28] sm:$0x1]
    %s3855 = scalar_lea.vmem [#allocation10], 16
    %v3856 = vld [vmem:[%s3855] sm:$0xf]
    %v3857 = vld [vmem:[%s3855 + $0x4] sm:$0xf]
    %v3858 = vld [vmem:[%s3855 + $0x8] sm:$0xf]
    %v3859 = vld [vmem:[%s3855 + $0xc] sm:$0xf]
    %v3861 = vshrl.u32 %v3845, 16
    %v3863 = vshll.u32 %v3845, 16
    %v3865 = vrot.slane %v3863, 1
    %v3866 = vor.u32 %v3861, %v3865
    %v3868 = vshll.u32 %v3846, 16
    %v3870 = vrot.slane %v3868, 1
    %v3871 = vsel %vm196, %v3866, %v3870
    %v3872 = vshrl.u32 %v3846, 16
    %v3874 = vor.u32 %v3872, %v3870
    %v3876 = vshll.u32 %v3847, 16
    %v3878 = vrot.slane %v3876, 1
    %v3879 = vsel %vm196, %v3874, %v3878
    %v3880 = vshrl.u32 %v3847, 16
    %v3882 = vor.u32 %v3880, %v3878
    %v3884 = vshll.u32 %v3848, 16
    %v3886 = vrot.slane %v3884, 1
    %v3887 = vsel %vm196, %v3882, %v3886
    %v3888 = vshrl.u32 %v3848, 16
    %v3890 = vor.u32 %v3888, %v3886
    %v3892 = vshll.u32 %v3849, 16
    %v3894 = vrot.slane %v3892, 1
    %v3895 = vsel %vm196, %v3890, %v3894
    %v3896 = vshrl.u32 %v3849, 16
    %v3898 = vor.u32 %v3896, %v3894
    %v3900 = vshll.u32 %v3854, 16
    %v3902 = vrot.slane %v3900, 1
    %v3903 = vsel %vm196, %v3898, %v3902
    %v3908 = vunpack.c.l.b16 %v3856
    %v3909 = vunpack.c.l.b16 %v3857
    %v3910 = vunpack.c.l.b16 %v3858
    %v3911 = vunpack.c.l.b16 %v3859
    %v3912 = vpack.c.b16 %v3909, %v3908
    %v3913 = vpack.c.b16 %v3911, %v3910
    %v3917 = vsel %vm85, %v3871, 0
    %v3920 = vsel %vm85, %v3879, 0
    %v3923 = vsel %vm85, %v3887, 0
    %v3926 = vsel %vm85, %v3895, 0
    %v3929 = vsel %vm85, %v3903, 0
    %3931 = vmatprep.subr.bf16.mxu0 0
    %3932 = vmatpush1.bf16.msra.mxu0 %v3912
    %3933 = vmatprep.subr.bf16.mxu0 0
    %3934 = vmatpush1.bf16.msra.mxu0 %v3913
    %3935 = vmatprep.subr.bf16.mxu0 0
    %3936 = vmatpush1.bf16.msra.mxu0 0
    %3937 = vmatprep.subr.bf16.mxu0 0
    %3938 = vmatpush1.bf16.msra.mxu0 0
    %3939 = vmatprep.subr.bf16.mxu0 0
    %3940 = vmatpush1.bf16.msra.mxu0 0
    %3941 = vmatprep.subr.bf16.mxu0 0
    %3942 = vmatpush1.bf16.msra.mxu0 0
    %3943 = vmatprep.subr.bf16.mxu0 0
    %3944 = vmatpush1.bf16.msra.mxu0 0
    %3945 = vmatprep.subr.bf16.mxu0 0
    %3946 = vmatpush1.bf16.msra.mxu0 0
    %3947 = vmatprep.subr.bf16.mxu0 0
    %3948 = vmatpush1.bf16.msra.mxu0 0
    %3949 = vmatprep.subr.bf16.mxu0 0
    %3950 = vmatpush1.bf16.msra.mxu0 0
    %3951 = vmatprep.subr.bf16.mxu0 0
    %3952 = vmatpush1.bf16.msra.mxu0 0
    %3953 = vmatprep.subr.bf16.mxu0 0
    %3954 = vmatpush1.bf16.msra.mxu0 0
    %3955 = vmatprep.subr.bf16.mxu0 0
    %3956 = vmatpush1.bf16.msra.mxu0 0
    %3957 = vmatprep.subr.bf16.mxu0 0
    %3958 = vmatpush1.bf16.msra.mxu0 0
    %3959 = vmatprep.subr.bf16.mxu0 0
    %3960 = vmatpush1.bf16.msra.mxu0 0
    %3961 = vmatprep.subr.bf16.mxu0 0
    %3962 = vmatpush1.bf16.msra.mxu0 0
    %3963 = vmatprep.mubr.bf16.mxu0 0
    %3964 = vmatmul.mubr.bf16.gmra.mrb[0].mxu0 %v3917
    %v3965 = vpop.f32.mrb[0].mxu0
    %v3966 = vadd.f32 0.0, %v3965
    %v3967 = vpop.f32.mrb[0].mxu0
    %v3968 = vpop.f32.mrb[0].mxu0
    %v3969 = vpop.f32.mrb[0].mxu0
    %3970 = vmatprep.mubr.bf16.mxu0 0
    %3971 = vmatmul.mubr.bf16.gmra.mrb[0].mxu0 %v3920
    %v3972 = vpop.f32.mrb[0].mxu0
    %v3973 = vpop.f32.mrb[0].mxu0
    %v3974 = vpop.f32.mrb[0].mxu0
    %v3975 = vpop.f32.mrb[0].mxu0
    %3976 = vmatprep.mubr.bf16.mxu0 0
    %3977 = vmatmul.mubr.bf16.gmra.mrb[0].mxu0 %v3923
    %v3978 = vpop.f32.mrb[0].mxu0
    %v3979 = vpop.f32.mrb[0].mxu0
    %v3980 = vpop.f32.mrb[0].mxu0
    %v3981 = vpop.f32.mrb[0].mxu0
    %3982 = vmatprep.mubr.bf16.mxu0 0
    %3983 = vmatmul.mubr.bf16.gmra.mrb[0].mxu0 %v3926
    %v3984 = vpop.f32.mrb[0].mxu0
    %v3985 = vpop.f32.mrb[0].mxu0
    %v3986 = vpop.f32.mrb[0].mxu0
    %v3987 = vpop.f32.mrb[0].mxu0
    %3988 = vmatprep.mubr.bf16.mxu0 0
    %3989 = vmatmul.mubr.bf16.gmra.mrb[0].mxu0 %v3929
    %v3990 = vpop.f32.mrb[0].mxu0
    %v3991 = vpop.f32.mrb[0].mxu0
    %v3992 = vpop.f32.mrb[0].mxu0
    %v3993 = vadd.f32 0.0, %v3992
    %v3994 = vpop.f32.mrb[0].mxu0
    %3995 = vdwg.mxu0
    %v4000 = vunpack.c.l.b16 %v3850
    %v4001 = vunpack.c.l.b16 %v3851
    %v4002 = vunpack.c.l.b16 %v3852
    %v4003 = vunpack.c.l.b16 %v3853
    %v4004 = vpack.c.b16 %v4001, %v4000
    %v4005 = vpack.c.b16 %v4003, %v4002
    %v4008 = vsel %vm85, %v3845, 0
    %v4010 = vsel %vm85, %v3846, 0
    %v4012 = vsel %vm85, %v3847, 0
    %v4014 = vsel %vm85, %v3848, 0
    %v4016 = vsel %vm85, %v3849, 0
    %4018 = vmatprep.subr.bf16.mxu0 0
    %4019 = vmatpush1.bf16.msra.mxu0 %v4004
    %4020 = vmatprep.subr.bf16.mxu0 0
    %4021 = vmatpush1.bf16.msra.mxu0 %v4005
    %4022 = vmatprep.subr.bf16.mxu0 0
    %4023 = vmatpush1.bf16.msra.mxu0 0
    %4024 = vmatprep.subr.bf16.mxu0 0
    %4025 = vmatpush1.bf16.msra.mxu0 0
    %4026 = vmatprep.subr.bf16.mxu0 0
    %4027 = vmatpush1.bf16.msra.mxu0 0
    %4028 = vmatprep.subr.bf16.mxu0 0
    %4029 = vmatpush1.bf16.msra.mxu0 0
    %4030 = vmatprep.subr.bf16.mxu0 0
    %4031 = vmatpush1.bf16.msra.mxu0 0
    %4032 = vmatprep.subr.bf16.mxu0 0
    %4033 = vmatpush1.bf16.msra.mxu0 0
    %4034 = vmatprep.subr.bf16.mxu0 0
    %4035 = vmatpush1.bf16.msra.mxu0 0
    %4036 = vmatprep.subr.bf16.mxu0 0
    %4037 = vmatpush1.bf16.msra.mxu0 0
    %4038 = vmatprep.subr.bf16.mxu0 0
    %4039 = vmatpush1.bf16.msra.mxu0 0
    %4040 = vmatprep.subr.bf16.mxu0 0
    %4041 = vmatpush1.bf16.msra.mxu0 0
    %4042 = vmatprep.subr.bf16.mxu0 0
    %4043 = vmatpush1.bf16.msra.mxu0 0
    %4044 = vmatprep.subr.bf16.mxu0 0
    %4045 = vmatpush1.bf16.msra.mxu0 0
    %4046 = vmatprep.subr.bf16.mxu0 0
    %4047 = vmatpush1.bf16.msra.mxu0 0
    %4048 = vmatprep.subr.bf16.mxu0 0
    %4049 = vmatpush1.bf16.msra.mxu0 0
    %4050 = vmatprep.mubr.bf16.mxu0 0
    %4051 = vmatmul.mubr.bf16.gmra.mrb[0].mxu0 %v4008
    %v4052 = vpop.f32.mrb[0].mxu0
    %v4053 = vadd.f32 %v3966, %v4052
    %v4054 = vpop.f32.mrb[0].mxu0
    %v4055 = vpop.f32.mrb[0].mxu0
    %v4056 = vpop.f32.mrb[0].mxu0
    %4057 = vmatprep.mubr.bf16.mxu0 0
    %4058 = vmatmul.mubr.bf16.gmra.mrb[0].mxu0 %v4010
    %v4059 = vpop.f32.mrb[0].mxu0
    %v4060 = vpop.f32.mrb[0].mxu0
    %v4061 = vpop.f32.mrb[0].mxu0
    %v4062 = vpop.f32.mrb[0].mxu0
    %4063 = vmatprep.mubr.bf16.mxu0 0
    %4064 = vmatmul.mubr.bf16.gmra.mrb[0].mxu0 %v4012
    %v4065 = vpop.f32.mrb[0].mxu0
    %v4066 = vpop.f32.mrb[0].mxu0
    %v4067 = vpop.f32.mrb[0].mxu0
    %v4068 = vpop.f32.mrb[0].mxu0
    %4069 = vmatprep.mubr.bf16.mxu0 0
    %4070 = vmatmul.mubr.bf16.gmra.mrb[0].mxu0 %v4014
    %v4071 = vpop.f32.mrb[0].mxu0
    %v4072 = vpop.f32.mrb[0].mxu0
    %v4073 = vpop.f32.mrb[0].mxu0
    %v4074 = vpop.f32.mrb[0].mxu0
    %4075 = vmatprep.mubr.bf16.mxu0 0
    %4076 = vmatmul.mubr.bf16.gmra.mrb[0].mxu0 %v4016
    %v4077 = vpop.f32.mrb[0].mxu0
    %v4078 = vpop.f32.mrb[0].mxu0
    %v4079 = vpop.f32.mrb[0].mxu0
    %v4080 = vadd.f32 %v3993, %v4079
    %v4081 = vpop.f32.mrb[0].mxu0
    %4082 = vdwg.mxu0
    %v4083 = vld [vmem:[#allocation3] sm:$0xfe]
    %s4084 = scalar_lea.vmem [#allocation10], 32
    %v4085 = vld [vmem:[%s4084] sm:$0xf]
    %v4086 = vld [vmem:[%s4084 + $0x4] sm:$0xf]
    %v4087 = vld [vmem:[%s4084 + $0x8] sm:$0xf]
    %v4088 = vld [vmem:[%s4084 + $0xc] sm:$0xf]
    %v4095 = vrot.slane %v4083, 1
    %v4096 = vrot.slane %v3846, 1
    %v4097 = vsel %vm1262, %v4095, %v4096
    %v4098 = vrot.slane %v3847, 1
    %v4099 = vsel %vm1262, %v4096, %v4098
    %v4100 = vrot.slane %v3848, 1
    %v4101 = vsel %vm1262, %v4098, %v4100
    %v4102 = vrot.slane %v3849, 1
    %v4103 = vsel %vm1262, %v4100, %v4102
    %v4104 = vrot.slane %v3854, 1
    %v4105 = vsel %vm1262, %v4102, %v4104
    %v4110 = vunpack.c.l.b16 %v4085
    %v4111 = vunpack.c.l.b16 %v4086
    %v4112 = vunpack.c.l.b16 %v4087
    %v4113 = vunpack.c.l.b16 %v4088
    %v4114 = vpack.c.b16 %v4111, %v4110
    %v4115 = vpack.c.b16 %v4113, %v4112
    %v4119 = vsel %vm85, %v4097, 0
    %v4122 = vsel %vm85, %v4099, 0
    %v4125 = vsel %vm85, %v4101, 0
    %v4128 = vsel %vm85, %v4103, 0
    %v4131 = vsel %vm85, %v4105, 0
    %4133 = vmatprep.subr.bf16.mxu0 0
    %4134 = vmatpush1.bf16.msra.mxu0 %v4114
    %4135 = vmatprep.subr.bf16.mxu0 0
    %4136 = vmatpush1.bf16.msra.mxu0 %v4115
    %4137 = vmatprep.subr.bf16.mxu0 0
    %4138 = vmatpush1.bf16.msra.mxu0 0
    %4139 = vmatprep.subr.bf16.mxu0 0
    %4140 = vmatpush1.bf16.msra.mxu0 0
    %4141 = vmatprep.subr.bf16.mxu0 0
    %4142 = vmatpush1.bf16.msra.mxu0 0
    %4143 = vmatprep.subr.bf16.mxu0 0
    %4144 = vmatpush1.bf16.msra.mxu0 0
    %4145 = vmatprep.subr.bf16.mxu0 0
    %4146 = vmatpush1.bf16.msra.mxu0 0
    %4147 = vmatprep.subr.bf16.mxu0 0
    %4148 = vmatpush1.bf16.msra.mxu0 0
    %4149 = vmatprep.subr.bf16.mxu0 0
    %4150 = vmatpush1.bf16.msra.mxu0 0
    %4151 = vmatprep.subr.bf16.mxu0 0
    %4152 = vmatpush1.bf16.msra.mxu0 0
    %4153 = vmatprep.subr.bf16.mxu0 0
    %4154 = vmatpush1.bf16.msra.mxu0 0
    %4155 = vmatprep.subr.bf16.mxu0 0
    %4156 = vmatpush1.bf16.msra.mxu0 0
    %4157 = vmatprep.subr.bf16.mxu0 0
    %4158 = vmatpush1.bf16.msra.mxu0 0
    %4159 = vmatprep.subr.bf16.mxu0 0
    %4160 = vmatpush1.bf16.msra.mxu0 0
    %4161 = vmatprep.subr.bf16.mxu0 0
    %4162 = vmatpush1.bf16.msra.mxu0 0
    %4163 = vmatprep.subr.bf16.mxu0 0
    %4164 = vmatpush1.bf16.msra.mxu0 0
    %4165 = vmatprep.mubr.bf16.mxu0 0
    %4166 = vmatmul.mubr.bf16.gmra.mrb[0].mxu0 %v4119
    %v4167 = vpop.f32.mrb[0].mxu0
    %v4168 = vadd.f32 0.0, %v4167
    %v4169 = vpop.f32.mrb[0].mxu0
    %v4170 = vpop.f32.mrb[0].mxu0
    %v4171 = vpop.f32.mrb[0].mxu0
    %4172 = vmatprep.mubr.bf16.mxu0 0
    %4173 = vmatmul.mubr.bf16.gmra.mrb[0].mxu0 %v4122
    %v4174 = vpop.f32.mrb[0].mxu0
    %v4175 = vpop.f32.mrb[0].mxu0
    %v4176 = vpop.f32.mrb[0].mxu0
    %v4177 = vpop.f32.mrb[0].mxu0
    %4178 = vmatprep.mubr.bf16.mxu0 0
    %4179 = vmatmul.mubr.bf16.gmra.mrb[0].mxu0 %v4125
    %v4180 = vpop.f32.mrb[0].mxu0
    %v4181 = vpop.f32.mrb[0].mxu0
    %v4182 = vpop.f32.mrb[0].mxu0
    %v4183 = vpop.f32.mrb[0].mxu0
    %4184 = vmatprep.mubr.bf16.mxu0 0
    %4185 = vmatmul.mubr.bf16.gmra.mrb[0].mxu0 %v4128
    %v4186 = vpop.f32.mrb[0].mxu0
    %v4187 = vpop.f32.mrb[0].mxu0
    %v4188 = vpop.f32.mrb[0].mxu0
    %v4189 = vpop.f32.mrb[0].mxu0
    %4190 = vmatprep.mubr.bf16.mxu0 0
    %4191 = vmatmul.mubr.bf16.gmra.mrb[0].mxu0 %v4131
    %v4192 = vpop.f32.mrb[0].mxu0
    %v4193 = vpop.f32.mrb[0].mxu0
    %v4194 = vpop.f32.mrb[0].mxu0
    %v4195 = vadd.f32 0.0, %v4194
    %v4196 = vpop.f32.mrb[0].mxu0
    %4197 = vdwg.mxu0
    %v4198 = vadd.f32 %v4053, %v4168
    %v4199 = vadd.f32 %v4080, %v4195
    %v4200 = vld [vmem:[#allocation3] sm:$0xf0]
    %v4201 = vld [vmem:[#allocation3 + $0x28] sm:$0xf]
    %s4202 = scalar_lea.vmem [#allocation10], 48
    %v4203 = vld [vmem:[%s4202] sm:$0xf]
    %v4204 = vld [vmem:[%s4202 + $0x4] sm:$0xf]
    %v4205 = vld [vmem:[%s4202 + $0x8] sm:$0xf]
    %v4206 = vld [vmem:[%s4202 + $0xc] sm:$0xf]
    %v4209 = vrot.slane %v4200, 4
    %v4210 = vrot.slane %v3846, 4
    %v4211 = vsel %vm525, %v4209, %v4210
    %v4212 = vrot.slane %v3847, 4
    %v4213 = vsel %vm525, %v4210, %v4212
    %v4214 = vrot.slane %v3848, 4
    %v4215 = vsel %vm525, %v4212, %v4214
    %v4216 = vrot.slane %v3849, 4
    %v4217 = vsel %vm525, %v4214, %v4216
    %v4218 = vrot.slane %v4201, 4
    %v4219 = vsel %vm525, %v4216, %v4218
    %v4224 = vunpack.c.l.b16 %v4203
    %v4225 = vunpack.c.l.b16 %v4204
    %v4226 = vunpack.c.l.b16 %v4205
    %v4227 = vunpack.c.l.b16 %v4206
    %v4228 = vpack.c.b16 %v4225, %v4224
    %v4229 = vpack.c.b16 %v4227, %v4226
    %v4233 = vsel %vm85, %v4211, 0
    %v4236 = vsel %vm85, %v4213, 0
    %v4239 = vsel %vm85, %v4215, 0
    %v4242 = vsel %vm85, %v4217, 0
    %v4245 = vsel %vm85, %v4219, 0
    %4247 = vmatprep.subr.bf16.mxu0 0
    %4248 = vmatpush1.bf16.msra.mxu0 %v4228
    %4249 = vmatprep.subr.bf16.mxu0 0
    %4250 = vmatpush1.bf16.msra.mxu0 %v4229
    %4251 = vmatprep.subr.bf16.mxu0 0
    %4252 = vmatpush1.bf16.msra.mxu0 0
    %4253 = vmatprep.subr.bf16.mxu0 0
    %4254 = vmatpush1.bf16.msra.mxu0 0
    %4255 = vmatprep.subr.bf16.mxu0 0
    %4256 = vmatpush1.bf16.msra.mxu0 0
    %4257 = vmatprep.subr.bf16.mxu0 0
    %4258 = vmatpush1.bf16.msra.mxu0 0
    %4259 = vmatprep.subr.bf16.mxu0 0
    %4260 = vmatpush1.bf16.msra.mxu0 0
    %4261 = vmatprep.subr.bf16.mxu0 0
    %4262 = vmatpush1.bf16.msra.mxu0 0
    %4263 = vmatprep.subr.bf16.mxu0 0
    %4264 = vmatpush1.bf16.msra.mxu0 0
    %4265 = vmatprep.subr.bf16.mxu0 0
    %4266 = vmatpush1.bf16.msra.mxu0 0
    %4267 = vmatprep.subr.bf16.mxu0 0
    %4268 = vmatpush1.bf16.msra.mxu0 0
    %4269 = vmatprep.subr.bf16.mxu0 0
    %4270 = vmatpush1.bf16.msra.mxu0 0
    %4271 = vmatprep.subr.bf16.mxu0 0
    %4272 = vmatpush1.bf16.msra.mxu0 0
    %4273 = vmatprep.subr.bf16.mxu0 0
    %4274 = vmatpush1.bf16.msra.mxu0 0
    %4275 = vmatprep.subr.bf16.mxu0 0
    %4276 = vmatpush1.bf16.msra.mxu0 0
    %4277 = vmatprep.subr.bf16.mxu0 0
    %4278 = vmatpush1.bf16.msra.mxu0 0
    %4279 = vmatprep.mubr.bf16.mxu0 0
    %4280 = vmatmul.mubr.bf16.gmra.mrb[0].mxu0 %v4233
    %v4281 = vpop.f32.mrb[0].mxu0
    %v4282 = vadd.f32 0.0, %v4281
    %v4283 = vpop.f32.mrb[0].mxu0
    %v4284 = vpop.f32.mrb[0].mxu0
    %v4285 = vpop.f32.mrb[0].mxu0
    %4286 = vmatprep.mubr.bf16.mxu0 0
    %4287 = vmatmul.mubr.bf16.gmra.mrb[0].mxu0 %v4236
    %v4288 = vpop.f32.mrb[0].mxu0
    %v4289 = vpop.f32.mrb[0].mxu0
    %v4290 = vpop.f32.mrb[0].mxu0
    %v4291 = vpop.f32.mrb[0].mxu0
    %4292 = vmatprep.mubr.bf16.mxu0 0
    %4293 = vmatmul.mubr.bf16.gmra.mrb[0].mxu0 %v4239
    %v4294 = vpop.f32.mrb[0].mxu0
    %v4295 = vpop.f32.mrb[0].mxu0
    %v4296 = vpop.f32.mrb[0].mxu0
    %v4297 = vpop.f32.mrb[0].mxu0
    %4298 = vmatprep.mubr.bf16.mxu0 0
    %4299 = vmatmul.mubr.bf16.gmra.mrb[0].mxu0 %v4242
    %v4300 = vpop.f32.mrb[0].mxu0
    %v4301 = vpop.f32.mrb[0].mxu0
    %v4302 = vpop.f32.mrb[0].mxu0
    %v4303 = vpop.f32.mrb[0].mxu0
    %4304 = vmatprep.mubr.bf16.mxu0 0
    %4305 = vmatmul.mubr.bf16.gmra.mrb[0].mxu0 %v4245
    %v4306 = vpop.f32.mrb[0].mxu0
    %v4307 = vpop.f32.mrb[0].mxu0
    %v4308 = vpop.f32.mrb[0].mxu0
    %v4309 = vadd.f32 0.0, %v4308
    %v4310 = vpop.f32.mrb[0].mxu0
    %4311 = vdwg.mxu0
    %v4312 = vadd.f32 %v4198, %v4282
    %v4313 = vadd.f32 %v4199, %v4309
    %v4314 = vld [vmem:[#allocation3 + $0x28] sm:$0x1f]
    %s4315 = scalar_lea.vmem [#allocation10], 64
    %v4316 = vld [vmem:[%s4315] sm:$0xf]
    %v4317 = vld [vmem:[%s4315 + $0x4] sm:$0xf]
    %v4318 = vld [vmem:[%s4315 + $0x8] sm:$0xf]
    %v4319 = vld [vmem:[%s4315 + $0xc] sm:$0xf]
    %v4321 = vshrl.u32 %v4200, 16
    %v4323 = vrot.slane %v4321, 4
    %v4324 = vshll.u32 %v4200, 16
    %v4326 = vrot.slane %v4324, 5
    %v4327 = vor.u32 %v4323, %v4326
    %v4328 = vrot.slane %v3872, 4
    %v4329 = vrot.slane %v3868, 5
    %v4330 = vor.u32 %v4328, %v4329
    %v4331 = vsel %vm690, %v4327, %v4330
    %v4332 = vrot.slane %v3880, 4
    %v4333 = vrot.slane %v3876, 5
    %v4334 = vor.u32 %v4332, %v4333
    %v4335 = vsel %vm690, %v4330, %v4334
    %v4336 = vrot.slane %v3888, 4
    %v4337 = vrot.slane %v3884, 5
    %v4338 = vor.u32 %v4336, %v4337
    %v4339 = vsel %vm690, %v4334, %v4338
    %v4340 = vrot.slane %v3896, 4
    %v4341 = vrot.slane %v3892, 5
    %v4342 = vor.u32 %v4340, %v4341
    %v4343 = vsel %vm690, %v4338, %v4342
    %v4345 = vshrl.u32 %v4314, 16
    %v4347 = vrot.slane %v4345, 4
    %v4348 = vshll.u32 %v4314, 16
    %v4350 = vrot.slane %v4348, 5
    %v4351 = vor.u32 %v4347, %v4350
    %v4352 = vsel %vm690, %v4342, %v4351
    %v4357 = vunpack.c.l.b16 %v4316
    %v4358 = vunpack.c.l.b16 %v4317
    %v4359 = vunpack.c.l.b16 %v4318
    %v4360 = vunpack.c.l.b16 %v4319
    %v4361 = vpack.c.b16 %v4358, %v4357
    %v4362 = vpack.c.b16 %v4360, %v4359
    %v4366 = vsel %vm85, %v4331, 0
    %v4369 = vsel %vm85, %v4335, 0
    %v4372 = vsel %vm85, %v4339, 0
    %v4375 = vsel %vm85, %v4343, 0
    %v4378 = vsel %vm85, %v4352, 0
    %4380 = vmatprep.subr.bf16.mxu0 0
    %4381 = vmatpush1.bf16.msra.mxu0 %v4361
    %4382 = vmatprep.subr.bf16.mxu0 0
    %4383 = vmatpush1.bf16.msra.mxu0 %v4362
    %4384 = vmatprep.subr.bf16.mxu0 0
    %4385 = vmatpush1.bf16.msra.mxu0 0
    %4386 = vmatprep.subr.bf16.mxu0 0
    %4387 = vmatpush1.bf16.msra.mxu0 0
    %4388 = vmatprep.subr.bf16.mxu0 0
    %4389 = vmatpush1.bf16.msra.mxu0 0
    %4390 = vmatprep.subr.bf16.mxu0 0
    %4391 = vmatpush1.bf16.msra.mxu0 0
    %4392 = vmatprep.subr.bf16.mxu0 0
    %4393 = vmatpush1.bf16.msra.mxu0 0
    %4394 = vmatprep.subr.bf16.mxu0 0
    %4395 = vmatpush1.bf16.msra.mxu0 0
    %4396 = vmatprep.subr.bf16.mxu0 0
    %4397 = vmatpush1.bf16.msra.mxu0 0
    %4398 = vmatprep.subr.bf16.mxu0 0
    %4399 = vmatpush1.bf16.msra.mxu0 0
    %4400 = vmatprep.subr.bf16.mxu0 0
    %4401 = vmatpush1.bf16.msra.mxu0 0
    %4402 = vmatprep.subr.bf16.mxu0 0
    %4403 = vmatpush1.bf16.msra.mxu0 0
    %4404 = vmatprep.subr.bf16.mxu0 0
    %4405 = vmatpush1.bf16.msra.mxu0 0
    %4406 = vmatprep.subr.bf16.mxu0 0
    %4407 = vmatpush1.bf16.msra.mxu0 0
    %4408 = vmatprep.subr.bf16.mxu0 0
    %4409 = vmatpush1.bf16.msra.mxu0 0
    %4410 = vmatprep.subr.bf16.mxu0 0
    %4411 = vmatpush1.bf16.msra.mxu0 0
    %4412 = vmatprep.mubr.bf16.mxu0 0
    %4413 = vmatmul.mubr.bf16.gmra.mrb[0].mxu0 %v4366
    %v4414 = vpop.f32.mrb[0].mxu0
    %v4415 = vadd.f32 0.0, %v4414
    %v4416 = vpop.f32.mrb[0].mxu0
    %v4417 = vpop.f32.mrb[0].mxu0
    %v4418 = vpop.f32.mrb[0].mxu0
    %4419 = vmatprep.mubr.bf16.mxu0 0
    %4420 = vmatmul.mubr.bf16.gmra.mrb[0].mxu0 %v4369
    %v4421 = vpop.f32.mrb[0].mxu0
    %v4422 = vpop.f32.mrb[0].mxu0
    %v4423 = vpop.f32.mrb[0].mxu0
    %v4424 = vpop.f32.mrb[0].mxu0
    %4425 = vmatprep.mubr.bf16.mxu0 0
    %4426 = vmatmul.mubr.bf16.gmra.mrb[0].mxu0 %v4372
    %v4427 = vpop.f32.mrb[0].mxu0
    %v4428 = vpop.f32.mrb[0].mxu0
    %v4429 = vpop.f32.mrb[0].mxu0
    %v4430 = vpop.f32.mrb[0].mxu0
    %4431 = vmatprep.mubr.bf16.mxu0 0
    %4432 = vmatmul.mubr.bf16.gmra.mrb[0].mxu0 %v4375
    %v4433 = vpop.f32.mrb[0].mxu0
    %v4434 = vpop.f32.mrb[0].mxu0
    %v4435 = vpop.f32.mrb[0].mxu0
    %v4436 = vpop.f32.mrb[0].mxu0
    %4437 = vmatprep.mubr.bf16.mxu0 0
    %4438 = vmatmul.mubr.bf16.gmra.mrb[0].mxu0 %v4378
    %v4439 = vpop.f32.mrb[0].mxu0
    %v4440 = vpop.f32.mrb[0].mxu0
    %v4441 = vpop.f32.mrb[0].mxu0
    %v4442 = vadd.f32 0.0, %v4441
    %v4443 = vpop.f32.mrb[0].mxu0
    %4444 = vdwg.mxu0
    %v4445 = vadd.f32 %v4312, %v4415
    %v4446 = vadd.f32 %v4313, %v4442
    %v4447 = vld [vmem:[#allocation3] sm:$0xe0]
    %s4448 = scalar_lea.vmem [#allocation10], 80
    %v4449 = vld [vmem:[%s4448] sm:$0xf]
    %v4450 = vld [vmem:[%s4448 + $0x4] sm:$0xf]
    %v4451 = vld [vmem:[%s4448 + $0x8] sm:$0xf]
    %v4452 = vld [vmem:[%s4448 + $0xc] sm:$0xf]
    %v4455 = vrot.slane %v4447, 5
    %v4456 = vrot.slane %v3846, 5
    %v4457 = vsel %vm1765, %v4455, %v4456
    %v4458 = vrot.slane %v3847, 5
    %v4459 = vsel %vm1765, %v4456, %v4458
    %v4460 = vrot.slane %v3848, 5
    %v4461 = vsel %vm1765, %v4458, %v4460
    %v4462 = vrot.slane %v3849, 5
    %v4463 = vsel %vm1765, %v4460, %v4462
    %v4464 = vrot.slane %v4314, 5
    %v4465 = vsel %vm1765, %v4462, %v4464
    %v4470 = vunpack.c.l.b16 %v4449
    %v4471 = vunpack.c.l.b16 %v4450
    %v4472 = vunpack.c.l.b16 %v4451
    %v4473 = vunpack.c.l.b16 %v4452
    %v4474 = vpack.c.b16 %v4471, %v4470
    %v4475 = vpack.c.b16 %v4473, %v4472
    %v4479 = vsel %vm85, %v4457, 0
    %v4482 = vsel %vm85, %v4459, 0
    %v4485 = vsel %vm85, %v4461, 0
    %v4488 = vsel %vm85, %v4463, 0
    %v4491 = vsel %vm85, %v4465, 0
    %4493 = vmatprep.subr.bf16.mxu0 0
    %4494 = vmatpush1.bf16.msra.mxu0 %v4474
    %4495 = vmatprep.subr.bf16.mxu0 0
    %4496 = vmatpush1.bf16.msra.mxu0 %v4475
    %4497 = vmatprep.subr.bf16.mxu0 0
    %4498 = vmatpush1.bf16.msra.mxu0 0
    %4499 = vmatprep.subr.bf16.mxu0 0
    %4500 = vmatpush1.bf16.msra.mxu0 0
    %4501 = vmatprep.subr.bf16.mxu0 0
    %4502 = vmatpush1.bf16.msra.mxu0 0
    %4503 = vmatprep.subr.bf16.mxu0 0
    %4504 = vmatpush1.bf16.msra.mxu0 0
    %4505 = vmatprep.subr.bf16.mxu0 0
    %4506 = vmatpush1.bf16.msra.mxu0 0
    %4507 = vmatprep.subr.bf16.mxu0 0
    %4508 = vmatpush1.bf16.msra.mxu0 0
    %4509 = vmatprep.subr.bf16.mxu0 0
    %4510 = vmatpush1.bf16.msra.mxu0 0
    %4511 = vmatprep.subr.bf16.mxu0 0
    %4512 = vmatpush1.bf16.msra.mxu0 0
    %4513 = vmatprep.subr.bf16.mxu0 0
    %4514 = vmatpush1.bf16.msra.mxu0 0
    %4515 = vmatprep.subr.bf16.mxu0 0
    %4516 = vmatpush1.bf16.msra.mxu0 0
    %4517 = vmatprep.subr.bf16.mxu0 0
    %4518 = vmatpush1.bf16.msra.mxu0 0
    %4519 = vmatprep.subr.bf16.mxu0 0
    %4520 = vmatpush1.bf16.msra.mxu0 0
    %4521 = vmatprep.subr.bf16.mxu0 0
    %4522 = vmatpush1.bf16.msra.mxu0 0
    %4523 = vmatprep.subr.bf16.mxu0 0
    %4524 = vmatpush1.bf16.msra.mxu0 0
    %4525 = vmatprep.mubr.bf16.mxu0 0
    %4526 = vmatmul.mubr.bf16.gmra.mrb[0].mxu0 %v4479
    %v4527 = vpop.f32.mrb[0].mxu0
    %v4528 = vadd.f32 0.0, %v4527
    %v4529 = vpop.f32.mrb[0].mxu0
    %v4530 = vpop.f32.mrb[0].mxu0
    %v4531 = vpop.f32.mrb[0].mxu0
    %4532 = vmatprep.mubr.bf16.mxu0 0
    %4533 = vmatmul.mubr.bf16.gmra.mrb[0].mxu0 %v4482
    %v4534 = vpop.f32.mrb[0].mxu0
    %v4535 = vpop.f32.mrb[0].mxu0
    %v4536 = vpop.f32.mrb[0].mxu0
    %v4537 = vpop.f32.mrb[0].mxu0
    %4538 = vmatprep.mubr.bf16.mxu0 0
    %4539 = vmatmul.mubr.bf16.gmra.mrb[0].mxu0 %v4485
    %v4540 = vpop.f32.mrb[0].mxu0
    %v4541 = vpop.f32.mrb[0].mxu0
    %v4542 = vpop.f32.mrb[0].mxu0
    %v4543 = vpop.f32.mrb[0].mxu0
    %4544 = vmatprep.mubr.bf16.mxu0 0
    %4545 = vmatmul.mubr.bf16.gmra.mrb[0].mxu0 %v4488
    %v4546 = vpop.f32.mrb[0].mxu0
    %v4547 = vpop.f32.mrb[0].mxu0
    %v4548 = vpop.f32.mrb[0].mxu0
    %v4549 = vpop.f32.mrb[0].mxu0
    %4550 = vmatprep.mubr.bf16.mxu0 0
    %4551 = vmatmul.mubr.bf16.gmra.mrb[0].mxu0 %v4491
    %v4552 = vpop.f32.mrb[0].mxu0
    %v4553 = vpop.f32.mrb[0].mxu0
    %v4554 = vpop.f32.mrb[0].mxu0
    %v4555 = vadd.f32 0.0, %v4554
    %v4556 = vpop.f32.mrb[0].mxu0
    %4557 = vdwg.mxu0
    %v4558 = vadd.f32 %v4445, %v4528
    %v4559 = vadd.f32 %v4446, %v4555
    %v4560 = vld [vmem:[#allocation3 + $0x28] sm:$0xff]
    %s4561 = scalar_lea.vmem [#allocation10], 96
    %v4562 = vld [vmem:[%s4561] sm:$0xf]
    %v4563 = vld [vmem:[%s4561 + $0x4] sm:$0xf]
    %v4564 = vld [vmem:[%s4561 + $0x8] sm:$0xf]
    %v4565 = vld [vmem:[%s4561 + $0xc] sm:$0xf]
    %v4570 = vunpack.c.l.b16 %v4562
    %v4571 = vunpack.c.l.b16 %v4563
    %v4572 = vunpack.c.l.b16 %v4564
    %v4573 = vunpack.c.l.b16 %v4565
    %v4574 = vpack.c.b16 %v4571, %v4570
    %v4575 = vpack.c.b16 %v4573, %v4572
    %v4579 = vsel %vm85, %v4560, 0
    %4581 = vmatprep.subr.bf16.mxu0 0
    %4582 = vmatpush1.bf16.msra.mxu0 %v4574
    %4583 = vmatprep.subr.bf16.mxu0 0
    %4584 = vmatpush1.bf16.msra.mxu0 %v4575
    %4585 = vmatprep.subr.bf16.mxu0 0
    %4586 = vmatpush1.bf16.msra.mxu0 0
    %4587 = vmatprep.subr.bf16.mxu0 0
    %4588 = vmatpush1.bf16.msra.mxu0 0
    %4589 = vmatprep.subr.bf16.mxu0 0
    %4590 = vmatpush1.bf16.msra.mxu0 0
    %4591 = vmatprep.subr.bf16.mxu0 0
    %4592 = vmatpush1.bf16.msra.mxu0 0
    %4593 = vmatprep.subr.bf16.mxu0 0
    %4594 = vmatpush1.bf16.msra.mxu0 0
    %4595 = vmatprep.subr.bf16.mxu0 0
    %4596 = vmatpush1.bf16.msra.mxu0 0
    %4597 = vmatprep.subr.bf16.mxu0 0
    %4598 = vmatpush1.bf16.msra.mxu0 0
    %4599 = vmatprep.subr.bf16.mxu0 0
    %4600 = vmatpush1.bf16.msra.mxu0 0
    %4601 = vmatprep.subr.bf16.mxu0 0
    %4602 = vmatpush1.bf16.msra.mxu0 0
    %4603 = vmatprep.subr.bf16.mxu0 0
    %4604 = vmatpush1.bf16.msra.mxu0 0
    %4605 = vmatprep.subr.bf16.mxu0 0
    %4606 = vmatpush1.bf16.msra.mxu0 0
    %4607 = vmatprep.subr.bf16.mxu0 0
    %4608 = vmatpush1.bf16.msra.mxu0 0
    %4609 = vmatprep.subr.bf16.mxu0 0
    %4610 = vmatpush1.bf16.msra.mxu0 0
    %4611 = vmatprep.subr.bf16.mxu0 0
    %4612 = vmatpush1.bf16.msra.mxu0 0
    %4613 = vmatprep.mubr.bf16.mxu0 0
    %4614 = vmatmul.mubr.bf16.gmra.mrb[0].mxu0 %v4010
    %v4615 = vpop.f32.mrb[0].mxu0
    %v4616 = vadd.f32 0.0, %v4615
    %v4617 = vpop.f32.mrb[0].mxu0
    %v4618 = vpop.f32.mrb[0].mxu0
    %v4619 = vpop.f32.mrb[0].mxu0
    %4620 = vmatprep.mubr.bf16.mxu0 0
    %4621 = vmatmul.mubr.bf16.gmra.mrb[0].mxu0 %v4012
    %v4622 = vpop.f32.mrb[0].mxu0
    %v4623 = vpop.f32.mrb[0].mxu0
    %v4624 = vpop.f32.mrb[0].mxu0
    %v4625 = vpop.f32.mrb[0].mxu0
    %4626 = vmatprep.mubr.bf16.mxu0 0
    %4627 = vmatmul.mubr.bf16.gmra.mrb[0].mxu0 %v4014
    %v4628 = vpop.f32.mrb[0].mxu0
    %v4629 = vpop.f32.mrb[0].mxu0
    %v4630 = vpop.f32.mrb[0].mxu0
    %v4631 = vpop.f32.mrb[0].mxu0
    %4632 = vmatprep.mubr.bf16.mxu0 0
    %4633 = vmatmul.mubr.bf16.gmra.mrb[0].mxu0 %v4016
    %v4634 = vpop.f32.mrb[0].mxu0
    %v4635 = vpop.f32.mrb[0].mxu0
    %v4636 = vpop.f32.mrb[0].mxu0
    %v4637 = vpop.f32.mrb[0].mxu0
    %4638 = vmatprep.mubr.bf16.mxu0 0
    %4639 = vmatmul.mubr.bf16.gmra.mrb[0].mxu0 %v4579
    %v4640 = vpop.f32.mrb[0].mxu0
    %v4641 = vpop.f32.mrb[0].mxu0
    %v4642 = vpop.f32.mrb[0].mxu0
    %v4643 = vadd.f32 0.0, %v4642
    %v4644 = vpop.f32.mrb[0].mxu0
    %4645 = vdwg.mxu0
    %v4646 = vadd.f32 %v4558, %v4616
    %v4647 = vadd.f32 %v4559, %v4643
    %v4648 = vld [vmem:[#allocation3 + $0x8] sm:$0xff]
    %v4649 = vld [vmem:[#allocation3 + $0x10] sm:$0xff]
    %v4650 = vld [vmem:[#allocation3 + $0x18] sm:$0xff]
    %v4651 = vld [vmem:[#allocation3 + $0x20] sm:$0xff]
    %v4652 = vld [vmem:[#allocation3 + $0x28] sm:$0xff]
    %v4653 = vld [vmem:[#allocation3 + $0x30] sm:$0x1]
    %s4654 = scalar_lea.vmem [#allocation10], 112
    %v4655 = vld [vmem:[%s4654] sm:$0xf]
    %v4656 = vld [vmem:[%s4654 + $0x4] sm:$0xf]
    %v4657 = vld [vmem:[%s4654 + $0x8] sm:$0xf]
    %v4658 = vld [vmem:[%s4654 + $0xc] sm:$0xf]
    %v4660 = vshrl.u32 %v4648, 16
    %v4662 = vshll.u32 %v4648, 16
    %v4664 = vrot.slane %v4662, 1
    %v4665 = vor.u32 %v4660, %v4664
    %v4667 = vshll.u32 %v4649, 16
    %v4669 = vrot.slane %v4667, 1
    %v4670 = vsel %vm196, %v4665, %v4669
    %v4671 = vshrl.u32 %v4649, 16
    %v4673 = vor.u32 %v4671, %v4669
    %v4675 = vshll.u32 %v4650, 16
    %v4677 = vrot.slane %v4675, 1
    %v4678 = vsel %vm196, %v4673, %v4677
    %v4679 = vshrl.u32 %v4650, 16
    %v4681 = vor.u32 %v4679, %v4677
    %v4683 = vshll.u32 %v4651, 16
    %v4685 = vrot.slane %v4683, 1
    %v4686 = vsel %vm196, %v4681, %v4685
    %v4687 = vshrl.u32 %v4651, 16
    %v4689 = vor.u32 %v4687, %v4685
    %v4691 = vshll.u32 %v4652, 16
    %v4693 = vrot.slane %v4691, 1
    %v4694 = vsel %vm196, %v4689, %v4693
    %v4695 = vshrl.u32 %v4652, 16
    %v4697 = vor.u32 %v4695, %v4693
    %v4699 = vshll.u32 %v4653, 16
    %v4701 = vrot.slane %v4699, 1
    %v4702 = vsel %vm196, %v4697, %v4701
    %v4707 = vunpack.c.l.b16 %v4655
    %v4708 = vunpack.c.l.b16 %v4656
    %v4709 = vunpack.c.l.b16 %v4657
    %v4710 = vunpack.c.l.b16 %v4658
    %v4711 = vpack.c.b16 %v4708, %v4707
    %v4712 = vpack.c.b16 %v4710, %v4709
    %v4716 = vsel %vm85, %v4670, 0
    %v4719 = vsel %vm85, %v4678, 0
    %v4722 = vsel %vm85, %v4686, 0
    %v4725 = vsel %vm85, %v4694, 0
    %v4728 = vsel %vm85, %v4702, 0
    %4730 = vmatprep.subr.bf16.mxu0 0
    %4731 = vmatpush1.bf16.msra.mxu0 %v4711
    %4732 = vmatprep.subr.bf16.mxu0 0
    %4733 = vmatpush1.bf16.msra.mxu0 %v4712
    %4734 = vmatprep.subr.bf16.mxu0 0
    %4735 = vmatpush1.bf16.msra.mxu0 0
    %4736 = vmatprep.subr.bf16.mxu0 0
    %4737 = vmatpush1.bf16.msra.mxu0 0
    %4738 = vmatprep.subr.bf16.mxu0 0
    %4739 = vmatpush1.bf16.msra.mxu0 0
    %4740 = vmatprep.subr.bf16.mxu0 0
    %4741 = vmatpush1.bf16.msra.mxu0 0
    %4742 = vmatprep.subr.bf16.mxu0 0
    %4743 = vmatpush1.bf16.msra.mxu0 0
    %4744 = vmatprep.subr.bf16.mxu0 0
    %4745 = vmatpush1.bf16.msra.mxu0 0
    %4746 = vmatprep.subr.bf16.mxu0 0
    %4747 = vmatpush1.bf16.msra.mxu0 0
    %4748 = vmatprep.subr.bf16.mxu0 0
    %4749 = vmatpush1.bf16.msra.mxu0 0
    %4750 = vmatprep.subr.bf16.mxu0 0
    %4751 = vmatpush1.bf16.msra.mxu0 0
    %4752 = vmatprep.subr.bf16.mxu0 0
    %4753 = vmatpush1.bf16.msra.mxu0 0
    %4754 = vmatprep.subr.bf16.mxu0 0
    %4755 = vmatpush1.bf16.msra.mxu0 0
    %4756 = vmatprep.subr.bf16.mxu0 0
    %4757 = vmatpush1.bf16.msra.mxu0 0
    %4758 = vmatprep.subr.bf16.mxu0 0
    %4759 = vmatpush1.bf16.msra.mxu0 0
    %4760 = vmatprep.subr.bf16.mxu0 0
    %4761 = vmatpush1.bf16.msra.mxu0 0
    %4762 = vmatprep.mubr.bf16.mxu0 0
    %4763 = vmatmul.mubr.bf16.gmra.mrb[0].mxu0 %v4716
    %v4764 = vpop.f32.mrb[0].mxu0
    %v4765 = vadd.f32 0.0, %v4764
    %v4766 = vpop.f32.mrb[0].mxu0
    %v4767 = vpop.f32.mrb[0].mxu0
    %v4768 = vpop.f32.mrb[0].mxu0
    %4769 = vmatprep.mubr.bf16.mxu0 0
    %4770 = vmatmul.mubr.bf16.gmra.mrb[0].mxu0 %v4719
    %v4771 = vpop.f32.mrb[0].mxu0
    %v4772 = vpop.f32.mrb[0].mxu0
    %v4773 = vpop.f32.mrb[0].mxu0
    %v4774 = vpop.f32.mrb[0].mxu0
    %4775 = vmatprep.mubr.bf16.mxu0 0
    %4776 = vmatmul.mubr.bf16.gmra.mrb[0].mxu0 %v4722
    %v4777 = vpop.f32.mrb[0].mxu0
    %v4778 = vpop.f32.mrb[0].mxu0
    %v4779 = vpop.f32.mrb[0].mxu0
    %v4780 = vpop.f32.mrb[0].mxu0
    %4781 = vmatprep.mubr.bf16.mxu0 0
    %4782 = vmatmul.mubr.bf16.gmra.mrb[0].mxu0 %v4725
    %v4783 = vpop.f32.mrb[0].mxu0
    %v4784 = vpop.f32.mrb[0].mxu0
    %v4785 = vpop.f32.mrb[0].mxu0
    %v4786 = vpop.f32.mrb[0].mxu0
    %4787 = vmatprep.mubr.bf16.mxu0 0
    %4788 = vmatmul.mubr.bf16.gmra.mrb[0].mxu0 %v4728
    %v4789 = vpop.f32.mrb[0].mxu0
    %v4790 = vpop.f32.mrb[0].mxu0
    %v4791 = vpop.f32.mrb[0].mxu0
    %v4792 = vadd.f32 0.0, %v4791
    %v4793 = vpop.f32.mrb[0].mxu0
    %4794 = vdwg.mxu0
    %v4795 = vadd.f32 %v4646, %v4765
    %v4796 = vadd.f32 %v4647, %v4792
    %v4797 = vld [vmem:[#allocation3 + $0x8] sm:$0xfe]
    %s4798 = scalar_lea.vmem [#allocation10], 128
    %v4799 = vld [vmem:[%s4798] sm:$0xf]
    %v4800 = vld [vmem:[%s4798 + $0x4] sm:$0xf]
    %v4801 = vld [vmem:[%s4798 + $0x8] sm:$0xf]
    %v4802 = vld [vmem:[%s4798 + $0xc] sm:$0xf]
    %v4809 = vrot.slane %v4797, 1
    %v4810 = vrot.slane %v4649, 1
    %v4811 = vsel %vm1262, %v4809, %v4810
    %v4812 = vrot.slane %v4650, 1
    %v4813 = vsel %vm1262, %v4810, %v4812
    %v4814 = vrot.slane %v4651, 1
    %v4815 = vsel %vm1262, %v4812, %v4814
    %v4816 = vrot.slane %v4652, 1
    %v4817 = vsel %vm1262, %v4814, %v4816
    %v4818 = vrot.slane %v4653, 1
    %v4819 = vsel %vm1262, %v4816, %v4818
    %v4824 = vunpack.c.l.b16 %v4799
    %v4825 = vunpack.c.l.b16 %v4800
    %v4826 = vunpack.c.l.b16 %v4801
    %v4827 = vunpack.c.l.b16 %v4802
    %v4828 = vpack.c.b16 %v4825, %v4824
    %v4829 = vpack.c.b16 %v4827, %v4826
    %v4833 = vsel %vm85, %v4811, 0
    %v4836 = vsel %vm85, %v4813, 0
    %v4839 = vsel %vm85, %v4815, 0
    %v4842 = vsel %vm85, %v4817, 0
    %v4845 = vsel %vm85, %v4819, 0
    %4847 = vmatprep.subr.bf16.mxu0 0
    %4848 = vmatpush1.bf16.msra.mxu0 %v4828
    %4849 = vmatprep.subr.bf16.mxu0 0
    %4850 = vmatpush1.bf16.msra.mxu0 %v4829
    %4851 = vmatprep.subr.bf16.mxu0 0
    %4852 = vmatpush1.bf16.msra.mxu0 0
    %4853 = vmatprep.subr.bf16.mxu0 0
    %4854 = vmatpush1.bf16.msra.mxu0 0
    %4855 = vmatprep.subr.bf16.mxu0 0
    %4856 = vmatpush1.bf16.msra.mxu0 0
    %4857 = vmatprep.subr.bf16.mxu0 0
    %4858 = vmatpush1.bf16.msra.mxu0 0
    %4859 = vmatprep.subr.bf16.mxu0 0
    %4860 = vmatpush1.bf16.msra.mxu0 0
    %4861 = vmatprep.subr.bf16.mxu0 0
    %4862 = vmatpush1.bf16.msra.mxu0 0
    %4863 = vmatprep.subr.bf16.mxu0 0
    %4864 = vmatpush1.bf16.msra.mxu0 0
    %4865 = vmatprep.subr.bf16.mxu0 0
    %4866 = vmatpush1.bf16.msra.mxu0 0
    %4867 = vmatprep.subr.bf16.mxu0 0
    %4868 = vmatpush1.bf16.msra.mxu0 0
    %4869 = vmatprep.subr.bf16.mxu0 0
    %4870 = vmatpush1.bf16.msra.mxu0 0
    %4871 = vmatprep.subr.bf16.mxu0 0
    %4872 = vmatpush1.bf16.msra.mxu0 0
    %4873 = vmatprep.subr.bf16.mxu0 0
    %4874 = vmatpush1.bf16.msra.mxu0 0
    %4875 = vmatprep.subr.bf16.mxu0 0
    %4876 = vmatpush1.bf16.msra.mxu0 0
    %4877 = vmatprep.subr.bf16.mxu0 0
    %4878 = vmatpush1.bf16.msra.mxu0 0
    %4879 = vmatprep.mubr.bf16.mxu0 0
    %4880 = vmatmul.mubr.bf16.gmra.mrb[0].mxu0 %v4833
    %v4881 = vpop.f32.mrb[0].mxu0
    %v4882 = vadd.f32 0.0, %v4881
    %v4883 = vpop.f32.mrb[0].mxu0
    %v4884 = vpop.f32.mrb[0].mxu0
    %v4885 = vpop.f32.mrb[0].mxu0
    %4886 = vmatprep.mubr.bf16.mxu0 0
    %4887 = vmatmul.mubr.bf16.gmra.mrb[0].mxu0 %v4836
    %v4888 = vpop.f32.mrb[0].mxu0
    %v4889 = vpop.f32.mrb[0].mxu0
    %v4890 = vpop.f32.mrb[0].mxu0
    %v4891 = vpop.f32.mrb[0].mxu0
    %4892 = vmatprep.mubr.bf16.mxu0 0
    %4893 = vmatmul.mubr.bf16.gmra.mrb[0].mxu0 %v4839
    %v4894 = vpop.f32.mrb[0].mxu0
    %v4895 = vpop.f32.mrb[0].mxu0
    %v4896 = vpop.f32.mrb[0].mxu0
    %v4897 = vpop.f32.mrb[0].mxu0
    %4898 = vmatprep.mubr.bf16.mxu0 0
    %4899 = vmatmul.mubr.bf16.gmra.mrb[0].mxu0 %v4842
    %v4900 = vpop.f32.mrb[0].mxu0
    %v4901 = vpop.f32.mrb[0].mxu0
    %v4902 = vpop.f32.mrb[0].mxu0
    %v4903 = vpop.f32.mrb[0].mxu0
    %4904 = vmatprep.mubr.bf16.mxu0 0
    %4905 = vmatmul.mubr.bf16.gmra.mrb[0].mxu0 %v4845
    %v4906 = vpop.f32.mrb[0].mxu0
    %v4907 = vpop.f32.mrb[0].mxu0
    %v4908 = vpop.f32.mrb[0].mxu0
    %v4909 = vadd.f32 0.0, %v4908
    %v4910 = vpop.f32.mrb[0].mxu0
    %4911 = vdwg.mxu0
    %v4912 = vadd.f32 %v4795, %v4882
    %v4913 = vadd.f32 %v4796, %v4909
    %v4914 = vld [vmem:[%s8] sm:$0x1]
    %v4916 = vlaneseq
    %v4917 = vshrl.u32 %v4916, 7
    %v4918 = vsub.s32 0, %v4917
    %v4919 = vrot.slane %v4914, %v4918
    %v4921 = vadd.f32 %v4912, %v4919
    %v4922 = vadd.f32 %v4913, %v4919
    %v4923 = vmax.f32 %v4921, 0.0
    %v4924 = vmax.f32 %v4922, 0.0
    %4925 = vst.msk [vmem:[#allocation11] sm:$0xff] %vm85, %v4923
    %s4926 = scalar_lea.vmem [#allocation11], 8
    %4927 = vst.msk [vmem:[%s4926] sm:$0xff] %vm85, %v4924
    // Predicated region
    $region50: #{tpu_custom_call.1} parent=1 // pred_check
      _
    $region51: #{tpu_custom_call.1} parent=1 // pred_check_branch
      %4929 = sbr.rel (0) target = $region53
    $region52: #{tpu_custom_call.1} parent=1 // pred_region
      %s4931 = ssub.s32 256, 256
      %4932 = vsyncadd [#allocation7], %s4931
      %s4933 = sshll.u32 [#allocation11], 4
      %s4934 = int_to_ptr.vmem [resolvable:$true] %s4933
      %4939 = dma.vmem_to_hbm [thread:$0]  %s4934, 256, %s9, [#allocation7], 128, 128, 8
    $region53: #{tpu_custom_call.1} parent=1 // pred_fallthru
      _
    // Predicated region
    $region54: #{tpu_custom_call.1} parent=1 // pred_check
      _
    $region55: #{tpu_custom_call.1} parent=1 // pred_check_branch
      %4941 = sbr.rel (0) target = $region57
    $region56: #{tpu_custom_call.1} parent=1 // pred_region
      %4942 = dma.done [#allocation7], 256
    $region57: #{tpu_custom_call.1} parent=1 // pred_fallthru
      _
    %4943 = vsyncpa [#allocation6], 1
    %4944 = vsyncpa [#allocation9], 1
    %4945 = vsyncpa [#allocation7], 1

</llo_original>
